<compile_context>
chip_gen: v7x
topology: tpu7x:2x2x1
jax: 0.10.0
libtpu: 0.0.40
codegen_flags: <defaults>
</compile_context>

<pallas_src>
import functools
import math

import jax
import jax.numpy as jnp
from jax import lax
from jax.experimental import pallas as pl
from jax.experimental.pallas import tpu as pltpu

LANE = 128


def _round_up(x, m):
    return (x + m - 1) // m * m


def _simam_block_kernel(patches_ref, xs_ref, w1_ref, w2_ref, wd_ref, bn_ref,
                        out_ref, mid_ref, *, has_downsample, lambda_p):
    """One batch element per grid step.

    patches_ref : (1, Ho, Wo, 9*Cinp) bf16  im2col of conv1 input (stride folded in wrapper)
    xs_ref      : (1, Ho, Wo, Cinp)   f32   strided input (shortcut path)
    w1_ref      : (9*Cinp, Cp)        bf16  conv1 weights, im2col layout
    w2_ref      : (9*Cp,  Cp)         bf16  conv2 weights, im2col layout
    wd_ref      : (Cinp,  Cp)         bf16  1x1 downsample weights (zeros if identity)
    bn_ref      : (6, Cp)             f32   folded BN rows [s1, b1, s2, b2, sd, bd]
    out_ref     : (1, Ho, Wo, Cp)     f32
    mid_ref     : VMEM (Ho+2, Wo+16, Cp) bf16 scratch; interior at [1:Ho+1, 8:8+Wo]
    """
    _, Ho, Wo, Cp = out_ref.shape
    HW = Ho * Wo
    Kin = patches_ref.shape[-1]
    Cinp = xs_ref.shape[-1]

    s1 = bn_ref[0:1, :]
    b1 = bn_ref[1:2, :]
    s2 = bn_ref[2:3, :]
    b2 = bn_ref[3:4, :]

    # ---- conv1: single K=9*Cinp bf16 matmul (MXU), f32 accumulate, + bn1 + relu
    p1 = patches_ref[0].reshape(HW, Kin)
    acc1 = jnp.dot(p1, w1_ref[...], preferred_element_type=jnp.float32)
    out1 = jnp.maximum(acc1 * s1 + b1, 0.0)

    # ---- zero-padded intermediate in VMEM scratch ---------------------------
    # Interior starts at W column 8 so the store is sublane-aligned (unmasked).
    # Only the 1-wide halo strips are zeroed (cheap; done every step so the
    # kernel stays correct if the batch axis is sharded across TensorCores,
    # since scratch is per-core).
    zrow = jnp.zeros((1, Wo + 16, Cp), mid_ref.dtype)
    mid_ref[0:1, :, :] = zrow
    mid_ref[Ho + 1:Ho + 2, :, :] = zrow
    zcol = jnp.zeros((Ho, 8, Cp), mid_ref.dtype)
    mid_ref[1:Ho + 1, 0:8, :] = zcol
    mid_ref[1:Ho + 1, 8 + Wo:Wo + 16, :] = zcol
    mid_ref[1:Ho + 1, 8:8 + Wo, :] = out1.reshape(Ho, Wo, Cp).astype(mid_ref.dtype)

    # ---- conv2 (3x3, stride 1, pad 1): in-kernel im2col -> one K=9*Cp matmul
    taps = []
    for dh in range(3):
        for dw in range(3):
            taps.append(mid_ref[dh:dh + Ho, 7 + dw:7 + dw + Wo, :])
    p2 = jnp.concatenate(taps, axis=-1).reshape(HW, 9 * Cp)
    acc2 = jnp.dot(p2, w2_ref[...], preferred_element_type=jnp.float32)
    out2 = acc2 * s2 + b2

    # ---- SimAM attention (needs full-map per-channel stats) -----------------
    n = HW - 1
    mean = jnp.mean(out2, axis=0, keepdims=True)
    d = (out2 - mean) ** 2
    v = jnp.sum(d, axis=0, keepdims=True) * (1.0 / n)
    e_inv = d / (4.0 * (v + lambda_p)) + 0.5
    out2 = out2 * (1.0 / (1.0 + jnp.exp(-e_inv)))          # x * sigmoid(E_inv)

    # ---- shortcut (projection 1x1 conv + BN, or identity) + final relu ------
    xs = xs_ref[0].reshape(HW, Cinp)
    if has_downsample:
        sd = bn_ref[4:5, :]
        bd = bn_ref[5:6, :]
        ds = jnp.dot(xs.astype(jnp.bfloat16), wd_ref[...],
                     preferred_element_type=jnp.float32)
        res = ds * sd + bd
    else:
        res = xs                                            # identity (Cinp == Cp)

    out = jnp.maximum(out2 + res, 0.0)
    out_ref[0] = out.reshape(Ho, Wo, Cp).astype(out_ref.dtype)


def simam_basic_block(x_nchw, p, *, stride=1, lambda_p=1e-4):
    """Pallas SimAMBasicBlock forward. x_nchw: (N, Cin, H, W) f32 -> (N, Cout, Ho, Wo)."""
    x = jnp.transpose(x_nchw, (0, 2, 3, 1)).astype(jnp.float32)    # NCHW -> NHWC
    N, H, W, Cin = x.shape
    Cout = p["w1"].shape[-1]
    has_downsample = (stride != 1) or (Cin != Cout)

    Ho = (H - 1) // stride + 1
    Wo = (W - 1) // stride + 1
    assert Wo % 8 == 0, "output width must be a multiple of 8 for aligned tiles"

    Cinp = _round_up(Cin, LANE)        # lane-dense channel padding
    Cp = _round_up(Cout, LANE)

    # Channel pad, then spatial zero-pad for the 3x3 window.
    xp = jnp.pad(x, ((0, 0), (0, 0), (0, 0), (0, Cinp - Cin)))
    xpad = jnp.pad(xp, ((0, 0), (1, 1), (1, 1), (0, 0)))

    # Wrapper-side im2col for conv1 (stride folded here; XLA fuses these slices).
    taps = [xpad[:, dh:dh + (Ho - 1) * stride + 1:stride,
                 dw:dw + (Wo - 1) * stride + 1:stride, :]
            for dh in range(3) for dw in range(3)]
    patches = jnp.concatenate(taps, axis=-1).astype(jnp.bfloat16)  # (N,Ho,Wo,9*Cinp)
    xs = xp[:, ::stride, ::stride, :]                              # (N,Ho,Wo,Cinp) f32

    # Weights: pad channels, reshape to im2col layout, cast bf16 for the MXU.
    def pad_hwio(w, cip, cop):
        _, _, ci, co = w.shape
        return jnp.pad(w, ((0, 0), (0, 0), (0, cip - ci), (0, cop - co)))

    w1 = pad_hwio(p["w1"], Cinp, Cp).reshape(9 * Cinp, Cp).astype(jnp.bfloat16)
    w2 = pad_hwio(p["w2"], Cp, Cp).reshape(9 * Cp, Cp).astype(jnp.bfloat16)

    def pad_vec(v, c):
        return jnp.pad(v.astype(jnp.float32), (0, c - v.shape[0]))

    if has_downsample:
        wd = pad_hwio(p["wd"], Cinp, Cp)[0, 0].astype(jnp.bfloat16)
        sd, bd = pad_vec(p["sd"], Cp), pad_vec(p["bd"], Cp)
    else:
        wd = jnp.zeros((Cinp, Cp), jnp.bfloat16)
        sd = jnp.zeros((Cp,), jnp.float32)
        bd = jnp.zeros((Cp,), jnp.float32)
    bn = jnp.stack([pad_vec(p["s1"], Cp), pad_vec(p["b1"], Cp),
                    pad_vec(p["s2"], Cp), pad_vec(p["b2"], Cp), sd, bd])   # (6, Cp)

    kern = functools.partial(_simam_block_kernel,
                             has_downsample=has_downsample, lambda_p=lambda_p)

    out = pl.pallas_call(
        kern,
        out_shape=jax.ShapeDtypeStruct((N, Ho, Wo, Cp), jnp.float32),
        grid_spec=pltpu.PrefetchScalarGridSpec(
            num_scalar_prefetch=0,
            grid=(N,),
            in_specs=[
                pl.BlockSpec((1, Ho, Wo, 9 * Cinp), lambda b: (b, 0, 0, 0)),
                pl.BlockSpec((1, Ho, Wo, Cinp), lambda b: (b, 0, 0, 0)),
                pl.BlockSpec((9 * Cinp, Cp), lambda b: (0, 0)),
                pl.BlockSpec((9 * Cp, Cp), lambda b: (0, 0)),
                pl.BlockSpec((Cinp, Cp), lambda b: (0, 0)),
                pl.BlockSpec((6, Cp), lambda b: (0, 0)),
            ],
            out_specs=pl.BlockSpec((1, Ho, Wo, Cp), lambda b: (b, 0, 0, 0)),
            scratch_shapes=[pltpu.VMEM((Ho + 2, Wo + 16, Cp), jnp.bfloat16)],
        ),
        compiler_params=pltpu.CompilerParams(
            dimension_semantics=("parallel",),
            vmem_limit_bytes=32 * 1024 * 1024,
        ),
    )(patches, xs, w1, w2, wd, bn)

    out = out[..., :Cout]                      # drop lane padding
    return jnp.transpose(out, (0, 3, 1, 2))    # NHWC -> NCHW


def init_params(key, in_planes, planes, *, stride=1, dtype=jnp.float32):
    """Deterministic synthetic parameters (PyTorch OIHW conv shapes, eval-mode BN folded)."""
    ks = jax.random.split(key, 6)

    def conv_w(k, co, ci, kh, kw):
        fan_in = ci * kh * kw
        w_oihw = jax.random.normal(k, (co, ci, kh, kw), dtype) / math.sqrt(fan_in)
        return jnp.transpose(w_oihw, (2, 3, 1, 0))     # OIHW -> HWIO

    def bn(k, c, eps=1e-5):
        k1, k2, k3, k4 = jax.random.split(k, 4)
        gamma = 1.0 + 0.1 * jax.random.normal(k1, (c,), dtype)
        beta = 0.1 * jax.random.normal(k2, (c,), dtype)
        mean = 0.1 * jax.random.normal(k3, (c,), dtype)
        var = jax.nn.softplus(jax.random.normal(k4, (c,), dtype)) + 0.5
        scale = gamma / jnp.sqrt(var + eps)
        shift = beta - mean * scale
        return scale, shift

    p = {}
    p["w1"] = conv_w(ks[0], planes, in_planes, 3, 3)
    p["w2"] = conv_w(ks[1], planes, planes, 3, 3)
    p["s1"], p["b1"] = bn(ks[3], planes)
    p["s2"], p["b2"] = bn(ks[4], planes)
    if stride != 1 or in_planes != planes:
        p["wd"] = conv_w(ks[2], planes, in_planes, 1, 1)
        p["sd"], p["bd"] = bn(ks[5], planes)
    return p


def ref_simam_block(x_nchw, p, *, stride=1, lambda_p=1e-4):
    """Pure-JAX/XLA reference (bf16 conv inputs, f32 accumulation — matches the kernel)."""
    dn = ("NHWC", "HWIO", "NHWC")
    x = jnp.transpose(x_nchw, (0, 2, 3, 1)).astype(jnp.float32)
    Cin = x.shape[-1]
    Cout = p["w1"].shape[-1]
    xb = x.astype(jnp.bfloat16)

    out = lax.conv_general_dilated(xb, p["w1"].astype(jnp.bfloat16), (stride, stride),
                                   ((1, 1), (1, 1)), dimension_numbers=dn,
                                   preferred_element_type=jnp.float32)
    out = jnp.maximum(out * p["s1"] + p["b1"], 0.0)
    out = lax.conv_general_dilated(out.astype(jnp.bfloat16), p["w2"].astype(jnp.bfloat16),
                                   (1, 1), ((1, 1), (1, 1)), dimension_numbers=dn,
                                   preferred_element_type=jnp.float32)
    out = out * p["s2"] + p["b2"]

    # SimAM
    n = out.shape[1] * out.shape[2] - 1
    d = (out - out.mean(axis=(1, 2), keepdims=True)) ** 2
    v = d.sum(axis=(1, 2), keepdims=True) / n
    e_inv = d / (4.0 * (v + lambda_p)) + 0.5
    out = out * (1.0 / (1.0 + jnp.exp(-e_inv)))

    if stride != 1 or Cin != Cout:
        ds = lax.conv_general_dilated(xb, p["wd"].astype(jnp.bfloat16), (stride, stride),
                                      ((0, 0), (0, 0)), dimension_numbers=dn,
                                      preferred_element_type=jnp.float32)
        ds = ds * p["sd"] + p["bd"]
    else:
        ds = x
    out = jnp.maximum(out + ds, 0.0)
    return jnp.transpose(out, (0, 3, 1, 2))


if __name__ == "__main__":
    key = jax.random.PRNGKey(0)
    k1, k2, k3, k4 = jax.random.split(key, 4)

    # Case A: projection shortcut (Cin != Cout) and stride 2 (exercises the strided path).
    N, Cin, H, W, planes, stride = 2, 4, 16, 16, 8, 2
    x_a = jax.random.normal(k1, (N, Cin, H, W), jnp.float32)
    p_a = init_params(k2, Cin, planes, stride=stride)
    out_a = jax.block_until_ready(simam_basic_block(x_a, p_a, stride=stride))
    ref_a = ref_simam_block(x_a, p_a, stride=stride)
    assert out_a.shape == (N, planes, H // stride, W // stride), out_a.shape
    err_a = float(jnp.max(jnp.abs(out_a - ref_a)))
    assert err_a < 5e-3, f"case A max abs err too large: {err_a}"

    # Case B: identity shortcut (Cin == Cout, stride 1).
    N, Cin, H, W, planes, stride = 2, 8, 16, 16, 8, 1
    x_b = jax.random.normal(k3, (N, Cin, H, W), jnp.float32)
    p_b = init_params(k4, Cin, planes, stride=stride)
    out_b = jax.block_until_ready(simam_basic_block(x_b, p_b, stride=stride))
    ref_b = ref_simam_block(x_b, p_b, stride=stride)
    assert out_b.shape == (N, planes, H, W), out_b.shape
    err_b = float(jnp.max(jnp.abs(out_b - ref_b)))
    assert err_b < 5e-3, f"case B max abs err too large: {err_b}"

    print("KERNEL_OK")
</pallas_src>

<mosaic_0001>
module attributes {stable_mosaic.version = 11 : i64} {
  func.func @_simam_block_kernel(%arg0: i32, %arg1: memref<1x8x8x1152xbf16, #tpu.memory_space<vmem>>, %arg2: memref<1x8x8x128xf32, #tpu.memory_space<vmem>>, %arg3: memref<1152x128xbf16, #tpu.memory_space<vmem>>, %arg4: memref<1152x128xbf16, #tpu.memory_space<vmem>>, %arg5: memref<128x128xbf16, #tpu.memory_space<vmem>>, %arg6: memref<6x128xf32, #tpu.memory_space<vmem>>, %arg7: memref<1x8x8x128xf32, #tpu.memory_space<vmem>>, %arg8: memref<10x24x128xbf16, #tpu.memory_space<vmem>>) attributes {dimension_semantics = [#tpu.dimension_semantics<parallel>], iteration_bounds = array<i64: 2>, scalar_prefetch = 0 : i64, scratch_operands = 1 : i64, tpu.core_type = #tpu.core_type<tc>, window_params = [{transform_indices = @transform_0, window_bounds = array<i64: 1, 8, 8, 1152>}, {transform_indices = @transform_1, window_bounds = array<i64: 1, 8, 8, 128>}, {pipeline_mode = #tpu.pipeline_mode<synchronous>, transform_indices = @transform_2, window_bounds = array<i64: 1152, 128>}, {pipeline_mode = #tpu.pipeline_mode<synchronous>, transform_indices = @transform_3, window_bounds = array<i64: 1152, 128>}, {pipeline_mode = #tpu.pipeline_mode<synchronous>, transform_indices = @transform_4, window_bounds = array<i64: 128, 128>}, {pipeline_mode = #tpu.pipeline_mode<synchronous>, transform_indices = @transform_5, window_bounds = array<i64: 6, 128>}, {transform_indices = @transform_6, window_bounds = array<i64: 1, 8, 8, 128>}]} {
    %c0 = arith.constant 0 : index
    %c0_0 = arith.constant 0 : index
    %0 = vector.load %arg6[%c0, %c0_0] : memref<6x128xf32, #tpu.memory_space<vmem>>, vector<1x128xf32>
    %c1 = arith.constant 1 : index
    %c0_1 = arith.constant 0 : index
    %1 = vector.load %arg6[%c1, %c0_1] : memref<6x128xf32, #tpu.memory_space<vmem>>, vector<1x128xf32>
    %c2 = arith.constant 2 : index
    %c0_2 = arith.constant 0 : index
    %2 = vector.load %arg6[%c2, %c0_2] : memref<6x128xf32, #tpu.memory_space<vmem>>, vector<1x128xf32>
    %c3 = arith.constant 3 : index
    %c0_3 = arith.constant 0 : index
    %3 = vector.load %arg6[%c3, %c0_3] : memref<6x128xf32, #tpu.memory_space<vmem>>, vector<1x128xf32>
    %c0_4 = arith.constant 0 : index
    %c0_5 = arith.constant 0 : index
    %c0_6 = arith.constant 0 : index
    %c0_7 = arith.constant 0 : index
    %4 = vector.load %arg1[%c0_4, %c0_5, %c0_6, %c0_7] : memref<1x8x8x1152xbf16, #tpu.memory_space<vmem>>, vector<1x8x8x1152xbf16>
    %5 = vector.shape_cast %4 : vector<1x8x8x1152xbf16> to vector<8x8x1152xbf16>
    %6 = vector.shape_cast %5 : vector<8x8x1152xbf16> to vector<64x1152xbf16>
    %c0_8 = arith.constant 0 : index
    %c0_9 = arith.constant 0 : index
    %7 = vector.load %arg3[%c0_8, %c0_9] : memref<1152x128xbf16, #tpu.memory_space<vmem>>, vector<1152x128xbf16>
    %cst = arith.constant dense<0.000000e+00> : vector<64x128xf32>
    %8 = tpu.matmul %6, %7, %cst {dimension_numbers = #tpu.dot_dimension_numbers<[1], [0], [0], [1], [0, 0, 1, 1], [], []>} : vector<64x1152xbf16>, vector<1152x128xbf16>, vector<64x128xf32> -> vector<64x128xf32>
    %9 = vector.broadcast %0 : vector<1x128xf32> to vector<64x128xf32>
    %10 = arith.mulf %8, %9 : vector<64x128xf32>
    %11 = vector.broadcast %1 : vector<1x128xf32> to vector<64x128xf32>
    %12 = arith.addf %10, %11 : vector<64x128xf32>
    %cst_10 = arith.constant 0.000000e+00 : f32
    %13 = vector.broadcast %cst_10 : f32 to vector<64x128xf32>
    %14 = arith.maximumf %12, %13 : vector<64x128xf32>
    %cst_11 = arith.constant 0.000000e+00 : bf16
    %15 = vector.broadcast %cst_11 : bf16 to vector<1x24x128xbf16>
    %c0_12 = arith.constant 0 : index
    %c0_13 = arith.constant 0 : index
    %c0_14 = arith.constant 0 : index
    %16 = vector.load %arg8[%c0_12, %c0_13, %c0_14] : memref<10x24x128xbf16, #tpu.memory_space<vmem>>, vector<1x24x128xbf16>
    tpu.vector_store %arg8[%c0_12, %c0_13, %c0_14], %15 {strides = array<i32>} : memref<10x24x128xbf16, #tpu.memory_space<vmem>>, vector<1x24x128xbf16>,
    %c9 = arith.constant 9 : index
    %c0_15 = arith.constant 0 : index
    %c0_16 = arith.constant 0 : index
    %17 = vector.load %arg8[%c9, %c0_15, %c0_16] : memref<10x24x128xbf16, #tpu.memory_space<vmem>>, vector<1x24x128xbf16>
    tpu.vector_store %arg8[%c9, %c0_15, %c0_16], %15 {strides = array<i32>} : memref<10x24x128xbf16, #tpu.memory_space<vmem>>, vector<1x24x128xbf16>,
    %cst_17 = arith.constant 0.000000e+00 : bf16
    %18 = vector.broadcast %cst_17 : bf16 to vector<8x8x128xbf16>
    %c1_18 = arith.constant 1 : index
    %c0_19 = arith.constant 0 : index
    %c0_20 = arith.constant 0 : index
    %19 = vector.load %arg8[%c1_18, %c0_19, %c0_20] : memref<10x24x128xbf16, #tpu.memory_space<vmem>>, vector<8x8x128xbf16>
    tpu.vector_store %arg8[%c1_18, %c0_19, %c0_20], %18 {strides = array<i32>} : memref<10x24x128xbf16, #tpu.memory_space<vmem>>, vector<8x8x128xbf16>,
    %c1_21 = arith.constant 1 : index
    %c16 = arith.constant 16 : index
    %c0_22 = arith.constant 0 : index
    %20 = vector.load %arg8[%c1_21, %c16, %c0_22] : memref<10x24x128xbf16, #tpu.memory_space<vmem>>, vector<8x8x128xbf16>
    tpu.vector_store %arg8[%c1_21, %c16, %c0_22], %18 {strides = array<i32>} : memref<10x24x128xbf16, #tpu.memory_space<vmem>>, vector<8x8x128xbf16>,
    %21 = vector.shape_cast %14 : vector<64x128xf32> to vector<8x8x128xf32>
    %22 = arith.truncf %21 : vector<8x8x128xf32> to vector<8x8x128xbf16>
    %c1_23 = arith.constant 1 : index
    %c8 = arith.constant 8 : index
    %c0_24 = arith.constant 0 : index
    %23 = vector.load %arg8[%c1_23, %c8, %c0_24] : memref<10x24x128xbf16, #tpu.memory_space<vmem>>, vector<8x8x128xbf16>
    tpu.vector_store %arg8[%c1_23, %c8, %c0_24], %22 {strides = array<i32>} : memref<10x24x128xbf16, #tpu.memory_space<vmem>>, vector<8x8x128xbf16>,
    %c0_25 = arith.constant 0 : index
    %c7 = arith.constant 7 : index
    %c0_26 = arith.constant 0 : index
    %24 = vector.load %arg8[%c0_25, %c7, %c0_26] : memref<10x24x128xbf16, #tpu.memory_space<vmem>>, vector<8x8x128xbf16>
    %c0_27 = arith.constant 0 : index
    %c8_28 = arith.constant 8 : index
    %c0_29 = arith.constant 0 : index
    %25 = vector.load %arg8[%c0_27, %c8_28, %c0_29] : memref<10x24x128xbf16, #tpu.memory_space<vmem>>, vector<8x8x128xbf16>
    %c0_30 = arith.constant 0 : index
    %c9_31 = arith.constant 9 : index
    %c0_32 = arith.constant 0 : index
    %26 = vector.load %arg8[%c0_30, %c9_31, %c0_32] : memref<10x24x128xbf16, #tpu.memory_space<vmem>>, vector<8x8x128xbf16>
    %c1_33 = arith.constant 1 : index
    %c7_34 = arith.constant 7 : index
    %c0_35 = arith.constant 0 : index
    %27 = vector.load %arg8[%c1_33, %c7_34, %c0_35] : memref<10x24x128xbf16, #tpu.memory_space<vmem>>, vector<8x8x128xbf16>
    %c1_36 = arith.constant 1 : index
    %c8_37 = arith.constant 8 : index
    %c0_38 = arith.constant 0 : index
    %28 = vector.load %arg8[%c1_36, %c8_37, %c0_38] : memref<10x24x128xbf16, #tpu.memory_space<vmem>>, vector<8x8x128xbf16>
    %c1_39 = arith.constant 1 : index
    %c9_40 = arith.constant 9 : index
    %c0_41 = arith.constant 0 : index
    %29 = vector.load %arg8[%c1_39, %c9_40, %c0_41] : memref<10x24x128xbf16, #tpu.memory_space<vmem>>, vector<8x8x128xbf16>
    %c2_42 = arith.constant 2 : index
    %c7_43 = arith.constant 7 : index
    %c0_44 = arith.constant 0 : index
    %30 = vector.load %arg8[%c2_42, %c7_43, %c0_44] : memref<10x24x128xbf16, #tpu.memory_space<vmem>>, vector<8x8x128xbf16>
    %c2_45 = arith.constant 2 : index
    %c8_46 = arith.constant 8 : index
    %c0_47 = arith.constant 0 : index
    %31 = vector.load %arg8[%c2_45, %c8_46, %c0_47] : memref<10x24x128xbf16, #tpu.memory_space<vmem>>, vector<8x8x128xbf16>
    %c2_48 = arith.constant 2 : index
    %c9_49 = arith.constant 9 : index
    %c0_50 = arith.constant 0 : index
    %32 = vector.load %arg8[%c2_48, %c9_49, %c0_50] : memref<10x24x128xbf16, #tpu.memory_space<vmem>>, vector<8x8x128xbf16>
    %33 = tpu.concatenate %24, %25, %26, %27, %28, %29, %30, %31, %32 in 2 : vector<8x8x128xbf16>, vector<8x8x128xbf16>, vector<8x8x128xbf16>, vector<8x8x128xbf16>, vector<8x8x128xbf16>, vector<8x8x128xbf16>, vector<8x8x128xbf16>, vector<8x8x128xbf16>, vector<8x8x128xbf16> -> vector<8x8x1152xbf16>
    %34 = vector.shape_cast %33 : vector<8x8x1152xbf16> to vector<64x1152xbf16>
    %c0_51 = arith.constant 0 : index
    %c0_52 = arith.constant 0 : index
    %35 = vector.load %arg4[%c0_51, %c0_52] : memref<1152x128xbf16, #tpu.memory_space<vmem>>, vector<1152x128xbf16>
    %cst_53 = arith.constant dense<0.000000e+00> : vector<64x128xf32>
    %36 = tpu.matmul %34, %35, %cst_53 {dimension_numbers = #tpu.dot_dimension_numbers<[1], [0], [0], [1], [0, 0, 1, 1], [], []>} : vector<64x1152xbf16>, vector<1152x128xbf16>, vector<64x128xf32> -> vector<64x128xf32>
    %37 = vector.broadcast %2 : vector<1x128xf32> to vector<64x128xf32>
    %38 = arith.mulf %36, %37 : vector<64x128xf32>
    %39 = vector.broadcast %3 : vector<1x128xf32> to vector<64x128xf32>
    %40 = arith.addf %38, %39 : vector<64x128xf32>
    %cst_54 = arith.constant dense<0.000000e+00> : vector<128xf32>
    %41 = vector.multi_reduction <add>, %40, %cst_54 [0] : vector<64x128xf32> to vector<128xf32>
    %42 = vector.shape_cast %41 : vector<128xf32> to vector<1x128xf32>
    %cst_55 = arith.constant 6.400000e+01 : f32
    %43 = vector.broadcast %cst_55 : f32 to vector<1x128xf32>
    %44 = arith.divf %42, %43 : vector<1x128xf32>
    %45 = vector.broadcast %44 : vector<1x128xf32> to vector<64x128xf32>
    %46 = arith.subf %40, %45 : vector<64x128xf32>
    %47 = arith.mulf %46, %46 : vector<64x128xf32>
    %cst_56 = arith.constant dense<0.000000e+00> : vector<128xf32>
    %48 = vector.multi_reduction <add>, %47, %cst_56 [0] : vector<64x128xf32> to vector<128xf32>
    %49 = vector.shape_cast %48 : vector<128xf32> to vector<1x128xf32>
    %cst_57 = arith.constant 0.0158730168 : f32
    %50 = vector.broadcast %cst_57 : f32 to vector<1x128xf32>
    %51 = arith.mulf %49, %50 : vector<1x128xf32>
    %cst_58 = arith.constant 9.99999974E-5 : f32
    %52 = vector.broadcast %cst_58 : f32 to vector<1x128xf32>
    %53 = arith.addf %51, %52 : vector<1x128xf32>
    %cst_59 = arith.constant 4.000000e+00 : f32
    %54 = vector.broadcast %cst_59 : f32 to vector<1x128xf32>
    %55 = arith.mulf %54, %53 : vector<1x128xf32>
    %56 = vector.broadcast %55 : vector<1x128xf32> to vector<64x128xf32>
    %57 = arith.divf %47, %56 : vector<64x128xf32>
    %cst_60 = arith.constant 5.000000e-01 : f32
    %58 = vector.broadcast %cst_60 : f32 to vector<64x128xf32>
    %59 = arith.addf %57, %58 : vector<64x128xf32>
    %cst_61 = arith.constant 0.000000e+00 : f32
    %60 = vector.broadcast %cst_61 : f32 to vector<64x128xf32>
    %61 = arith.subf %60, %59 : vector<64x128xf32>
    %62 = math.exp %61 : vector<64x128xf32>
    %cst_62 = arith.constant 1.000000e+00 : f32
    %63 = vector.broadcast %cst_62 : f32 to vector<64x128xf32>
    %64 = arith.addf %63, %62 : vector<64x128xf32>
    %cst_63 = arith.constant 1.000000e+00 : f32
    %65 = vector.broadcast %cst_63 : f32 to vector<64x128xf32>
    %66 = arith.divf %65, %64 : vector<64x128xf32>
    %67 = arith.mulf %40, %66 : vector<64x128xf32>
    %c0_64 = arith.constant 0 : index
    %c0_65 = arith.constant 0 : index
    %c0_66 = arith.constant 0 : index
    %c0_67 = arith.constant 0 : index
    %68 = vector.load %arg2[%c0_64, %c0_65, %c0_66, %c0_67] : memref<1x8x8x128xf32, #tpu.memory_space<vmem>>, vector<1x8x8x128xf32>
    %69 = vector.shape_cast %68 : vector<1x8x8x128xf32> to vector<8x8x128xf32>
    %70 = vector.shape_cast %69 : vector<8x8x128xf32> to vector<64x128xf32>
    %c4 = arith.constant 4 : index
    %c0_68 = arith.constant 0 : index
    %71 = vector.load %arg6[%c4, %c0_68] : memref<6x128xf32, #tpu.memory_space<vmem>>, vector<1x128xf32>
    %c5 = arith.constant 5 : index
    %c0_69 = arith.constant 0 : index
    %72 = vector.load %arg6[%c5, %c0_69] : memref<6x128xf32, #tpu.memory_space<vmem>>, vector<1x128xf32>
    %73 = arith.truncf %70 : vector<64x128xf32> to vector<64x128xbf16>
    %c0_70 = arith.constant 0 : index
    %c0_71 = arith.constant 0 : index
    %74 = vector.load %arg5[%c0_70, %c0_71] : memref<128x128xbf16, #tpu.memory_space<vmem>>, vector<128x128xbf16>
    %cst_72 = arith.constant dense<0.000000e+00> : vector<64x128xf32>
    %75 = tpu.matmul %73, %74, %cst_72 {dimension_numbers = #tpu.dot_dimension_numbers<[1], [0], [0], [1], [0, 0, 1, 1], [], []>} : vector<64x128xbf16>, vector<128x128xbf16>, vector<64x128xf32> -> vector<64x128xf32>
    %76 = vector.broadcast %71 : vector<1x128xf32> to vector<64x128xf32>
    %77 = arith.mulf %75, %76 : vector<64x128xf32>
    %78 = vector.broadcast %72 : vector<1x128xf32> to vector<64x128xf32>
    %79 = arith.addf %77, %78 : vector<64x128xf32>
    %80 = arith.addf %67, %79 : vector<64x128xf32>
    %cst_73 = arith.constant 0.000000e+00 : f32
    %81 = vector.broadcast %cst_73 : f32 to vector<64x128xf32>
    %82 = arith.maximumf %80, %81 : vector<64x128xf32>
    %83 = vector.shape_cast %82 : vector<64x128xf32> to vector<8x8x128xf32>
    %c0_74 = arith.constant 0 : index
    %c0_75 = arith.constant 0 : index
    %c0_76 = arith.constant 0 : index
    %c0_77 = arith.constant 0 : index
    %84 = vector.load %arg7[%c0_74, %c0_75, %c0_76, %c0_77] : memref<1x8x8x128xf32, #tpu.memory_space<vmem>>, vector<1x8x8x128xf32>
    %85 = vector.shape_cast %84 : vector<1x8x8x128xf32> to vector<8x8x128xf32>
    %86 = vector.shape_cast %83 : vector<8x8x128xf32> to vector<1x8x8x128xf32>
    tpu.vector_store %arg7[%c0_74, %c0_75, %c0_76, %c0_77], %86 {strides = array<i32>} : memref<1x8x8x128xf32, #tpu.memory_space<vmem>>, vector<1x8x8x128xf32>,
    return
  }
  func.func @transform_0(%arg0: i32) -> (i32, i32, i32, i32) {
    %c0_i32 = arith.constant 0 : i32
    %c0_i32_0 = arith.constant 0 : i32
    %c0_i32_1 = arith.constant 0 : i32
    %c0_i32_2 = arith.constant 0 : i32
    return %arg0, %c0_i32, %c0_i32_0, %c0_i32_1 : i32, i32, i32, i32
  }
  func.func @transform_1(%arg0: i32) -> (i32, i32, i32, i32) {
    %c0_i32 = arith.constant 0 : i32
    %c0_i32_0 = arith.constant 0 : i32
    %c0_i32_1 = arith.constant 0 : i32
    %c0_i32_2 = arith.constant 0 : i32
    return %arg0, %c0_i32, %c0_i32_0, %c0_i32_1 : i32, i32, i32, i32
  }
  func.func @transform_2(%arg0: i32) -> (i32, i32) {
    %c0_i32 = arith.constant 0 : i32
    %c0_i32_0 = arith.constant 0 : i32
    %c0_i32_1 = arith.constant 0 : i32
    return %c0_i32, %c0_i32_0 : i32, i32
  }
  func.func @transform_3(%arg0: i32) -> (i32, i32) {
    %c0_i32 = arith.constant 0 : i32
    %c0_i32_0 = arith.constant 0 : i32
    %c0_i32_1 = arith.constant 0 : i32
    return %c0_i32, %c0_i32_0 : i32, i32
  }
  func.func @transform_4(%arg0: i32) -> (i32, i32) {
    %c0_i32 = arith.constant 0 : i32
    %c0_i32_0 = arith.constant 0 : i32
    %c0_i32_1 = arith.constant 0 : i32
    return %c0_i32, %c0_i32_0 : i32, i32
  }
  func.func @transform_5(%arg0: i32) -> (i32, i32) {
    %c0_i32 = arith.constant 0 : i32
    %c0_i32_0 = arith.constant 0 : i32
    %c0_i32_1 = arith.constant 0 : i32
    return %c0_i32, %c0_i32_0 : i32, i32
  }
  func.func @transform_6(%arg0: i32) -> (i32, i32, i32, i32) {
    %c0_i32 = arith.constant 0 : i32
    %c0_i32_0 = arith.constant 0 : i32
    %c0_i32_1 = arith.constant 0 : i32
    %c0_i32_2 = arith.constant 0 : i32
    return %arg0, %c0_i32, %c0_i32_0, %c0_i32_1 : i32, i32, i32, i32
  }
}

</mosaic_0001>

<llo_original>
// kernel: tpu_custom_call.1
$region0: #{tpu_custom_call.1}
  #allocation0 [shape = 'u32[]', space=smem, size = 0x4, offset = 0x4, fixed_abs, tag = 'smem constant byte address 0x4 - core index']
  #allocation1 [shape = 'u32[144,128]{1,0:T(1,128)}', space=vmem, size = 0x12000, scoped, tag = 'internal scratch']
  #allocation2 [shape = 'bf16[10,24,128]{2,1,0:T(8,128)(2,1)}', space=vmem, size = 0xf000, scoped, tag = 'scratch operand']
  %s0 = inlined_call_operand.hbm [shape: bf16[2,8,8,1152], index: 0, kind: input, shape index: {}]
  %s1 = inlined_call_operand.hbm [shape: f32[2,8,8,128], index: 1, kind: input, shape index: {}]
  %s2 = inlined_call_operand.hbm [shape: bf16[1152,128], index: 2, kind: input, shape index: {}]
  %s3 = inlined_call_operand.hbm [shape: bf16[1152,128], index: 3, kind: input, shape index: {}]
  %s4 = inlined_call_operand.hbm [shape: bf16[128,128], index: 4, kind: input, shape index: {}]
  %s5 = inlined_call_operand.vmem [shape: f32[6,128], index: 5, kind: input, shape index: {}]
  %s6 = inlined_call_operand.hbm [shape: f32[2,8,8,128], index: 6, kind: output, shape index: {}]
  %s7 = sld [smem:[#allocation0]]
  $region77: #{tpu_custom_call.1} parent=0
    _
  %s9 = ssub.s32 1, %s7
  %s10 = scalar_select 0, %s9, %s7
  $region1: #{tpu_custom_call.1} parent=0
    #allocation3 [shape = 'u8[294912]{0}', space=vmem, size = 0x48000, scoped, tag = 'input window, operand 0']
    #allocation4 [shape = 's32[2]{0}', space=sflag, size = 0x8, scoped, tag = 'scoped memory for tpu_custom_call.1']
    #allocation5 [shape = 's32[2]{0}', space=sflag, size = 0x8, scoped, tag = 'scoped memory for tpu_custom_call.1']
    #allocation6 [shape = 'u8[65536]{0}', space=vmem, size = 0x10000, scoped, tag = 'input window, operand 1']
    #allocation7 [shape = 's32[2]{0}', space=sflag, size = 0x8, scoped, tag = 'scoped memory for tpu_custom_call.1']
    #allocation8 [shape = 'u8[294912]{0}', space=vmem, size = 0x48000, scoped, tag = 'input window, operand 2, single buffered']
    #allocation9 [shape = 'u8[294912]{0}', space=vmem, size = 0x48000, scoped, tag = 'input window, operand 3, single buffered']
    #allocation10 [shape = 's32[1]{0}', space=sflag, size = 0x4, scoped, tag = 'scoped memory for tpu_custom_call.1']
    #allocation11 [shape = 'u8[32768]{0}', space=vmem, size = 0x8000, scoped, tag = 'input window, operand 4, single buffered']
    #allocation12 [shape = 'u8[65536]{0}', space=vmem, size = 0x10000, scoped, tag = 'output window, operand 0']
    %11 = vsyncpa [#allocation4], 0
    %s12 = scalar_lea.sflag [#allocation4], 1
    %13 = vsyncpa %s12, 0
    %14 = vsyncpa [#allocation7], 0
    %s15 = scalar_lea.sflag [#allocation7], 1
    %16 = vsyncpa %s15, 0
    %17 = vsyncpa [#allocation10], 0
    %18 = vsyncpa [#allocation5], 0
    %s19 = scalar_lea.sflag [#allocation5], 1
    %20 = vsyncpa %s19, 0
    loop: start=0, step=1, limit=4
    $region2: #{tpu_custom_call.1} parent=1 // loop_pre_header
      _
    $region3: #{tpu_custom_call.1} parent=1 // loop_header
      %s22 = sphi 0, %s26
      %p23 = scmp.ge.s32.totalorder %s22, 4
      %s32 = sphi 0, %s34
      %s35 = sphi 0, %s32
      %s36 = sphi 0, %s35
      %s52 = sphi 0, %s36
      %s58 = sphi 0, %s60
      %s61 = sphi 0, %s58
      %s62 = sphi 0, %s61
      %s78 = sphi 0, %s62
      %s82 = sphi 0, %s82
      %s84 = sphi 0, %s82
      %s85 = sphi 0, %s84
      %s99 = sphi 0, %s85
      %s103 = sphi 0, %s103
      %s105 = sphi 0, %s103
      %s106 = sphi 0, %s105
      %s120 = sphi 0, %s106
      %s124 = sphi 0, %s124
      %s126 = sphi 0, %s124
      %s127 = sphi 0, %s126
      %s141 = sphi 0, %s127
      %s145 = sphi 0, %s145
      %s147 = sphi 0, %s145
      %s148 = sphi 0, %s147
      %s162 = sphi 0, %s148
      %s168 = sphi 0, %s170
      %s171 = sphi 0, %s168
      %s172 = sphi 0, %s171
      %s188 = sphi 0, %s172
    $region4: #{tpu_custom_call.1} parent=1 // loop_header_branch
      %25 = sbr.rel (%p23) target = $region8
    $region5: #{tpu_custom_call.1} parent=1 // loop_body
      %s27 = ssub.s32 %s22, 1
      %s28 = ssub.s32 %s22, 2
      %s29 = sadd.s32 %s22, 1
      %s30 = ssub.s32 %s22, %s29
      %p31 = scmp.eq.s32.totalorder %s30, 0
      %s33 = sadd.s32 %s32, 1
      %s34 = scalar_select %p31, %s32, %s33
      %p37 = pneg %p31
      %p38 = scmp.eq.s32.totalorder %s22, 1
      %p39 = por %p37, %p38
      %p40 = scmp.ne.s32.totalorder %s32, %s35
      %p41 = scmp.eq.s32.totalorder %s22, 0
      %p42 = por %p40, %p41
      %p43 = scmp.ne.s32.totalorder %s32, %s35
      %p44 = scmp.eq.s32.totalorder %s27, 1
      %p45 = por %p43, %p44
      %p46 = scmp.ne.s32.totalorder %s35, %s36
      %p47 = scmp.eq.s32.totalorder %s27, 0
      %p48 = por %p46, %p47
      %p49 = scmp.ne.s32.totalorder %s35, %s36
      %p50 = scmp.eq.s32.totalorder %s28, 1
      %p51 = por %p49, %p50
      %p53 = scmp.ne.s32.totalorder %s36, %s52
      %p54 = scmp.eq.s32.totalorder %s28, 0
      %p55 = por %p53, %p54
      %s56 = ssub.s32 %s22, %s29
      %p57 = scmp.eq.s32.totalorder %s56, 0
      %s59 = sadd.s32 %s58, 1
      %s60 = scalar_select %p57, %s58, %s59
      %p63 = pneg %p57
      %p64 = scmp.eq.s32.totalorder %s22, 1
      %p65 = por %p63, %p64
      %p66 = scmp.ne.s32.totalorder %s58, %s61
      %p67 = scmp.eq.s32.totalorder %s22, 0
      %p68 = por %p66, %p67
      %p69 = scmp.ne.s32.totalorder %s58, %s61
      %p70 = scmp.eq.s32.totalorder %s27, 1
      %p71 = por %p69, %p70
      %p72 = scmp.ne.s32.totalorder %s61, %s62
      %p73 = scmp.eq.s32.totalorder %s27, 0
      %p74 = por %p72, %p73
      %p75 = scmp.ne.s32.totalorder %s61, %s62
      %p76 = scmp.eq.s32.totalorder %s28, 1
      %p77 = por %p75, %p76
      %p79 = scmp.ne.s32.totalorder %s62, %s78
      %p80 = scmp.eq.s32.totalorder %s28, 0
      %p81 = por %p79, %p80
      %s83 = sadd.s32 %s82, 1
      %p86 = scmp.eq.s32.totalorder %s22, 1
      %p87 = scmp.ne.s32.totalorder %s82, %s84
      %p88 = scmp.eq.s32.totalorder %s22, 0
      %p89 = por %p87, %p88
      %p90 = scmp.ne.s32.totalorder %s82, %s84
      %p91 = scmp.eq.s32.totalorder %s27, 1
      %p92 = por %p90, %p91
      %p93 = scmp.ne.s32.totalorder %s84, %s85
      %p94 = scmp.eq.s32.totalorder %s27, 0
      %p95 = por %p93, %p94
      %p96 = scmp.ne.s32.totalorder %s84, %s85
      %p97 = scmp.eq.s32.totalorder %s28, 1
      %p98 = por %p96, %p97
      %p100 = scmp.ne.s32.totalorder %s85, %s99
      %p101 = scmp.eq.s32.totalorder %s28, 0
      %p102 = por %p100, %p101
      %s104 = sadd.s32 %s103, 1
      %p107 = scmp.eq.s32.totalorder %s22, 1
      %p108 = scmp.ne.s32.totalorder %s103, %s105
      %p109 = scmp.eq.s32.totalorder %s22, 0
      %p110 = por %p108, %p109
      %p111 = scmp.ne.s32.totalorder %s103, %s105
      %p112 = scmp.eq.s32.totalorder %s27, 1
      %p113 = por %p111, %p112
      %p114 = scmp.ne.s32.totalorder %s105, %s106
      %p115 = scmp.eq.s32.totalorder %s27, 0
      %p116 = por %p114, %p115
      %p117 = scmp.ne.s32.totalorder %s105, %s106
      %p118 = scmp.eq.s32.totalorder %s28, 1
      %p119 = por %p117, %p118
      %p121 = scmp.ne.s32.totalorder %s106, %s120
      %p122 = scmp.eq.s32.totalorder %s28, 0
      %p123 = por %p121, %p122
      %s125 = sadd.s32 %s124, 1
      %p128 = scmp.eq.s32.totalorder %s22, 1
      %p129 = scmp.ne.s32.totalorder %s124, %s126
      %p130 = scmp.eq.s32.totalorder %s22, 0
      %p131 = por %p129, %p130
      %p132 = scmp.ne.s32.totalorder %s124, %s126
      %p133 = scmp.eq.s32.totalorder %s27, 1
      %p134 = por %p132, %p133
      %p135 = scmp.ne.s32.totalorder %s126, %s127
      %p136 = scmp.eq.s32.totalorder %s27, 0
      %p137 = por %p135, %p136
      %p138 = scmp.ne.s32.totalorder %s126, %s127
      %p139 = scmp.eq.s32.totalorder %s28, 1
      %p140 = por %p138, %p139
      %p142 = scmp.ne.s32.totalorder %s127, %s141
      %p143 = scmp.eq.s32.totalorder %s28, 0
      %p144 = por %p142, %p143
      %s146 = sadd.s32 %s145, 1
      %p149 = scmp.eq.s32.totalorder %s22, 1
      %p150 = scmp.ne.s32.totalorder %s145, %s147
      %p151 = scmp.eq.s32.totalorder %s22, 0
      %p152 = por %p150, %p151
      %p153 = scmp.ne.s32.totalorder %s145, %s147
      %p154 = scmp.eq.s32.totalorder %s27, 1
      %p155 = por %p153, %p154
      %p156 = scmp.ne.s32.totalorder %s147, %s148
      %p157 = scmp.eq.s32.totalorder %s27, 0
      %p158 = por %p156, %p157
      %p159 = scmp.ne.s32.totalorder %s147, %s148
      %p160 = scmp.eq.s32.totalorder %s28, 1
      %p161 = por %p159, %p160
      %p163 = scmp.ne.s32.totalorder %s148, %s162
      %p164 = scmp.eq.s32.totalorder %s28, 0
      %p165 = por %p163, %p164
      %s166 = ssub.s32 %s22, %s29
      %p167 = scmp.eq.s32.totalorder %s166, 0
      %s169 = sadd.s32 %s168, 1
      %s170 = scalar_select %p167, %s168, %s169
      %p173 = pneg %p167
      %p174 = scmp.eq.s32.totalorder %s22, 1
      %p175 = por %p173, %p174
      %p176 = scmp.ne.s32.totalorder %s168, %s171
      %p177 = scmp.eq.s32.totalorder %s22, 0
      %p178 = por %p176, %p177
      %p179 = scmp.ne.s32.totalorder %s168, %s171
      %p180 = scmp.eq.s32.totalorder %s27, 1
      %p181 = por %p179, %p180
      %p182 = scmp.ne.s32.totalorder %s171, %s172
      %p183 = scmp.eq.s32.totalorder %s27, 0
      %p184 = por %p182, %p183
      %p185 = scmp.ne.s32.totalorder %s171, %s172
      %p186 = scmp.eq.s32.totalorder %s28, 1
      %p187 = por %p185, %p186
      %p189 = scmp.ne.s32.totalorder %s172, %s188
      %p190 = scmp.eq.s32.totalorder %s28, 0
      %p191 = por %p189, %p190
      %p192 = scmp.le.s32.totalorder 1, %s22
      %p193 = scmp.lt.s32.totalorder %s22, 3
      %p194 = pnand %p192, %p193
      %p195 = pneg %p194
      // Predicated region
      $region9: #{tpu_custom_call.1} parent=5 // pred_check
        _
      $region10: #{tpu_custom_call.1} parent=5 // pred_check_branch
        %197 = sbr.rel (%p194) target = $region12
      $region11: #{tpu_custom_call.1} parent=5 // pred_region
        %s198 = ssub.s32 %s22, 1
        // Predicated region
        $region13: #{tpu_custom_call.1} parent=11 // pred_check
          %p199 = pneg %p95
        $region14: #{tpu_custom_call.1} parent=11 // pred_check_branch
          %201 = sbr.rel (%p199) target = $region16
        $region15: #{tpu_custom_call.1} parent=11 // pred_region
          %s203 = ssub.s32 9216, 9216
          %204 = vsyncadd [#allocation7], %s203
          %s205 = sshll.u32 [#allocation8], 4
          %s206 = int_to_ptr.vmem [resolvable:$true] %s205
          %211 = dma.hbm_to_vmem [thread:$0]  %s2, 9216, %s206, [#allocation7], 64, 64, 4
        $region16: #{tpu_custom_call.1} parent=11 // pred_fallthru
          _
        // Predicated region
        $region17: #{tpu_custom_call.1} parent=11 // pred_check
          %p212 = pneg %p116
        $region18: #{tpu_custom_call.1} parent=11 // pred_check_branch
          %214 = sbr.rel (%p212) target = $region20
        $region19: #{tpu_custom_call.1} parent=11 // pred_region
          %s216 = ssub.s32 9216, 9216
          %217 = vsyncadd [#allocation10], %s216
          %s218 = sshll.u32 [#allocation9], 4
          %s219 = int_to_ptr.vmem [resolvable:$true] %s218
          %224 = dma.hbm_to_vmem [thread:$0]  %s3, 9216, %s219, [#allocation10], 64, 64, 4
        $region20: #{tpu_custom_call.1} parent=11 // pred_fallthru
          _
        // Predicated region
        $region21: #{tpu_custom_call.1} parent=11 // pred_check
          %p225 = pneg %p137
        $region22: #{tpu_custom_call.1} parent=11 // pred_check_branch
          %227 = sbr.rel (%p225) target = $region24
        $region23: #{tpu_custom_call.1} parent=11 // pred_region
          %s229 = ssub.s32 1024, 1024
          %230 = vsyncadd [#allocation10], %s229
          %s231 = sshll.u32 [#allocation11], 4
          %s232 = int_to_ptr.vmem [resolvable:$true] %s231
          %237 = dma.hbm_to_vmem [thread:$0]  %s4, 1024, %s232, [#allocation10], 64, 64, 4
        $region24: #{tpu_custom_call.1} parent=11 // pred_fallthru
          _
        // Predicated region
        $region25: #{tpu_custom_call.1} parent=11 // pred_check
          %p238 = pneg %p158
        $region26: #{tpu_custom_call.1} parent=11 // pred_check_branch
          %240 = sbr.rel (%p238) target = $region28
        $region27: #{tpu_custom_call.1} parent=11 // pred_region
          _
        $region28: #{tpu_custom_call.1} parent=11 // pred_fallthru
          _
      $region12: #{tpu_custom_call.1} parent=5 // pred_fallthru
        _
      %p241 = scmp.lt.s32.totalorder %s22, 2
      // Predicated region
      $region29: #{tpu_custom_call.1} parent=5 // pred_check
        %p242 = pneg %p241
      $region30: #{tpu_custom_call.1} parent=5 // pred_check_branch
        %244 = sbr.rel (%p242) target = $region32
      $region31: #{tpu_custom_call.1} parent=5 // pred_region
        // Predicated region
        $region33: #{tpu_custom_call.1} parent=31 // pred_check
          %p245 = pneg %p42
        $region34: #{tpu_custom_call.1} parent=31 // pred_check_branch
          %247 = sbr.rel (%p245) target = $region36
        $region35: #{tpu_custom_call.1} parent=31 // pred_region
          %s248 = sand.u32 %s32, 1
          %s249 = scalar_lea.sflag [#allocation4], %s248
          %s250 = sand.u32 %s32, 1
          %s251 = smul.addr %s250, 288
          %s252 = scalar_lea.vmem [#allocation3], %s251
          %s254 = ssub.s32 4608, 4608
          %255 = vsyncadd %s249, %s254
          %s256 = smul.addr %s22, 72
          %s257 = smul.addr %s256, 64
          %s258 = scalar_lea.hbm %s0, %s257
          %s259 = sshll.u32 %s252, 4
          %s260 = int_to_ptr.vmem [resolvable:$true] %s259
          %265 = dma.hbm_to_vmem [thread:$0]  %s258, 4608, %s260, %s249, 576, 576, 36
        $region36: #{tpu_custom_call.1} parent=31 // pred_fallthru
          _
        // Predicated region
        $region37: #{tpu_custom_call.1} parent=31 // pred_check
          %p266 = pneg %p68
        $region38: #{tpu_custom_call.1} parent=31 // pred_check_branch
          %268 = sbr.rel (%p266) target = $region40
        $region39: #{tpu_custom_call.1} parent=31 // pred_region
          %s269 = sand.u32 %s22, 1
          %s270 = scalar_lea.sflag [#allocation7], %s269
          %s271 = sand.u32 %s58, 1
          %s272 = smul.addr %s271, 64
          %s273 = scalar_lea.vmem [#allocation6], %s272
          %s275 = ssub.s32 1024, 1024
          %276 = vsyncadd %s270, %s275
          %s277 = smul.addr %s22, 8
          %s278 = smul.addr %s277, 128
          %s279 = scalar_lea.hbm %s1, %s278
          %s280 = sshll.u32 %s273, 4
          %s281 = int_to_ptr.vmem [resolvable:$true] %s280
          %286 = dma.hbm_to_vmem [thread:$0]  %s279, 1024, %s281, %s270, 128, 128, 8
        $region40: #{tpu_custom_call.1} parent=31 // pred_fallthru
          _
      $region32: #{tpu_custom_call.1} parent=5 // pred_fallthru
        _
      %p287 = scmp.le.s32.totalorder 1, %s22
      %p288 = scmp.lt.s32.totalorder %s22, 3
      %p289 = pnand %p287, %p288
      %p290 = pneg %p289
      // Predicated region
      $region41: #{tpu_custom_call.1} parent=5 // pred_check
        _
      $region42: #{tpu_custom_call.1} parent=5 // pred_check_branch
        %292 = sbr.rel (%p289) target = $region44
      $region43: #{tpu_custom_call.1} parent=5 // pred_region
        %s293 = ssub.s32 %s22, 1
        %s294 = sand.u32 %s35, 1
        %s295 = scalar_lea.sflag [#allocation4], %s294
        %s296 = sand.u32 %s35, 1
        %s297 = smul.addr %s296, 288
        %s298 = scalar_lea.vmem [#allocation3], %s297
        // Predicated region
        $region45: #{tpu_custom_call.1} parent=43 // pred_check
          %p299 = pneg %p48
        $region46: #{tpu_custom_call.1} parent=43 // pred_check_branch
          %301 = sbr.rel (%p299) target = $region48
        $region47: #{tpu_custom_call.1} parent=43 // pred_region
          %302 = dma.done %s295, 4608
        $region48: #{tpu_custom_call.1} parent=43 // pred_fallthru
          _
        %s303 = sand.u32 %s27, 1
        %s304 = scalar_lea.sflag [#allocation7], %s303
        %s305 = sand.u32 %s61, 1
        %s306 = smul.addr %s305, 64
        %s307 = scalar_lea.vmem [#allocation6], %s306
        // Predicated region
        $region49: #{tpu_custom_call.1} parent=43 // pred_check
          %p308 = pneg %p74
        $region50: #{tpu_custom_call.1} parent=43 // pred_check_branch
          %310 = sbr.rel (%p308) target = $region52
        $region51: #{tpu_custom_call.1} parent=43 // pred_region
          %311 = dma.done %s304, 1024
        $region52: #{tpu_custom_call.1} parent=43 // pred_fallthru
          _
        // Predicated region
        $region53: #{tpu_custom_call.1} parent=43 // pred_check
          %p312 = pneg %p95
        $region54: #{tpu_custom_call.1} parent=43 // pred_check_branch
          %314 = sbr.rel (%p312) target = $region56
        $region55: #{tpu_custom_call.1} parent=43 // pred_region
          %315 = dma.done [#allocation7], 9216
        $region56: #{tpu_custom_call.1} parent=43 // pred_fallthru
          _
        // Predicated region
        $region57: #{tpu_custom_call.1} parent=43 // pred_check
          %p316 = pneg %p116
        $region58: #{tpu_custom_call.1} parent=43 // pred_check_branch
          %318 = sbr.rel (%p316) target = $region60
        $region59: #{tpu_custom_call.1} parent=43 // pred_region
          %319 = dma.done [#allocation10], 9216
        $region60: #{tpu_custom_call.1} parent=43 // pred_fallthru
          _
        // Predicated region
        $region61: #{tpu_custom_call.1} parent=43 // pred_check
          %p320 = pneg %p137
        $region62: #{tpu_custom_call.1} parent=43 // pred_check_branch
          %322 = sbr.rel (%p320) target = $region64
        $region63: #{tpu_custom_call.1} parent=43 // pred_region
          %323 = dma.done [#allocation10], 1024
        $region64: #{tpu_custom_call.1} parent=43 // pred_fallthru
          _
        %s324 = sand.u32 %s35, 1
        %s325 = scalar_lea.sflag [#allocation4], %s324
        %s326 = sand.u32 %s35, 1
        %s327 = smul.addr %s326, 288
        %s328 = scalar_lea.vmem [#allocation3], %s327
        %p329 = pneg %p48
        %p330 = pneg %p45
        %s331 = sand.u32 %s27, 1
        %s332 = scalar_lea.sflag [#allocation7], %s331
        %s333 = sand.u32 %s61, 1
        %s334 = smul.addr %s333, 64
        %s335 = scalar_lea.vmem [#allocation6], %s334
        %p336 = pneg %p74
        %p337 = pneg %p71
        %p338 = pneg %p95
        %p339 = pneg %p92
        %p340 = pneg %p116
        %p341 = pneg %p113
        %p342 = pneg %p137
        %p343 = pneg %p134
        %p344 = pneg %p158
        %p345 = pneg %p155
        %p346 = pneg %p184
        %p347 = pneg %p181
        %s348 = sand.u32 %s171, 1
        %s349 = scalar_lea.sflag [#allocation5], %s348
        %s350 = sand.u32 %s171, 1
        %s351 = smul.addr %s350, 64
        %s352 = scalar_lea.vmem [#allocation12], %s351
        %v354 = vld [vmem:[%s5] sm:$0x1]
        %v355 = vld [vmem:[%s5 + $0x1] sm:$0x1]
        %v356 = vld [vmem:[%s5 + $0x2] sm:$0x1]
        %v357 = vld [vmem:[%s5 + $0x3] sm:$0x1]
        %v358 = vld [vmem:[%s298] sm:$0xff]
        %v359 = vld [vmem:[%s298 + $0x8] sm:$0xff]
        %v360 = vld [vmem:[%s298 + $0x10] sm:$0xff]
        %v361 = vld [vmem:[%s298 + $0x18] sm:$0xff]
        %v362 = vld [vmem:[%s298 + $0x20] sm:$0xf]
        %v363 = vld [vmem:[%s298 + $0x24] sm:$0xff]
        %v364 = vld [vmem:[%s298 + $0x2c] sm:$0xff]
        %v365 = vld [vmem:[%s298 + $0x34] sm:$0xff]
        %v366 = vld [vmem:[%s298 + $0x3c] sm:$0xff]
        %v367 = vld [vmem:[%s298 + $0x44] sm:$0xf]
        %v368 = vld [vmem:[%s298 + $0x48] sm:$0xff]
        %v369 = vld [vmem:[%s298 + $0x50] sm:$0xff]
        %v370 = vld [vmem:[%s298 + $0x58] sm:$0xff]
        %v371 = vld [vmem:[%s298 + $0x60] sm:$0xff]
        %v372 = vld [vmem:[%s298 + $0x68] sm:$0xf]
        %v373 = vld [vmem:[%s298 + $0x6c] sm:$0xff]
        %v374 = vld [vmem:[%s298 + $0x74] sm:$0xff]
        %v375 = vld [vmem:[%s298 + $0x7c] sm:$0xff]
        %v376 = vld [vmem:[%s298 + $0x84] sm:$0xff]
        %v377 = vld [vmem:[%s298 + $0x8c] sm:$0xf]
        %v378 = vld [vmem:[%s298 + $0x90] sm:$0xff]
        %v379 = vld [vmem:[%s298 + $0x98] sm:$0xff]
        %v380 = vld [vmem:[%s298 + $0xa0] sm:$0xff]
        %v381 = vld [vmem:[%s298 + $0xa8] sm:$0xff]
        %v382 = vld [vmem:[%s298 + $0xb0] sm:$0xf]
        %v383 = vld [vmem:[%s298 + $0xb4] sm:$0xff]
        %v384 = vld [vmem:[%s298 + $0xbc] sm:$0xff]
        %v385 = vld [vmem:[%s298 + $0xc4] sm:$0xff]
        %v386 = vld [vmem:[%s298 + $0xcc] sm:$0xff]
        %v387 = vld [vmem:[%s298 + $0xd4] sm:$0xf]
        %v388 = vld [vmem:[%s298 + $0xd8] sm:$0xff]
        %v389 = vld [vmem:[%s298 + $0xe0] sm:$0xff]
        %v390 = vld [vmem:[%s298 + $0xe8] sm:$0xff]
        %v391 = vld [vmem:[%s298 + $0xf0] sm:$0xff]
        %v392 = vld [vmem:[%s298 + $0xf8] sm:$0xf]
        %v393 = vld [vmem:[%s298 + $0xfc] sm:$0xff]
        %v394 = vld [vmem:[%s298 + $0x104] sm:$0xff]
        %v395 = vld [vmem:[%s298 + $0x10c] sm:$0xff]
        %v396 = vld [vmem:[%s298 + $0x114] sm:$0xff]
        %v397 = vld [vmem:[%s298 + $0x11c] sm:$0xf]
        %v398 = vld [vmem:[#allocation8] sm:$0xf]
        %v399 = vld [vmem:[#allocation8 + $0x4] sm:$0xf]
        %v400 = vld [vmem:[#allocation8 + $0x8] sm:$0xf]
        %v401 = vld [vmem:[#allocation8 + $0xc] sm:$0xf]
        %v402 = vld [vmem:[#allocation8 + $0x10] sm:$0xf]
        %v403 = vld [vmem:[#allocation8 + $0x14] sm:$0xf]
        %v404 = vld [vmem:[#allocation8 + $0x18] sm:$0xf]
        %v405 = vld [vmem:[#allocation8 + $0x1c] sm:$0xf]
        %v406 = vld [vmem:[#allocation8 + $0x20] sm:$0xf]
        %v407 = vld [vmem:[#allocation8 + $0x24] sm:$0xf]
        %v408 = vld [vmem:[#allocation8 + $0x28] sm:$0xf]
        %v409 = vld [vmem:[#allocation8 + $0x2c] sm:$0xf]
        %v410 = vld [vmem:[#allocation8 + $0x30] sm:$0xf]
        %v411 = vld [vmem:[#allocation8 + $0x34] sm:$0xf]
        %v412 = vld [vmem:[#allocation8 + $0x38] sm:$0xf]
        %v413 = vld [vmem:[#allocation8 + $0x3c] sm:$0xf]
        %v414 = vld [vmem:[#allocation8 + $0x40] sm:$0xf]
        %v415 = vld [vmem:[#allocation8 + $0x44] sm:$0xf]
        %v416 = vld [vmem:[#allocation8 + $0x48] sm:$0xf]
        %v417 = vld [vmem:[#allocation8 + $0x4c] sm:$0xf]
        %v418 = vld [vmem:[#allocation8 + $0x50] sm:$0xf]
        %v419 = vld [vmem:[#allocation8 + $0x54] sm:$0xf]
        %v420 = vld [vmem:[#allocation8 + $0x58] sm:$0xf]
        %v421 = vld [vmem:[#allocation8 + $0x5c] sm:$0xf]
        %v422 = vld [vmem:[#allocation8 + $0x60] sm:$0xf]
        %v423 = vld [vmem:[#allocation8 + $0x64] sm:$0xf]
        %v424 = vld [vmem:[#allocation8 + $0x68] sm:$0xf]
        %v425 = vld [vmem:[#allocation8 + $0x6c] sm:$0xf]
        %v426 = vld [vmem:[#allocation8 + $0x70] sm:$0xf]
        %v427 = vld [vmem:[#allocation8 + $0x74] sm:$0xf]
        %v428 = vld [vmem:[#allocation8 + $0x78] sm:$0xf]
        %v429 = vld [vmem:[#allocation8 + $0x7c] sm:$0xf]
        %v430 = vld [vmem:[#allocation8 + $0x80] sm:$0xf]
        %v431 = vld [vmem:[#allocation8 + $0x84] sm:$0xf]
        %v432 = vld [vmem:[#allocation8 + $0x88] sm:$0xf]
        %v433 = vld [vmem:[#allocation8 + $0x8c] sm:$0xf]
        %v434 = vld [vmem:[#allocation8 + $0x90] sm:$0xf]
        %v435 = vld [vmem:[#allocation8 + $0x94] sm:$0xf]
        %v436 = vld [vmem:[#allocation8 + $0x98] sm:$0xf]
        %v437 = vld [vmem:[#allocation8 + $0x9c] sm:$0xf]
        %v438 = vld [vmem:[#allocation8 + $0xa0] sm:$0xf]
        %v439 = vld [vmem:[#allocation8 + $0xa4] sm:$0xf]
        %v440 = vld [vmem:[#allocation8 + $0xa8] sm:$0xf]
        %v441 = vld [vmem:[#allocation8 + $0xac] sm:$0xf]
        %v442 = vld [vmem:[#allocation8 + $0xb0] sm:$0xf]
        %v443 = vld [vmem:[#allocation8 + $0xb4] sm:$0xf]
        %v444 = vld [vmem:[#allocation8 + $0xb8] sm:$0xf]
        %v445 = vld [vmem:[#allocation8 + $0xbc] sm:$0xf]
        %v446 = vld [vmem:[#allocation8 + $0xc0] sm:$0xf]
        %v447 = vld [vmem:[#allocation8 + $0xc4] sm:$0xf]
        %v448 = vld [vmem:[#allocation8 + $0xc8] sm:$0xf]
        %v449 = vld [vmem:[#allocation8 + $0xcc] sm:$0xf]
        %v450 = vld [vmem:[#allocation8 + $0xd0] sm:$0xf]
        %v451 = vld [vmem:[#allocation8 + $0xd4] sm:$0xf]
        %v452 = vld [vmem:[#allocation8 + $0xd8] sm:$0xf]
        %v453 = vld [vmem:[#allocation8 + $0xdc] sm:$0xf]
        %v454 = vld [vmem:[#allocation8 + $0xe0] sm:$0xf]
        %v455 = vld [vmem:[#allocation8 + $0xe4] sm:$0xf]
        %v456 = vld [vmem:[#allocation8 + $0xe8] sm:$0xf]
        %v457 = vld [vmem:[#allocation8 + $0xec] sm:$0xf]
        %v458 = vld [vmem:[#allocation8 + $0xf0] sm:$0xf]
        %v459 = vld [vmem:[#allocation8 + $0xf4] sm:$0xf]
        %v460 = vld [vmem:[#allocation8 + $0xf8] sm:$0xf]
        %v461 = vld [vmem:[#allocation8 + $0xfc] sm:$0xf]
        %v462 = vld [vmem:[#allocation8 + $0x100] sm:$0xf]
        %v463 = vld [vmem:[#allocation8 + $0x104] sm:$0xf]
        %v464 = vld [vmem:[#allocation8 + $0x108] sm:$0xf]
        %v465 = vld [vmem:[#allocation8 + $0x10c] sm:$0xf]
        %v466 = vld [vmem:[#allocation8 + $0x110] sm:$0xf]
        %v467 = vld [vmem:[#allocation8 + $0x114] sm:$0xf]
        %v468 = vld [vmem:[#allocation8 + $0x118] sm:$0xf]
        %v469 = vld [vmem:[#allocation8 + $0x11c] sm:$0xf]
        %v470 = vld [vmem:[#allocation8 + $0x120] sm:$0xf]
        %v471 = vld [vmem:[#allocation8 + $0x124] sm:$0xf]
        %v472 = vld [vmem:[#allocation8 + $0x128] sm:$0xf]
        %v473 = vld [vmem:[#allocation8 + $0x12c] sm:$0xf]
        %v474 = vld [vmem:[#allocation8 + $0x130] sm:$0xf]
        %v475 = vld [vmem:[#allocation8 + $0x134] sm:$0xf]
        %v476 = vld [vmem:[#allocation8 + $0x138] sm:$0xf]
        %v477 = vld [vmem:[#allocation8 + $0x13c] sm:$0xf]
        %v478 = vld [vmem:[#allocation8 + $0x140] sm:$0xf]
        %v479 = vld [vmem:[#allocation8 + $0x144] sm:$0xf]
        %v480 = vld [vmem:[#allocation8 + $0x148] sm:$0xf]
        %v481 = vld [vmem:[#allocation8 + $0x14c] sm:$0xf]
        %v482 = vld [vmem:[#allocation8 + $0x150] sm:$0xf]
        %v483 = vld [vmem:[#allocation8 + $0x154] sm:$0xf]
        %v484 = vld [vmem:[#allocation8 + $0x158] sm:$0xf]
        %v485 = vld [vmem:[#allocation8 + $0x15c] sm:$0xf]
        %v486 = vld [vmem:[#allocation8 + $0x160] sm:$0xf]
        %v487 = vld [vmem:[#allocation8 + $0x164] sm:$0xf]
        %v488 = vld [vmem:[#allocation8 + $0x168] sm:$0xf]
        %v489 = vld [vmem:[#allocation8 + $0x16c] sm:$0xf]
        %v490 = vld [vmem:[#allocation8 + $0x170] sm:$0xf]
        %v491 = vld [vmem:[#allocation8 + $0x174] sm:$0xf]
        %v492 = vld [vmem:[#allocation8 + $0x178] sm:$0xf]
        %v493 = vld [vmem:[#allocation8 + $0x17c] sm:$0xf]
        %v494 = vld [vmem:[#allocation8 + $0x180] sm:$0xf]
        %v495 = vld [vmem:[#allocation8 + $0x184] sm:$0xf]
        %v496 = vld [vmem:[#allocation8 + $0x188] sm:$0xf]
        %v497 = vld [vmem:[#allocation8 + $0x18c] sm:$0xf]
        %v498 = vld [vmem:[#allocation8 + $0x190] sm:$0xf]
        %v499 = vld [vmem:[#allocation8 + $0x194] sm:$0xf]
        %v500 = vld [vmem:[#allocation8 + $0x198] sm:$0xf]
        %v501 = vld [vmem:[#allocation8 + $0x19c] sm:$0xf]
        %v502 = vld [vmem:[#allocation8 + $0x1a0] sm:$0xf]
        %v503 = vld [vmem:[#allocation8 + $0x1a4] sm:$0xf]
        %v504 = vld [vmem:[#allocation8 + $0x1a8] sm:$0xf]
        %v505 = vld [vmem:[#allocation8 + $0x1ac] sm:$0xf]
        %v506 = vld [vmem:[#allocation8 + $0x1b0] sm:$0xf]
        %v507 = vld [vmem:[#allocation8 + $0x1b4] sm:$0xf]
        %v508 = vld [vmem:[#allocation8 + $0x1b8] sm:$0xf]
        %v509 = vld [vmem:[#allocation8 + $0x1bc] sm:$0xf]
        %v510 = vld [vmem:[#allocation8 + $0x1c0] sm:$0xf]
        %v511 = vld [vmem:[#allocation8 + $0x1c4] sm:$0xf]
        %v512 = vld [vmem:[#allocation8 + $0x1c8] sm:$0xf]
        %v513 = vld [vmem:[#allocation8 + $0x1cc] sm:$0xf]
        %v514 = vld [vmem:[#allocation8 + $0x1d0] sm:$0xf]
        %v515 = vld [vmem:[#allocation8 + $0x1d4] sm:$0xf]
        %v516 = vld [vmem:[#allocation8 + $0x1d8] sm:$0xf]
        %v517 = vld [vmem:[#allocation8 + $0x1dc] sm:$0xf]
        %v518 = vld [vmem:[#allocation8 + $0x1e0] sm:$0xf]
        %v519 = vld [vmem:[#allocation8 + $0x1e4] sm:$0xf]
        %v520 = vld [vmem:[#allocation8 + $0x1e8] sm:$0xf]
        %v521 = vld [vmem:[#allocation8 + $0x1ec] sm:$0xf]
        %v522 = vld [vmem:[#allocation8 + $0x1f0] sm:$0xf]
        %v523 = vld [vmem:[#allocation8 + $0x1f4] sm:$0xf]
        %v524 = vld [vmem:[#allocation8 + $0x1f8] sm:$0xf]
        %v525 = vld [vmem:[#allocation8 + $0x1fc] sm:$0xf]
        %v526 = vld [vmem:[#allocation8 + $0x200] sm:$0xf]
        %v527 = vld [vmem:[#allocation8 + $0x204] sm:$0xf]
        %v528 = vld [vmem:[#allocation8 + $0x208] sm:$0xf]
        %v529 = vld [vmem:[#allocation8 + $0x20c] sm:$0xf]
        %v530 = vld [vmem:[#allocation8 + $0x210] sm:$0xf]
        %v531 = vld [vmem:[#allocation8 + $0x214] sm:$0xf]
        %v532 = vld [vmem:[#allocation8 + $0x218] sm:$0xf]
        %v533 = vld [vmem:[#allocation8 + $0x21c] sm:$0xf]
        %v534 = vld [vmem:[#allocation8 + $0x220] sm:$0xf]
        %v535 = vld [vmem:[#allocation8 + $0x224] sm:$0xf]
        %v536 = vld [vmem:[#allocation8 + $0x228] sm:$0xf]
        %v537 = vld [vmem:[#allocation8 + $0x22c] sm:$0xf]
        %v538 = vld [vmem:[#allocation8 + $0x230] sm:$0xf]
        %v539 = vld [vmem:[#allocation8 + $0x234] sm:$0xf]
        %v540 = vld [vmem:[#allocation8 + $0x238] sm:$0xf]
        %v541 = vld [vmem:[#allocation8 + $0x23c] sm:$0xf]
        %v582 = vunpack.c.l.b16 %v358
        %v583 = vunpack.c.h.b16 %v358
        %v584 = vunpack.c.l.b16 %v359
        %v585 = vunpack.c.h.b16 %v359
        %v586 = vunpack.c.l.b16 %v360
        %v587 = vunpack.c.h.b16 %v360
        %v588 = vunpack.c.l.b16 %v361
        %v589 = vunpack.c.h.b16 %v361
        %v590 = vunpack.c.l.b16 %v362
        %v591 = vunpack.c.l.b16 %v363
        %v592 = vunpack.c.h.b16 %v363
        %v593 = vunpack.c.l.b16 %v364
        %v594 = vunpack.c.h.b16 %v364
        %v595 = vunpack.c.l.b16 %v365
        %v596 = vunpack.c.h.b16 %v365
        %v597 = vunpack.c.l.b16 %v366
        %v598 = vunpack.c.h.b16 %v366
        %v599 = vunpack.c.l.b16 %v367
        %v600 = vunpack.c.l.b16 %v368
        %v601 = vunpack.c.h.b16 %v368
        %v602 = vunpack.c.l.b16 %v369
        %v603 = vunpack.c.h.b16 %v369
        %v604 = vunpack.c.l.b16 %v370
        %v605 = vunpack.c.h.b16 %v370
        %v606 = vunpack.c.l.b16 %v371
        %v607 = vunpack.c.h.b16 %v371
        %v608 = vunpack.c.l.b16 %v372
        %v609 = vunpack.c.l.b16 %v373
        %v610 = vunpack.c.h.b16 %v373
        %v611 = vunpack.c.l.b16 %v374
        %v612 = vunpack.c.h.b16 %v374
        %v613 = vunpack.c.l.b16 %v375
        %v614 = vunpack.c.h.b16 %v375
        %v615 = vunpack.c.l.b16 %v376
        %v616 = vunpack.c.h.b16 %v376
        %v617 = vunpack.c.l.b16 %v377
        %v618 = vunpack.c.l.b16 %v378
        %v619 = vunpack.c.h.b16 %v378
        %v620 = vunpack.c.l.b16 %v379
        %v621 = vunpack.c.h.b16 %v379
        %v622 = vunpack.c.l.b16 %v380
        %v623 = vunpack.c.h.b16 %v380
        %v624 = vunpack.c.l.b16 %v381
        %v625 = vunpack.c.h.b16 %v381
        %v626 = vunpack.c.l.b16 %v382
        %v627 = vunpack.c.l.b16 %v383
        %v628 = vunpack.c.h.b16 %v383
        %v629 = vunpack.c.l.b16 %v384
        %v630 = vunpack.c.h.b16 %v384
        %v631 = vunpack.c.l.b16 %v385
        %v632 = vunpack.c.h.b16 %v385
        %v633 = vunpack.c.l.b16 %v386
        %v634 = vunpack.c.h.b16 %v386
        %v635 = vunpack.c.l.b16 %v387
        %v636 = vunpack.c.l.b16 %v388
        %v637 = vunpack.c.h.b16 %v388
        %v638 = vunpack.c.l.b16 %v389
        %v639 = vunpack.c.h.b16 %v389
        %v640 = vunpack.c.l.b16 %v390
        %v641 = vunpack.c.h.b16 %v390
        %v642 = vunpack.c.l.b16 %v391
        %v643 = vunpack.c.h.b16 %v391
        %v644 = vunpack.c.l.b16 %v392
        %v645 = vunpack.c.l.b16 %v393
        %v646 = vunpack.c.h.b16 %v393
        %v647 = vunpack.c.l.b16 %v394
        %v648 = vunpack.c.h.b16 %v394
        %v649 = vunpack.c.l.b16 %v395
        %v650 = vunpack.c.h.b16 %v395
        %v651 = vunpack.c.l.b16 %v396
        %v652 = vunpack.c.h.b16 %v396
        %v653 = vunpack.c.l.b16 %v397
        %v654 = vpack.c.b16 %v591, %v582
        %v655 = vpack.c.b16 %v592, %v583
        %v656 = vpack.c.b16 %v593, %v584
        %v657 = vpack.c.b16 %v594, %v585
        %v658 = vpack.c.b16 %v595, %v586
        %v659 = vpack.c.b16 %v596, %v587
        %v660 = vpack.c.b16 %v597, %v588
        %v661 = vpack.c.b16 %v598, %v589
        %v662 = vpack.c.b16 %v599, %v590
        %v663 = vpack.c.b16 %v609, %v600
        %v664 = vpack.c.b16 %v610, %v601
        %v665 = vpack.c.b16 %v611, %v602
        %v666 = vpack.c.b16 %v612, %v603
        %v667 = vpack.c.b16 %v613, %v604
        %v668 = vpack.c.b16 %v614, %v605
        %v669 = vpack.c.b16 %v615, %v606
        %v670 = vpack.c.b16 %v616, %v607
        %v671 = vpack.c.b16 %v617, %v608
        %v672 = vpack.c.b16 %v627, %v618
        %v673 = vpack.c.b16 %v628, %v619
        %v674 = vpack.c.b16 %v629, %v620
        %v675 = vpack.c.b16 %v630, %v621
        %v676 = vpack.c.b16 %v631, %v622
        %v677 = vpack.c.b16 %v632, %v623
        %v678 = vpack.c.b16 %v633, %v624
        %v679 = vpack.c.b16 %v634, %v625
        %v680 = vpack.c.b16 %v635, %v626
        %v681 = vpack.c.b16 %v645, %v636
        %v682 = vpack.c.b16 %v646, %v637
        %v683 = vpack.c.b16 %v647, %v638
        %v684 = vpack.c.b16 %v648, %v639
        %v685 = vpack.c.b16 %v649, %v640
        %v686 = vpack.c.b16 %v650, %v641
        %v687 = vpack.c.b16 %v651, %v642
        %v688 = vpack.c.b16 %v652, %v643
        %v689 = vpack.c.b16 %v653, %v644
        %v870 = vunpack.c.l.b16 %v398
        %v871 = vunpack.c.l.b16 %v399
        %v872 = vunpack.c.l.b16 %v400
        %v873 = vunpack.c.l.b16 %v401
        %v874 = vunpack.c.l.b16 %v402
        %v875 = vunpack.c.l.b16 %v403
        %v876 = vunpack.c.l.b16 %v404
        %v877 = vunpack.c.l.b16 %v405
        %v878 = vunpack.c.l.b16 %v406
        %v879 = vunpack.c.l.b16 %v407
        %v880 = vunpack.c.l.b16 %v408
        %v881 = vunpack.c.l.b16 %v409
        %v882 = vunpack.c.l.b16 %v410
        %v883 = vunpack.c.l.b16 %v411
        %v884 = vunpack.c.l.b16 %v412
        %v885 = vunpack.c.l.b16 %v413
        %v886 = vunpack.c.l.b16 %v414
        %v887 = vunpack.c.l.b16 %v415
        %v888 = vunpack.c.l.b16 %v416
        %v889 = vunpack.c.l.b16 %v417
        %v890 = vunpack.c.l.b16 %v418
        %v891 = vunpack.c.l.b16 %v419
        %v892 = vunpack.c.l.b16 %v420
        %v893 = vunpack.c.l.b16 %v421
        %v894 = vunpack.c.l.b16 %v422
        %v895 = vunpack.c.l.b16 %v423
        %v896 = vunpack.c.l.b16 %v424
        %v897 = vunpack.c.l.b16 %v425
        %v898 = vunpack.c.l.b16 %v426
        %v899 = vunpack.c.l.b16 %v427
        %v900 = vunpack.c.l.b16 %v428
        %v901 = vunpack.c.l.b16 %v429
        %v902 = vunpack.c.l.b16 %v430
        %v903 = vunpack.c.l.b16 %v431
        %v904 = vunpack.c.l.b16 %v432
        %v905 = vunpack.c.l.b16 %v433
        %v906 = vunpack.c.l.b16 %v434
        %v907 = vunpack.c.l.b16 %v435
        %v908 = vunpack.c.l.b16 %v436
        %v909 = vunpack.c.l.b16 %v437
        %v910 = vunpack.c.l.b16 %v438
        %v911 = vunpack.c.l.b16 %v439
        %v912 = vunpack.c.l.b16 %v440
        %v913 = vunpack.c.l.b16 %v441
        %v914 = vunpack.c.l.b16 %v442
        %v915 = vunpack.c.l.b16 %v443
        %v916 = vunpack.c.l.b16 %v444
        %v917 = vunpack.c.l.b16 %v445
        %v918 = vunpack.c.l.b16 %v446
        %v919 = vunpack.c.l.b16 %v447
        %v920 = vunpack.c.l.b16 %v448
        %v921 = vunpack.c.l.b16 %v449
        %v922 = vunpack.c.l.b16 %v450
        %v923 = vunpack.c.l.b16 %v451
        %v924 = vunpack.c.l.b16 %v452
        %v925 = vunpack.c.l.b16 %v453
        %v926 = vunpack.c.l.b16 %v454
        %v927 = vunpack.c.l.b16 %v455
        %v928 = vunpack.c.l.b16 %v456
        %v929 = vunpack.c.l.b16 %v457
        %v930 = vunpack.c.l.b16 %v458
        %v931 = vunpack.c.l.b16 %v459
        %v932 = vunpack.c.l.b16 %v460
        %v933 = vunpack.c.l.b16 %v461
        %v934 = vunpack.c.l.b16 %v462
        %v935 = vunpack.c.l.b16 %v463
        %v936 = vunpack.c.l.b16 %v464
        %v937 = vunpack.c.l.b16 %v465
        %v938 = vunpack.c.l.b16 %v466
        %v939 = vunpack.c.l.b16 %v467
        %v940 = vunpack.c.l.b16 %v468
        %v941 = vunpack.c.l.b16 %v469
        %v942 = vunpack.c.l.b16 %v470
        %v943 = vunpack.c.l.b16 %v471
        %v944 = vunpack.c.l.b16 %v472
        %v945 = vunpack.c.l.b16 %v473
        %v946 = vunpack.c.l.b16 %v474
        %v947 = vunpack.c.l.b16 %v475
        %v948 = vunpack.c.l.b16 %v476
        %v949 = vunpack.c.l.b16 %v477
        %v950 = vunpack.c.l.b16 %v478
        %v951 = vunpack.c.l.b16 %v479
        %v952 = vunpack.c.l.b16 %v480
        %v953 = vunpack.c.l.b16 %v481
        %v954 = vunpack.c.l.b16 %v482
        %v955 = vunpack.c.l.b16 %v483
        %v956 = vunpack.c.l.b16 %v484
        %v957 = vunpack.c.l.b16 %v485
        %v958 = vunpack.c.l.b16 %v486
        %v959 = vunpack.c.l.b16 %v487
        %v960 = vunpack.c.l.b16 %v488
        %v961 = vunpack.c.l.b16 %v489
        %v962 = vunpack.c.l.b16 %v490
        %v963 = vunpack.c.l.b16 %v491
        %v964 = vunpack.c.l.b16 %v492
        %v965 = vunpack.c.l.b16 %v493
        %v966 = vunpack.c.l.b16 %v494
        %v967 = vunpack.c.l.b16 %v495
        %v968 = vunpack.c.l.b16 %v496
        %v969 = vunpack.c.l.b16 %v497
        %v970 = vunpack.c.l.b16 %v498
        %v971 = vunpack.c.l.b16 %v499
        %v972 = vunpack.c.l.b16 %v500
        %v973 = vunpack.c.l.b16 %v501
        %v974 = vunpack.c.l.b16 %v502
        %v975 = vunpack.c.l.b16 %v503
        %v976 = vunpack.c.l.b16 %v504
        %v977 = vunpack.c.l.b16 %v505
        %v978 = vunpack.c.l.b16 %v506
        %v979 = vunpack.c.l.b16 %v507
        %v980 = vunpack.c.l.b16 %v508
        %v981 = vunpack.c.l.b16 %v509
        %v982 = vunpack.c.l.b16 %v510
        %v983 = vunpack.c.l.b16 %v511
        %v984 = vunpack.c.l.b16 %v512
        %v985 = vunpack.c.l.b16 %v513
        %v986 = vunpack.c.l.b16 %v514
        %v987 = vunpack.c.l.b16 %v515
        %v988 = vunpack.c.l.b16 %v516
        %v989 = vunpack.c.l.b16 %v517
        %v990 = vunpack.c.l.b16 %v518
        %v991 = vunpack.c.l.b16 %v519
        %v992 = vunpack.c.l.b16 %v520
        %v993 = vunpack.c.l.b16 %v521
        %v994 = vunpack.c.l.b16 %v522
        %v995 = vunpack.c.l.b16 %v523
        %v996 = vunpack.c.l.b16 %v524
        %v997 = vunpack.c.l.b16 %v525
        %v998 = vunpack.c.l.b16 %v526
        %v999 = vunpack.c.l.b16 %v527
        %v1000 = vunpack.c.l.b16 %v528
        %v1001 = vunpack.c.l.b16 %v529
        %v1002 = vunpack.c.l.b16 %v530
        %v1003 = vunpack.c.l.b16 %v531
        %v1004 = vunpack.c.l.b16 %v532
        %v1005 = vunpack.c.l.b16 %v533
        %v1006 = vunpack.c.l.b16 %v534
        %v1007 = vunpack.c.l.b16 %v535
        %v1008 = vunpack.c.l.b16 %v536
        %v1009 = vunpack.c.l.b16 %v537
        %v1010 = vunpack.c.l.b16 %v538
        %v1011 = vunpack.c.l.b16 %v539
        %v1012 = vunpack.c.l.b16 %v540
        %v1013 = vunpack.c.l.b16 %v541
        %v1014 = vpack.c.b16 %v871, %v870
        %v1015 = vpack.c.b16 %v873, %v872
        %v1016 = vpack.c.b16 %v875, %v874
        %v1017 = vpack.c.b16 %v877, %v876
        %v1018 = vpack.c.b16 %v879, %v878
        %v1019 = vpack.c.b16 %v881, %v880
        %v1020 = vpack.c.b16 %v883, %v882
        %v1021 = vpack.c.b16 %v885, %v884
        %v1022 = vpack.c.b16 %v887, %v886
        %v1023 = vpack.c.b16 %v889, %v888
        %v1024 = vpack.c.b16 %v891, %v890
        %v1025 = vpack.c.b16 %v893, %v892
        %v1026 = vpack.c.b16 %v895, %v894
        %v1027 = vpack.c.b16 %v897, %v896
        %v1028 = vpack.c.b16 %v899, %v898
        %v1029 = vpack.c.b16 %v901, %v900
        %v1030 = vpack.c.b16 %v903, %v902
        %v1031 = vpack.c.b16 %v905, %v904
        %v1032 = vpack.c.b16 %v907, %v906
        %v1033 = vpack.c.b16 %v909, %v908
        %v1034 = vpack.c.b16 %v911, %v910
        %v1035 = vpack.c.b16 %v913, %v912
        %v1036 = vpack.c.b16 %v915, %v914
        %v1037 = vpack.c.b16 %v917, %v916
        %v1038 = vpack.c.b16 %v919, %v918
        %v1039 = vpack.c.b16 %v921, %v920
        %v1040 = vpack.c.b16 %v923, %v922
        %v1041 = vpack.c.b16 %v925, %v924
        %v1042 = vpack.c.b16 %v927, %v926
        %v1043 = vpack.c.b16 %v929, %v928
        %v1044 = vpack.c.b16 %v931, %v930
        %v1045 = vpack.c.b16 %v933, %v932
        %v1046 = vpack.c.b16 %v935, %v934
        %v1047 = vpack.c.b16 %v937, %v936
        %v1048 = vpack.c.b16 %v939, %v938
        %v1049 = vpack.c.b16 %v941, %v940
        %v1050 = vpack.c.b16 %v943, %v942
        %v1051 = vpack.c.b16 %v945, %v944
        %v1052 = vpack.c.b16 %v947, %v946
        %v1053 = vpack.c.b16 %v949, %v948
        %v1054 = vpack.c.b16 %v951, %v950
        %v1055 = vpack.c.b16 %v953, %v952
        %v1056 = vpack.c.b16 %v955, %v954
        %v1057 = vpack.c.b16 %v957, %v956
        %v1058 = vpack.c.b16 %v959, %v958
        %v1059 = vpack.c.b16 %v961, %v960
        %v1060 = vpack.c.b16 %v963, %v962
        %v1061 = vpack.c.b16 %v965, %v964
        %v1062 = vpack.c.b16 %v967, %v966
        %v1063 = vpack.c.b16 %v969, %v968
        %v1064 = vpack.c.b16 %v971, %v970
        %v1065 = vpack.c.b16 %v973, %v972
        %v1066 = vpack.c.b16 %v975, %v974
        %v1067 = vpack.c.b16 %v977, %v976
        %v1068 = vpack.c.b16 %v979, %v978
        %v1069 = vpack.c.b16 %v981, %v980
        %v1070 = vpack.c.b16 %v983, %v982
        %v1071 = vpack.c.b16 %v985, %v984
        %v1072 = vpack.c.b16 %v987, %v986
        %v1073 = vpack.c.b16 %v989, %v988
        %v1074 = vpack.c.b16 %v991, %v990
        %v1075 = vpack.c.b16 %v993, %v992
        %v1076 = vpack.c.b16 %v995, %v994
        %v1077 = vpack.c.b16 %v997, %v996
        %v1078 = vpack.c.b16 %v999, %v998
        %v1079 = vpack.c.b16 %v1001, %v1000
        %v1080 = vpack.c.b16 %v1003, %v1002
        %v1081 = vpack.c.b16 %v1005, %v1004
        %v1082 = vpack.c.b16 %v1007, %v1006
        %v1083 = vpack.c.b16 %v1009, %v1008
        %v1084 = vpack.c.b16 %v1011, %v1010
        %v1085 = vpack.c.b16 %v1013, %v1012
        %1158 = vmatprep.subr.bf16.mxu0 0
        %1159 = vmatpush1.bf16.msra.mxu0 %v1014
        %1160 = vmatprep.subr.bf16.mxu0 0
        %1161 = vmatpush1.bf16.msra.mxu0 %v1015
        %1162 = vmatprep.subr.bf16.mxu0 0
        %1163 = vmatpush1.bf16.msra.mxu0 %v1016
        %1164 = vmatprep.subr.bf16.mxu0 0
        %1165 = vmatpush1.bf16.msra.mxu0 %v1017
        %1166 = vmatprep.subr.bf16.mxu0 0
        %1167 = vmatpush1.bf16.msra.mxu0 %v1018
        %1168 = vmatprep.subr.bf16.mxu0 0
        %1169 = vmatpush1.bf16.msra.mxu0 %v1019
        %1170 = vmatprep.subr.bf16.mxu0 0
        %1171 = vmatpush1.bf16.msra.mxu0 %v1020
        %1172 = vmatprep.subr.bf16.mxu0 0
        %1173 = vmatpush1.bf16.msra.mxu0 %v1021
        %1174 = vmatprep.subr.bf16.mxu0 0
        %1175 = vmatpush1.bf16.msra.mxu0 %v1022
        %1176 = vmatprep.subr.bf16.mxu0 0
        %1177 = vmatpush1.bf16.msra.mxu0 %v1023
        %1178 = vmatprep.subr.bf16.mxu0 0
        %1179 = vmatpush1.bf16.msra.mxu0 %v1024
        %1180 = vmatprep.subr.bf16.mxu0 0
        %1181 = vmatpush1.bf16.msra.mxu0 %v1025
        %1182 = vmatprep.subr.bf16.mxu0 0
        %1183 = vmatpush1.bf16.msra.mxu0 %v1026
        %1184 = vmatprep.subr.bf16.mxu0 0
        %1185 = vmatpush1.bf16.msra.mxu0 %v1027
        %1186 = vmatprep.subr.bf16.mxu0 0
        %1187 = vmatpush1.bf16.msra.mxu0 %v1028
        %1188 = vmatprep.subr.bf16.mxu0 0
        %1189 = vmatpush1.bf16.msra.mxu0 %v1029
        %1190 = vmatprep.mubr.bf16.mxu0 %v655
        %1191 = vmatmul.mubr.bf16.gmra.mrb[0].mxu0 %v654
        %v1192 = vpop.f32.mrb[0].mxu0
        %v1193 = vadd.f32 0.0, %v1192
        %v1194 = vpop.f32.mrb[0].mxu0
        %v1195 = vpop.f32.mrb[0].mxu0
        %v1196 = vadd.f32 0.0, %v1195
        %v1197 = vpop.f32.mrb[0].mxu0
        %1198 = vmatprep.mubr.bf16.mxu0 %v664
        %1199 = vmatmul.mubr.bf16.gmra.mrb[0].mxu0 %v663
        %v1200 = vpop.f32.mrb[0].mxu0
        %v1201 = vadd.f32 0.0, %v1200
        %v1202 = vpop.f32.mrb[0].mxu0
        %v1203 = vpop.f32.mrb[0].mxu0
        %v1204 = vadd.f32 0.0, %v1203
        %v1205 = vpop.f32.mrb[0].mxu0
        %1206 = vmatprep.mubr.bf16.mxu0 %v673
        %1207 = vmatmul.mubr.bf16.gmra.mrb[0].mxu0 %v672
        %v1208 = vpop.f32.mrb[0].mxu0
        %v1209 = vadd.f32 0.0, %v1208
        %v1210 = vpop.f32.mrb[0].mxu0
        %v1211 = vpop.f32.mrb[0].mxu0
        %v1212 = vadd.f32 0.0, %v1211
        %v1213 = vpop.f32.mrb[0].mxu0
        %1214 = vmatprep.mubr.bf16.mxu0 %v682
        %1215 = vmatmul.mubr.bf16.gmra.mrb[0].mxu0 %v681
        %v1216 = vpop.f32.mrb[0].mxu0
        %v1217 = vadd.f32 0.0, %v1216
        %v1218 = vpop.f32.mrb[0].mxu0
        %v1219 = vpop.f32.mrb[0].mxu0
        %v1220 = vadd.f32 0.0, %v1219
        %v1221 = vpop.f32.mrb[0].mxu0
        %1222 = vdwg.mxu0
        %1223 = vmatprep.subr.bf16.mxu0 0
        %1224 = vmatpush1.bf16.msra.mxu0 %v1030
        %1225 = vmatprep.subr.bf16.mxu0 0
        %1226 = vmatpush1.bf16.msra.mxu0 %v1031
        %1227 = vmatprep.subr.bf16.mxu0 0
        %1228 = vmatpush1.bf16.msra.mxu0 %v1032
        %1229 = vmatprep.subr.bf16.mxu0 0
        %1230 = vmatpush1.bf16.msra.mxu0 %v1033
        %1231 = vmatprep.subr.bf16.mxu0 0
        %1232 = vmatpush1.bf16.msra.mxu0 %v1034
        %1233 = vmatprep.subr.bf16.mxu0 0
        %1234 = vmatpush1.bf16.msra.mxu0 %v1035
        %1235 = vmatprep.subr.bf16.mxu0 0
        %1236 = vmatpush1.bf16.msra.mxu0 %v1036
        %1237 = vmatprep.subr.bf16.mxu0 0
        %1238 = vmatpush1.bf16.msra.mxu0 %v1037
        %1239 = vmatprep.subr.bf16.mxu0 0
        %1240 = vmatpush1.bf16.msra.mxu0 %v1038
        %1241 = vmatprep.subr.bf16.mxu0 0
        %1242 = vmatpush1.bf16.msra.mxu0 %v1039
        %1243 = vmatprep.subr.bf16.mxu0 0
        %1244 = vmatpush1.bf16.msra.mxu0 %v1040
        %1245 = vmatprep.subr.bf16.mxu0 0
        %1246 = vmatpush1.bf16.msra.mxu0 %v1041
        %1247 = vmatprep.subr.bf16.mxu0 0
        %1248 = vmatpush1.bf16.msra.mxu0 %v1042
        %1249 = vmatprep.subr.bf16.mxu0 0
        %1250 = vmatpush1.bf16.msra.mxu0 %v1043
        %1251 = vmatprep.subr.bf16.mxu0 0
        %1252 = vmatpush1.bf16.msra.mxu0 %v1044
        %1253 = vmatprep.subr.bf16.mxu0 0
        %1254 = vmatpush1.bf16.msra.mxu0 %v1045
        %1255 = vmatprep.mubr.bf16.mxu0 %v657
        %1256 = vmatmul.mubr.bf16.gmra.mrb[0].mxu0 %v656
        %v1257 = vpop.f32.mrb[0].mxu0
        %v1258 = vadd.f32 %v1193, %v1257
        %v1259 = vpop.f32.mrb[0].mxu0
        %v1260 = vpop.f32.mrb[0].mxu0
        %v1261 = vadd.f32 %v1196, %v1260
        %v1262 = vpop.f32.mrb[0].mxu0
        %1263 = vmatprep.mubr.bf16.mxu0 %v666
        %1264 = vmatmul.mubr.bf16.gmra.mrb[0].mxu0 %v665
        %v1265 = vpop.f32.mrb[0].mxu0
        %v1266 = vadd.f32 %v1201, %v1265
        %v1267 = vpop.f32.mrb[0].mxu0
        %v1268 = vpop.f32.mrb[0].mxu0
        %v1269 = vadd.f32 %v1204, %v1268
        %v1270 = vpop.f32.mrb[0].mxu0
        %1271 = vmatprep.mubr.bf16.mxu0 %v675
        %1272 = vmatmul.mubr.bf16.gmra.mrb[0].mxu0 %v674
        %v1273 = vpop.f32.mrb[0].mxu0
        %v1274 = vadd.f32 %v1209, %v1273
        %v1275 = vpop.f32.mrb[0].mxu0
        %v1276 = vpop.f32.mrb[0].mxu0
        %v1277 = vadd.f32 %v1212, %v1276
        %v1278 = vpop.f32.mrb[0].mxu0
        %1279 = vmatprep.mubr.bf16.mxu0 %v684
        %1280 = vmatmul.mubr.bf16.gmra.mrb[0].mxu0 %v683
        %v1281 = vpop.f32.mrb[0].mxu0
        %v1282 = vadd.f32 %v1217, %v1281
        %v1283 = vpop.f32.mrb[0].mxu0
        %v1284 = vpop.f32.mrb[0].mxu0
        %v1285 = vadd.f32 %v1220, %v1284
        %v1286 = vpop.f32.mrb[0].mxu0
        %1287 = vdwg.mxu0
        %1288 = vmatprep.subr.bf16.mxu0 0
        %1289 = vmatpush1.bf16.msra.mxu0 %v1046
        %1290 = vmatprep.subr.bf16.mxu0 0
        %1291 = vmatpush1.bf16.msra.mxu0 %v1047
        %1292 = vmatprep.subr.bf16.mxu0 0
        %1293 = vmatpush1.bf16.msra.mxu0 %v1048
        %1294 = vmatprep.subr.bf16.mxu0 0
        %1295 = vmatpush1.bf16.msra.mxu0 %v1049
        %1296 = vmatprep.subr.bf16.mxu0 0
        %1297 = vmatpush1.bf16.msra.mxu0 %v1050
        %1298 = vmatprep.subr.bf16.mxu0 0
        %1299 = vmatpush1.bf16.msra.mxu0 %v1051
        %1300 = vmatprep.subr.bf16.mxu0 0
        %1301 = vmatpush1.bf16.msra.mxu0 %v1052
        %1302 = vmatprep.subr.bf16.mxu0 0
        %1303 = vmatpush1.bf16.msra.mxu0 %v1053
        %1304 = vmatprep.subr.bf16.mxu0 0
        %1305 = vmatpush1.bf16.msra.mxu0 %v1054
        %1306 = vmatprep.subr.bf16.mxu0 0
        %1307 = vmatpush1.bf16.msra.mxu0 %v1055
        %1308 = vmatprep.subr.bf16.mxu0 0
        %1309 = vmatpush1.bf16.msra.mxu0 %v1056
        %1310 = vmatprep.subr.bf16.mxu0 0
        %1311 = vmatpush1.bf16.msra.mxu0 %v1057
        %1312 = vmatprep.subr.bf16.mxu0 0
        %1313 = vmatpush1.bf16.msra.mxu0 %v1058
        %1314 = vmatprep.subr.bf16.mxu0 0
        %1315 = vmatpush1.bf16.msra.mxu0 %v1059
        %1316 = vmatprep.subr.bf16.mxu0 0
        %1317 = vmatpush1.bf16.msra.mxu0 %v1060
        %1318 = vmatprep.subr.bf16.mxu0 0
        %1319 = vmatpush1.bf16.msra.mxu0 %v1061
        %1320 = vmatprep.mubr.bf16.mxu0 %v659
        %1321 = vmatmul.mubr.bf16.gmra.mrb[0].mxu0 %v658
        %v1322 = vpop.f32.mrb[0].mxu0
        %v1323 = vadd.f32 %v1258, %v1322
        %v1324 = vpop.f32.mrb[0].mxu0
        %v1325 = vpop.f32.mrb[0].mxu0
        %v1326 = vadd.f32 %v1261, %v1325
        %v1327 = vpop.f32.mrb[0].mxu0
        %1328 = vmatprep.mubr.bf16.mxu0 %v668
        %1329 = vmatmul.mubr.bf16.gmra.mrb[0].mxu0 %v667
        %v1330 = vpop.f32.mrb[0].mxu0
        %v1331 = vadd.f32 %v1266, %v1330
        %v1332 = vpop.f32.mrb[0].mxu0
        %v1333 = vpop.f32.mrb[0].mxu0
        %v1334 = vadd.f32 %v1269, %v1333
        %v1335 = vpop.f32.mrb[0].mxu0
        %1336 = vmatprep.mubr.bf16.mxu0 %v677
        %1337 = vmatmul.mubr.bf16.gmra.mrb[0].mxu0 %v676
        %v1338 = vpop.f32.mrb[0].mxu0
        %v1339 = vadd.f32 %v1274, %v1338
        %v1340 = vpop.f32.mrb[0].mxu0
        %v1341 = vpop.f32.mrb[0].mxu0
        %v1342 = vadd.f32 %v1277, %v1341
        %v1343 = vpop.f32.mrb[0].mxu0
        %1344 = vmatprep.mubr.bf16.mxu0 %v686
        %1345 = vmatmul.mubr.bf16.gmra.mrb[0].mxu0 %v685
        %v1346 = vpop.f32.mrb[0].mxu0
        %v1347 = vadd.f32 %v1282, %v1346
        %v1348 = vpop.f32.mrb[0].mxu0
        %v1349 = vpop.f32.mrb[0].mxu0
        %v1350 = vadd.f32 %v1285, %v1349
        %v1351 = vpop.f32.mrb[0].mxu0
        %1352 = vdwg.mxu0
        %1353 = vmatprep.subr.bf16.mxu0 0
        %1354 = vmatpush1.bf16.msra.mxu0 %v1062
        %1355 = vmatprep.subr.bf16.mxu0 0
        %1356 = vmatpush1.bf16.msra.mxu0 %v1063
        %1357 = vmatprep.subr.bf16.mxu0 0
        %1358 = vmatpush1.bf16.msra.mxu0 %v1064
        %1359 = vmatprep.subr.bf16.mxu0 0
        %1360 = vmatpush1.bf16.msra.mxu0 %v1065
        %1361 = vmatprep.subr.bf16.mxu0 0
        %1362 = vmatpush1.bf16.msra.mxu0 %v1066
        %1363 = vmatprep.subr.bf16.mxu0 0
        %1364 = vmatpush1.bf16.msra.mxu0 %v1067
        %1365 = vmatprep.subr.bf16.mxu0 0
        %1366 = vmatpush1.bf16.msra.mxu0 %v1068
        %1367 = vmatprep.subr.bf16.mxu0 0
        %1368 = vmatpush1.bf16.msra.mxu0 %v1069
        %1369 = vmatprep.subr.bf16.mxu0 0
        %1370 = vmatpush1.bf16.msra.mxu0 %v1070
        %1371 = vmatprep.subr.bf16.mxu0 0
        %1372 = vmatpush1.bf16.msra.mxu0 %v1071
        %1373 = vmatprep.subr.bf16.mxu0 0
        %1374 = vmatpush1.bf16.msra.mxu0 %v1072
        %1375 = vmatprep.subr.bf16.mxu0 0
        %1376 = vmatpush1.bf16.msra.mxu0 %v1073
        %1377 = vmatprep.subr.bf16.mxu0 0
        %1378 = vmatpush1.bf16.msra.mxu0 %v1074
        %1379 = vmatprep.subr.bf16.mxu0 0
        %1380 = vmatpush1.bf16.msra.mxu0 %v1075
        %1381 = vmatprep.subr.bf16.mxu0 0
        %1382 = vmatpush1.bf16.msra.mxu0 %v1076
        %1383 = vmatprep.subr.bf16.mxu0 0
        %1384 = vmatpush1.bf16.msra.mxu0 %v1077
        %1385 = vmatprep.mubr.bf16.mxu0 %v661
        %1386 = vmatmul.mubr.bf16.gmra.mrb[0].mxu0 %v660
        %v1387 = vpop.f32.mrb[0].mxu0
        %v1388 = vadd.f32 %v1323, %v1387
        %v1389 = vpop.f32.mrb[0].mxu0
        %v1390 = vpop.f32.mrb[0].mxu0
        %v1391 = vadd.f32 %v1326, %v1390
        %v1392 = vpop.f32.mrb[0].mxu0
        %1393 = vmatprep.mubr.bf16.mxu0 %v670
        %1394 = vmatmul.mubr.bf16.gmra.mrb[0].mxu0 %v669
        %v1395 = vpop.f32.mrb[0].mxu0
        %v1396 = vadd.f32 %v1331, %v1395
        %v1397 = vpop.f32.mrb[0].mxu0
        %v1398 = vpop.f32.mrb[0].mxu0
        %v1399 = vadd.f32 %v1334, %v1398
        %v1400 = vpop.f32.mrb[0].mxu0
        %1401 = vmatprep.mubr.bf16.mxu0 %v679
        %1402 = vmatmul.mubr.bf16.gmra.mrb[0].mxu0 %v678
        %v1403 = vpop.f32.mrb[0].mxu0
        %v1404 = vadd.f32 %v1339, %v1403
        %v1405 = vpop.f32.mrb[0].mxu0
        %v1406 = vpop.f32.mrb[0].mxu0
        %v1407 = vadd.f32 %v1342, %v1406
        %v1408 = vpop.f32.mrb[0].mxu0
        %1409 = vmatprep.mubr.bf16.mxu0 %v688
        %1410 = vmatmul.mubr.bf16.gmra.mrb[0].mxu0 %v687
        %v1411 = vpop.f32.mrb[0].mxu0
        %v1412 = vadd.f32 %v1347, %v1411
        %v1413 = vpop.f32.mrb[0].mxu0
        %v1414 = vpop.f32.mrb[0].mxu0
        %v1415 = vadd.f32 %v1350, %v1414
        %v1416 = vpop.f32.mrb[0].mxu0
        %1417 = vdwg.mxu0
        %1418 = vmatprep.subr.bf16.mxu0 0
        %1419 = vmatpush1.bf16.msra.mxu0 %v1078
        %1420 = vmatprep.subr.bf16.mxu0 0
        %1421 = vmatpush1.bf16.msra.mxu0 %v1079
        %1422 = vmatprep.subr.bf16.mxu0 0
        %1423 = vmatpush1.bf16.msra.mxu0 %v1080
        %1424 = vmatprep.subr.bf16.mxu0 0
        %1425 = vmatpush1.bf16.msra.mxu0 %v1081
        %1426 = vmatprep.subr.bf16.mxu0 0
        %1427 = vmatpush1.bf16.msra.mxu0 %v1082
        %1428 = vmatprep.subr.bf16.mxu0 0
        %1429 = vmatpush1.bf16.msra.mxu0 %v1083
        %1430 = vmatprep.subr.bf16.mxu0 0
        %1431 = vmatpush1.bf16.msra.mxu0 %v1084
        %1432 = vmatprep.subr.bf16.mxu0 0
        %1433 = vmatpush1.bf16.msra.mxu0 %v1085
        %1434 = vmatprep.subr.bf16.mxu0 0
        %1435 = vmatpush1.bf16.msra.mxu0 0
        %1436 = vmatprep.subr.bf16.mxu0 0
        %1437 = vmatpush1.bf16.msra.mxu0 0
        %1438 = vmatprep.subr.bf16.mxu0 0
        %1439 = vmatpush1.bf16.msra.mxu0 0
        %1440 = vmatprep.subr.bf16.mxu0 0
        %1441 = vmatpush1.bf16.msra.mxu0 0
        %1442 = vmatprep.subr.bf16.mxu0 0
        %1443 = vmatpush1.bf16.msra.mxu0 0
        %1444 = vmatprep.subr.bf16.mxu0 0
        %1445 = vmatpush1.bf16.msra.mxu0 0
        %1446 = vmatprep.subr.bf16.mxu0 0
        %1447 = vmatpush1.bf16.msra.mxu0 0
        %1448 = vmatprep.subr.bf16.mxu0 0
        %1449 = vmatpush1.bf16.msra.mxu0 0
        %1450 = vmatprep.mubr.bf16.mxu0 0
        %1451 = vmatmul.mubr.bf16.gmra.mrb[0].mxu0 %v662
        %v1452 = vpop.f32.mrb[0].mxu0
        %v1453 = vadd.f32 %v1388, %v1452
        %v1454 = vpop.f32.mrb[0].mxu0
        %v1455 = vpop.f32.mrb[0].mxu0
        %v1456 = vadd.f32 %v1391, %v1455
        %v1457 = vpop.f32.mrb[0].mxu0
        %1458 = vmatprep.mubr.bf16.mxu0 0
        %1459 = vmatmul.mubr.bf16.gmra.mrb[0].mxu0 %v671
        %v1460 = vpop.f32.mrb[0].mxu0
        %v1461 = vadd.f32 %v1396, %v1460
        %v1462 = vpop.f32.mrb[0].mxu0
        %v1463 = vpop.f32.mrb[0].mxu0
        %v1464 = vadd.f32 %v1399, %v1463
        %v1465 = vpop.f32.mrb[0].mxu0
        %1466 = vmatprep.mubr.bf16.mxu0 0
        %1467 = vmatmul.mubr.bf16.gmra.mrb[0].mxu0 %v680
        %v1468 = vpop.f32.mrb[0].mxu0
        %v1469 = vadd.f32 %v1404, %v1468
        %v1470 = vpop.f32.mrb[0].mxu0
        %v1471 = vpop.f32.mrb[0].mxu0
        %v1472 = vadd.f32 %v1407, %v1471
        %v1473 = vpop.f32.mrb[0].mxu0
        %1474 = vmatprep.mubr.bf16.mxu0 0
        %1475 = vmatmul.mubr.bf16.gmra.mrb[0].mxu0 %v689
        %v1476 = vpop.f32.mrb[0].mxu0
        %v1477 = vadd.f32 %v1412, %v1476
        %v1478 = vpop.f32.mrb[0].mxu0
        %v1479 = vpop.f32.mrb[0].mxu0
        %v1480 = vadd.f32 %v1415, %v1479
        %v1481 = vpop.f32.mrb[0].mxu0
        %1482 = vdwg.mxu0
        %v1483 = vlaneseq
        %v1484 = vshrl.u32 %v1483, 7
        %v1485 = vsub.s32 0, %v1484
        %v1486 = vrot.slane %v354, %v1485
        %v1487 = vmul.f32 %v1453, %v1486
        %v1488 = vmul.f32 %v1456, %v1486
        %v1489 = vmul.f32 %v1461, %v1486
        %v1490 = vmul.f32 %v1464, %v1486
        %v1491 = vmul.f32 %v1469, %v1486
        %v1492 = vmul.f32 %v1472, %v1486
        %v1493 = vmul.f32 %v1477, %v1486
        %v1494 = vmul.f32 %v1480, %v1486
        %v1495 = vlaneseq
        %v1496 = vshrl.u32 %v1495, 7
        %v1497 = vsub.s32 0, %v1496
        %v1498 = vrot.slane %v355, %v1497
        %v1499 = vadd.f32 %v1487, %v1498
        %v1500 = vadd.f32 %v1488, %v1498
        %v1501 = vadd.f32 %v1489, %v1498
        %v1502 = vadd.f32 %v1490, %v1498
        %v1503 = vadd.f32 %v1491, %v1498
        %v1504 = vadd.f32 %v1492, %v1498
        %v1505 = vadd.f32 %v1493, %v1498
        %v1506 = vadd.f32 %v1494, %v1498
        %v1507 = vmax.f32 %v1499, 0.0
        %v1508 = vmax.f32 %v1500, 0.0
        %v1509 = vmax.f32 %v1501, 0.0
        %v1510 = vmax.f32 %v1502, 0.0
        %v1511 = vmax.f32 %v1503, 0.0
        %v1512 = vmax.f32 %v1504, 0.0
        %v1513 = vmax.f32 %v1505, 0.0
        %v1514 = vmax.f32 %v1506, 0.0
        %1515 = vst [vmem:[#allocation2] sm:$0xf] 0
        %1516 = vst [vmem:[#allocation2 + $0x4] sm:$0xf] 0
        %1517 = vst [vmem:[#allocation2 + $0x8] sm:$0xf] 0
        %s1518 = scalar_lea.vmem [#allocation2], 108
        %1519 = vst [vmem:[%s1518] sm:$0xf] 0
        %1520 = vst [vmem:[%s1518 + $0x4] sm:$0xf] 0
        %1521 = vst [vmem:[%s1518 + $0x8] sm:$0xf] 0
        %s1522 = scalar_lea.vmem [#allocation2], 12
        %1523 = vst [vmem:[%s1522] sm:$0xf] 0
        %1524 = vst [vmem:[%s1522 + $0xc] sm:$0xf] 0
        %1525 = vst [vmem:[%s1522 + $0x18] sm:$0xf] 0
        %1526 = vst [vmem:[%s1522 + $0x24] sm:$0xf] 0
        %1527 = vst [vmem:[%s1522 + $0x30] sm:$0xf] 0
        %1528 = vst [vmem:[%s1522 + $0x3c] sm:$0xf] 0
        %1529 = vst [vmem:[%s1522 + $0x48] sm:$0xf] 0
        %1530 = vst [vmem:[%s1522 + $0x54] sm:$0xf] 0
        %1531 = vst [vmem:[%s1522 + $0x8] sm:$0xf] 0
        %1532 = vst [vmem:[%s1522 + $0x14] sm:$0xf] 0
        %1533 = vst [vmem:[%s1522 + $0x20] sm:$0xf] 0
        %1534 = vst [vmem:[%s1522 + $0x2c] sm:$0xf] 0
        %1535 = vst [vmem:[%s1522 + $0x38] sm:$0xf] 0
        %1536 = vst [vmem:[%s1522 + $0x44] sm:$0xf] 0
        %1537 = vst [vmem:[%s1522 + $0x50] sm:$0xf] 0
        %1538 = vst [vmem:[%s1522 + $0x5c] sm:$0xf] 0
        %v1539 = vpack.c.bf16 %v1507, %v1507
        %v1540 = vpack.c.bf16 %v1508, %v1508
        %v1541 = vpack.c.bf16 %v1509, %v1509
        %v1542 = vpack.c.bf16 %v1510, %v1510
        %v1543 = vpack.c.bf16 %v1511, %v1511
        %v1544 = vpack.c.bf16 %v1512, %v1512
        %v1545 = vpack.c.bf16 %v1513, %v1513
        %v1546 = vpack.c.bf16 %v1514, %v1514
        %1547 = vst [vmem:[%s1522 + $0x4] sm:$0xf] %v1539
        %1548 = vst [vmem:[%s1522 + $0x10] sm:$0xf] %v1540
        %1549 = vst [vmem:[%s1522 + $0x1c] sm:$0xf] %v1541
        %1550 = vst [vmem:[%s1522 + $0x28] sm:$0xf] %v1542
        %1551 = vst [vmem:[%s1522 + $0x34] sm:$0xf] %v1543
        %1552 = vst [vmem:[%s1522 + $0x40] sm:$0xf] %v1544
        %1553 = vst [vmem:[%s1522 + $0x4c] sm:$0xf] %v1545
        %1554 = vst [vmem:[%s1522 + $0x58] sm:$0xf] %v1546
        %v1555 = vld [vmem:[#allocation2] sm:$0x8]
        %v1556 = vld [vmem:[#allocation2 + $0x4] sm:$0xf]
        %v1557 = vld [vmem:[#allocation2 + $0xc] sm:$0x8]
        %v1558 = vld [vmem:[#allocation2 + $0x10] sm:$0xf]
        %v1559 = vld [vmem:[#allocation2 + $0x18] sm:$0x8]
        %v1560 = vld [vmem:[#allocation2 + $0x1c] sm:$0xf]
        %v1561 = vld [vmem:[#allocation2 + $0x24] sm:$0x8]
        %v1562 = vld [vmem:[#allocation2 + $0x28] sm:$0xf]
        %v1563 = vld [vmem:[#allocation2 + $0x30] sm:$0x8]
        %v1564 = vld [vmem:[#allocation2 + $0x34] sm:$0xf]
        %v1565 = vld [vmem:[#allocation2 + $0x3c] sm:$0x8]
        %v1566 = vld [vmem:[#allocation2 + $0x40] sm:$0xf]
        %v1567 = vld [vmem:[#allocation2 + $0x48] sm:$0x8]
        %v1568 = vld [vmem:[#allocation2 + $0x4c] sm:$0xf]
        %v1569 = vld [vmem:[#allocation2 + $0x54] sm:$0x8]
        %v1570 = vld [vmem:[#allocation2 + $0x58] sm:$0xf]
        %v1571 = vld [vmem:[#allocation2 + $0x8] sm:$0x1]
        %v1572 = vld [vmem:[#allocation2 + $0x14] sm:$0x1]
        %v1573 = vld [vmem:[#allocation2 + $0x20] sm:$0x1]
        %v1574 = vld [vmem:[#allocation2 + $0x2c] sm:$0x1]
        %v1575 = vld [vmem:[#allocation2 + $0x38] sm:$0x1]
        %v1576 = vld [vmem:[#allocation2 + $0x44] sm:$0x1]
        %v1577 = vld [vmem:[#allocation2 + $0x50] sm:$0x1]
        %v1578 = vld [vmem:[#allocation2 + $0x5c] sm:$0x1]
        %v1579 = vld [vmem:[%s1522] sm:$0x8]
        %v1580 = vld [vmem:[%s1522 + $0x4] sm:$0xf]
        %v1581 = vld [vmem:[%s1522 + $0xc] sm:$0x8]
        %v1582 = vld [vmem:[%s1522 + $0x10] sm:$0xf]
        %v1583 = vld [vmem:[%s1522 + $0x18] sm:$0x8]
        %v1584 = vld [vmem:[%s1522 + $0x1c] sm:$0xf]
        %v1585 = vld [vmem:[%s1522 + $0x24] sm:$0x8]
        %v1586 = vld [vmem:[%s1522 + $0x28] sm:$0xf]
        %v1587 = vld [vmem:[%s1522 + $0x30] sm:$0x8]
        %v1588 = vld [vmem:[%s1522 + $0x34] sm:$0xf]
        %v1589 = vld [vmem:[%s1522 + $0x3c] sm:$0x8]
        %v1590 = vld [vmem:[%s1522 + $0x40] sm:$0xf]
        %v1591 = vld [vmem:[%s1522 + $0x48] sm:$0x8]
        %v1592 = vld [vmem:[%s1522 + $0x4c] sm:$0xf]
        %v1593 = vld [vmem:[%s1522 + $0x54] sm:$0x8]
        %v1594 = vld [vmem:[%s1522 + $0x58] sm:$0xf]
        %v1595 = vld [vmem:[%s1522 + $0x8] sm:$0x1]
        %v1596 = vld [vmem:[%s1522 + $0x14] sm:$0x1]
        %v1597 = vld [vmem:[%s1522 + $0x20] sm:$0x1]
        %v1598 = vld [vmem:[%s1522 + $0x2c] sm:$0x1]
        %v1599 = vld [vmem:[%s1522 + $0x38] sm:$0x1]
        %v1600 = vld [vmem:[%s1522 + $0x44] sm:$0x1]
        %v1601 = vld [vmem:[%s1522 + $0x50] sm:$0x1]
        %v1602 = vld [vmem:[%s1522 + $0x5c] sm:$0x1]
        %s1603 = scalar_lea.vmem [#allocation2], 24
        %v1604 = vld [vmem:[%s1603] sm:$0x8]
        %v1605 = vld [vmem:[%s1603 + $0x4] sm:$0xf]
        %v1606 = vld [vmem:[%s1603 + $0xc] sm:$0x8]
        %v1607 = vld [vmem:[%s1603 + $0x10] sm:$0xf]
        %v1608 = vld [vmem:[%s1603 + $0x18] sm:$0x8]
        %v1609 = vld [vmem:[%s1603 + $0x1c] sm:$0xf]
        %v1610 = vld [vmem:[%s1603 + $0x24] sm:$0x8]
        %v1611 = vld [vmem:[%s1603 + $0x28] sm:$0xf]
        %v1612 = vld [vmem:[%s1603 + $0x30] sm:$0x8]
        %v1613 = vld [vmem:[%s1603 + $0x34] sm:$0xf]
        %v1614 = vld [vmem:[%s1603 + $0x3c] sm:$0x8]
        %v1615 = vld [vmem:[%s1603 + $0x40] sm:$0xf]
        %v1616 = vld [vmem:[%s1603 + $0x48] sm:$0x8]
        %v1617 = vld [vmem:[%s1603 + $0x4c] sm:$0xf]
        %v1618 = vld [vmem:[%s1603 + $0x54] sm:$0x8]
        %v1619 = vld [vmem:[%s1603 + $0x58] sm:$0xf]
        %v1620 = vld [vmem:[%s1603 + $0x8] sm:$0x1]
        %v1621 = vld [vmem:[%s1603 + $0x14] sm:$0x1]
        %v1622 = vld [vmem:[%s1603 + $0x20] sm:$0x1]
        %v1623 = vld [vmem:[%s1603 + $0x2c] sm:$0x1]
        %v1624 = vld [vmem:[%s1603 + $0x38] sm:$0x1]
        %v1625 = vld [vmem:[%s1603 + $0x44] sm:$0x1]
        %v1626 = vld [vmem:[%s1603 + $0x50] sm:$0x1]
        %v1627 = vld [vmem:[%s1603 + $0x5c] sm:$0x1]
        %v1644 = vunpack.c.l.b16 %v1555
        %v1645 = vunpack.c.l.b16 %v1556
        %v1646 = vunpack.c.l.b16 %v1557
        %v1647 = vunpack.c.l.b16 %v1558
        %v1648 = vunpack.c.l.b16 %v1559
        %v1649 = vunpack.c.l.b16 %v1560
        %v1650 = vunpack.c.l.b16 %v1561
        %v1651 = vunpack.c.l.b16 %v1562
        %v1652 = vunpack.c.l.b16 %v1563
        %v1653 = vunpack.c.l.b16 %v1564
        %v1654 = vunpack.c.l.b16 %v1565
        %v1655 = vunpack.c.l.b16 %v1566
        %v1656 = vunpack.c.l.b16 %v1567
        %v1657 = vunpack.c.l.b16 %v1568
        %v1658 = vunpack.c.l.b16 %v1569
        %v1659 = vunpack.c.l.b16 %v1570
        %v1660 = vpack.c.b16 %v1645, %v1645
        %v1661 = vpack.c.b16 %v1647, %v1647
        %v1662 = vpack.c.b16 %v1649, %v1649
        %v1663 = vpack.c.b16 %v1651, %v1651
        %v1664 = vpack.c.b16 %v1653, %v1653
        %v1665 = vpack.c.b16 %v1655, %v1655
        %v1666 = vpack.c.b16 %v1657, %v1657
        %v1667 = vpack.c.b16 %v1659, %v1659
        %v1669 = vshrl.u32 %v1660, 16
        %v1671 = vrot.slane %v1669, 4
        %v1672 = vshll.u32 %v1660, 16
        %v1674 = vrot.slane %v1672, 5
        %v1675 = vor.u32 %v1671, %v1674
        %v1677 = vshrl.u32 %v1661, 16
        %v1679 = vrot.slane %v1677, 4
        %v1680 = vshll.u32 %v1661, 16
        %v1682 = vrot.slane %v1680, 5
        %v1683 = vor.u32 %v1679, %v1682
        %v1685 = vshrl.u32 %v1662, 16
        %v1687 = vrot.slane %v1685, 4
        %v1688 = vshll.u32 %v1662, 16
        %v1690 = vrot.slane %v1688, 5
        %v1691 = vor.u32 %v1687, %v1690
        %v1693 = vshrl.u32 %v1663, 16
        %v1695 = vrot.slane %v1693, 4
        %v1696 = vshll.u32 %v1663, 16
        %v1698 = vrot.slane %v1696, 5
        %v1699 = vor.u32 %v1695, %v1698
        %v1701 = vshrl.u32 %v1664, 16
        %v1703 = vrot.slane %v1701, 4
        %v1704 = vshll.u32 %v1664, 16
        %v1706 = vrot.slane %v1704, 5
        %v1707 = vor.u32 %v1703, %v1706
        %v1709 = vshrl.u32 %v1665, 16
        %v1711 = vrot.slane %v1709, 4
        %v1712 = vshll.u32 %v1665, 16
        %v1714 = vrot.slane %v1712, 5
        %v1715 = vor.u32 %v1711, %v1714
        %v1717 = vshrl.u32 %v1666, 16
        %v1719 = vrot.slane %v1717, 4
        %v1720 = vshll.u32 %v1666, 16
        %v1722 = vrot.slane %v1720, 5
        %v1723 = vor.u32 %v1719, %v1722
        %v1725 = vshrl.u32 %v1667, 16
        %v1727 = vrot.slane %v1725, 4
        %v1728 = vshll.u32 %v1667, 16
        %v1730 = vrot.slane %v1728, 5
        %v1731 = vor.u32 %v1727, %v1730
        %v1740 = vunpack.c.l.b16 %v1571
        %v1741 = vunpack.c.l.b16 %v1572
        %v1742 = vunpack.c.l.b16 %v1573
        %v1743 = vunpack.c.l.b16 %v1574
        %v1744 = vunpack.c.l.b16 %v1575
        %v1745 = vunpack.c.l.b16 %v1576
        %v1746 = vunpack.c.l.b16 %v1577
        %v1747 = vunpack.c.l.b16 %v1578
        %v1748 = vpack.c.b16 %v1740, %v1645
        %v1749 = vpack.c.b16 %v1741, %v1647
        %v1750 = vpack.c.b16 %v1742, %v1649
        %v1751 = vpack.c.b16 %v1743, %v1651
        %v1752 = vpack.c.b16 %v1744, %v1653
        %v1753 = vpack.c.b16 %v1745, %v1655
        %v1754 = vpack.c.b16 %v1746, %v1657
        %v1755 = vpack.c.b16 %v1747, %v1659
        %v1756 = vrot.slane %v1748, 5
        %v1757 = vrot.slane %v1749, 5
        %v1758 = vrot.slane %v1750, 5
        %v1759 = vrot.slane %v1751, 5
        %v1760 = vrot.slane %v1752, 5
        %v1761 = vrot.slane %v1753, 5
        %v1762 = vrot.slane %v1754, 5
        %v1763 = vrot.slane %v1755, 5
        %v1780 = vunpack.c.l.b16 %v1579
        %v1781 = vunpack.c.l.b16 %v1580
        %v1782 = vunpack.c.l.b16 %v1581
        %v1783 = vunpack.c.l.b16 %v1582
        %v1784 = vunpack.c.l.b16 %v1583
        %v1785 = vunpack.c.l.b16 %v1584
        %v1786 = vunpack.c.l.b16 %v1585
        %v1787 = vunpack.c.l.b16 %v1586
        %v1788 = vunpack.c.l.b16 %v1587
        %v1789 = vunpack.c.l.b16 %v1588
        %v1790 = vunpack.c.l.b16 %v1589
        %v1791 = vunpack.c.l.b16 %v1590
        %v1792 = vunpack.c.l.b16 %v1591
        %v1793 = vunpack.c.l.b16 %v1592
        %v1794 = vunpack.c.l.b16 %v1593
        %v1795 = vunpack.c.l.b16 %v1594
        %v1796 = vpack.c.b16 %v1781, %v1781
        %v1797 = vpack.c.b16 %v1783, %v1783
        %v1798 = vpack.c.b16 %v1785, %v1785
        %v1799 = vpack.c.b16 %v1787, %v1787
        %v1800 = vpack.c.b16 %v1789, %v1789
        %v1801 = vpack.c.b16 %v1791, %v1791
        %v1802 = vpack.c.b16 %v1793, %v1793
        %v1803 = vpack.c.b16 %v1795, %v1795
        %v1805 = vshrl.u32 %v1796, 16
        %v1807 = vrot.slane %v1805, 4
        %v1808 = vshll.u32 %v1796, 16
        %v1810 = vrot.slane %v1808, 5
        %v1811 = vor.u32 %v1807, %v1810
        %v1813 = vshrl.u32 %v1797, 16
        %v1815 = vrot.slane %v1813, 4
        %v1816 = vshll.u32 %v1797, 16
        %v1818 = vrot.slane %v1816, 5
        %v1819 = vor.u32 %v1815, %v1818
        %v1821 = vshrl.u32 %v1798, 16
        %v1823 = vrot.slane %v1821, 4
        %v1824 = vshll.u32 %v1798, 16
        %v1826 = vrot.slane %v1824, 5
        %v1827 = vor.u32 %v1823, %v1826
        %v1829 = vshrl.u32 %v1799, 16
        %v1831 = vrot.slane %v1829, 4
        %v1832 = vshll.u32 %v1799, 16
        %v1834 = vrot.slane %v1832, 5
        %v1835 = vor.u32 %v1831, %v1834
        %v1837 = vshrl.u32 %v1800, 16
        %v1839 = vrot.slane %v1837, 4
        %v1840 = vshll.u32 %v1800, 16
        %v1842 = vrot.slane %v1840, 5
        %v1843 = vor.u32 %v1839, %v1842
        %v1845 = vshrl.u32 %v1801, 16
        %v1847 = vrot.slane %v1845, 4
        %v1848 = vshll.u32 %v1801, 16
        %v1850 = vrot.slane %v1848, 5
        %v1851 = vor.u32 %v1847, %v1850
        %v1853 = vshrl.u32 %v1802, 16
        %v1855 = vrot.slane %v1853, 4
        %v1856 = vshll.u32 %v1802, 16
        %v1858 = vrot.slane %v1856, 5
        %v1859 = vor.u32 %v1855, %v1858
        %v1861 = vshrl.u32 %v1803, 16
        %v1863 = vrot.slane %v1861, 4
        %v1864 = vshll.u32 %v1803, 16
        %v1866 = vrot.slane %v1864, 5
        %v1867 = vor.u32 %v1863, %v1866
        %v1876 = vunpack.c.l.b16 %v1595
        %v1877 = vunpack.c.l.b16 %v1596
        %v1878 = vunpack.c.l.b16 %v1597
        %v1879 = vunpack.c.l.b16 %v1598
        %v1880 = vunpack.c.l.b16 %v1599
        %v1881 = vunpack.c.l.b16 %v1600
        %v1882 = vunpack.c.l.b16 %v1601
        %v1883 = vunpack.c.l.b16 %v1602
        %v1884 = vpack.c.b16 %v1876, %v1781
        %v1885 = vpack.c.b16 %v1877, %v1783
        %v1886 = vpack.c.b16 %v1878, %v1785
        %v1887 = vpack.c.b16 %v1879, %v1787
        %v1888 = vpack.c.b16 %v1880, %v1789
        %v1889 = vpack.c.b16 %v1881, %v1791
        %v1890 = vpack.c.b16 %v1882, %v1793
        %v1891 = vpack.c.b16 %v1883, %v1795
        %v1892 = vrot.slane %v1884, 5
        %v1893 = vrot.slane %v1885, 5
        %v1894 = vrot.slane %v1886, 5
        %v1895 = vrot.slane %v1887, 5
        %v1896 = vrot.slane %v1888, 5
        %v1897 = vrot.slane %v1889, 5
        %v1898 = vrot.slane %v1890, 5
        %v1899 = vrot.slane %v1891, 5
        %v1916 = vunpack.c.l.b16 %v1604
        %v1917 = vunpack.c.l.b16 %v1605
        %v1918 = vunpack.c.l.b16 %v1606
        %v1919 = vunpack.c.l.b16 %v1607
        %v1920 = vunpack.c.l.b16 %v1608
        %v1921 = vunpack.c.l.b16 %v1609
        %v1922 = vunpack.c.l.b16 %v1610
        %v1923 = vunpack.c.l.b16 %v1611
        %v1924 = vunpack.c.l.b16 %v1612
        %v1925 = vunpack.c.l.b16 %v1613
        %v1926 = vunpack.c.l.b16 %v1614
        %v1927 = vunpack.c.l.b16 %v1615
        %v1928 = vunpack.c.l.b16 %v1616
        %v1929 = vunpack.c.l.b16 %v1617
        %v1930 = vunpack.c.l.b16 %v1618
        %v1931 = vunpack.c.l.b16 %v1619
        %v1932 = vpack.c.b16 %v1917, %v1917
        %v1933 = vpack.c.b16 %v1919, %v1919
        %v1934 = vpack.c.b16 %v1921, %v1921
        %v1935 = vpack.c.b16 %v1923, %v1923
        %v1936 = vpack.c.b16 %v1925, %v1925
        %v1937 = vpack.c.b16 %v1927, %v1927
        %v1938 = vpack.c.b16 %v1929, %v1929
        %v1939 = vpack.c.b16 %v1931, %v1931
        %v1941 = vshrl.u32 %v1932, 16
        %v1943 = vrot.slane %v1941, 4
        %v1944 = vshll.u32 %v1932, 16
        %v1946 = vrot.slane %v1944, 5
        %v1947 = vor.u32 %v1943, %v1946
        %v1949 = vshrl.u32 %v1933, 16
        %v1951 = vrot.slane %v1949, 4
        %v1952 = vshll.u32 %v1933, 16
        %v1954 = vrot.slane %v1952, 5
        %v1955 = vor.u32 %v1951, %v1954
        %v1957 = vshrl.u32 %v1934, 16
        %v1959 = vrot.slane %v1957, 4
        %v1960 = vshll.u32 %v1934, 16
        %v1962 = vrot.slane %v1960, 5
        %v1963 = vor.u32 %v1959, %v1962
        %v1965 = vshrl.u32 %v1935, 16
        %v1967 = vrot.slane %v1965, 4
        %v1968 = vshll.u32 %v1935, 16
        %v1970 = vrot.slane %v1968, 5
        %v1971 = vor.u32 %v1967, %v1970
        %v1973 = vshrl.u32 %v1936, 16
        %v1975 = vrot.slane %v1973, 4
        %v1976 = vshll.u32 %v1936, 16
        %v1978 = vrot.slane %v1976, 5
        %v1979 = vor.u32 %v1975, %v1978
        %v1981 = vshrl.u32 %v1937, 16
        %v1983 = vrot.slane %v1981, 4
        %v1984 = vshll.u32 %v1937, 16
        %v1986 = vrot.slane %v1984, 5
        %v1987 = vor.u32 %v1983, %v1986
        %v1989 = vshrl.u32 %v1938, 16
        %v1991 = vrot.slane %v1989, 4
        %v1992 = vshll.u32 %v1938, 16
        %v1994 = vrot.slane %v1992, 5
        %v1995 = vor.u32 %v1991, %v1994
        %v1997 = vshrl.u32 %v1939, 16
        %v1999 = vrot.slane %v1997, 4
        %v2000 = vshll.u32 %v1939, 16
        %v2002 = vrot.slane %v2000, 5
        %v2003 = vor.u32 %v1999, %v2002
        %v2012 = vunpack.c.l.b16 %v1620
        %v2013 = vunpack.c.l.b16 %v1621
        %v2014 = vunpack.c.l.b16 %v1622
        %v2015 = vunpack.c.l.b16 %v1623
        %v2016 = vunpack.c.l.b16 %v1624
        %v2017 = vunpack.c.l.b16 %v1625
        %v2018 = vunpack.c.l.b16 %v1626
        %v2019 = vunpack.c.l.b16 %v1627
        %v2020 = vpack.c.b16 %v2012, %v1917
        %v2021 = vpack.c.b16 %v2013, %v1919
        %v2022 = vpack.c.b16 %v2014, %v1921
        %v2023 = vpack.c.b16 %v2015, %v1923
        %v2024 = vpack.c.b16 %v2016, %v1925
        %v2025 = vpack.c.b16 %v2017, %v1927
        %v2026 = vpack.c.b16 %v2018, %v1929
        %v2027 = vpack.c.b16 %v2019, %v1931
        %v2028 = vrot.slane %v2020, 5
        %v2029 = vrot.slane %v2021, 5
        %v2030 = vrot.slane %v2022, 5
        %v2031 = vrot.slane %v2023, 5
        %v2032 = vrot.slane %v2024, 5
        %v2033 = vrot.slane %v2025, 5
        %v2034 = vrot.slane %v2026, 5
        %v2035 = vrot.slane %v2027, 5
        %v2036 = vunpack.c.l.b16 %v1675
        %v2037 = vunpack.c.l.b16 %v1756
        %v2038 = vunpack.c.l.b16 %v1811
        %v2039 = vunpack.c.l.b16 %v1892
        %v2040 = vunpack.c.l.b16 %v1947
        %v2041 = vunpack.c.l.b16 %v2028
        %v2042 = vunpack.c.h.b16 %v1675
        %v2043 = vunpack.c.h.b16 %v1756
        %v2044 = vunpack.c.h.b16 %v1811
        %v2045 = vunpack.c.h.b16 %v1892
        %v2046 = vunpack.c.h.b16 %v1947
        %v2047 = vunpack.c.h.b16 %v2028
        %v2048 = vunpack.c.l.b16 %v1683
        %v2049 = vunpack.c.l.b16 %v1757
        %v2050 = vunpack.c.l.b16 %v1819
        %v2051 = vunpack.c.l.b16 %v1893
        %v2052 = vunpack.c.l.b16 %v1955
        %v2053 = vunpack.c.l.b16 %v2029
        %v2054 = vunpack.c.h.b16 %v1683
        %v2055 = vunpack.c.h.b16 %v1757
        %v2056 = vunpack.c.h.b16 %v1819
        %v2057 = vunpack.c.h.b16 %v1893
        %v2058 = vunpack.c.h.b16 %v1955
        %v2059 = vunpack.c.h.b16 %v2029
        %v2060 = vunpack.c.l.b16 %v1691
        %v2061 = vunpack.c.l.b16 %v1758
        %v2062 = vunpack.c.l.b16 %v1827
        %v2063 = vunpack.c.l.b16 %v1894
        %v2064 = vunpack.c.l.b16 %v1963
        %v2065 = vunpack.c.l.b16 %v2030
        %v2066 = vunpack.c.h.b16 %v1691
        %v2067 = vunpack.c.h.b16 %v1758
        %v2068 = vunpack.c.h.b16 %v1827
        %v2069 = vunpack.c.h.b16 %v1894
        %v2070 = vunpack.c.h.b16 %v1963
        %v2071 = vunpack.c.h.b16 %v2030
        %v2072 = vunpack.c.l.b16 %v1699
        %v2073 = vunpack.c.l.b16 %v1759
        %v2074 = vunpack.c.l.b16 %v1835
        %v2075 = vunpack.c.l.b16 %v1895
        %v2076 = vunpack.c.l.b16 %v1971
        %v2077 = vunpack.c.l.b16 %v2031
        %v2078 = vunpack.c.h.b16 %v1699
        %v2079 = vunpack.c.h.b16 %v1759
        %v2080 = vunpack.c.h.b16 %v1835
        %v2081 = vunpack.c.h.b16 %v1895
        %v2082 = vunpack.c.h.b16 %v1971
        %v2083 = vunpack.c.h.b16 %v2031
        %v2084 = vunpack.c.l.b16 %v1707
        %v2085 = vunpack.c.l.b16 %v1760
        %v2086 = vunpack.c.l.b16 %v1843
        %v2087 = vunpack.c.l.b16 %v1896
        %v2088 = vunpack.c.l.b16 %v1979
        %v2089 = vunpack.c.l.b16 %v2032
        %v2090 = vunpack.c.h.b16 %v1707
        %v2091 = vunpack.c.h.b16 %v1760
        %v2092 = vunpack.c.h.b16 %v1843
        %v2093 = vunpack.c.h.b16 %v1896
        %v2094 = vunpack.c.h.b16 %v1979
        %v2095 = vunpack.c.h.b16 %v2032
        %v2096 = vunpack.c.l.b16 %v1715
        %v2097 = vunpack.c.l.b16 %v1761
        %v2098 = vunpack.c.l.b16 %v1851
        %v2099 = vunpack.c.l.b16 %v1897
        %v2100 = vunpack.c.l.b16 %v1987
        %v2101 = vunpack.c.l.b16 %v2033
        %v2102 = vunpack.c.h.b16 %v1715
        %v2103 = vunpack.c.h.b16 %v1761
        %v2104 = vunpack.c.h.b16 %v1851
        %v2105 = vunpack.c.h.b16 %v1897
        %v2106 = vunpack.c.h.b16 %v1987
        %v2107 = vunpack.c.h.b16 %v2033
        %v2108 = vunpack.c.l.b16 %v1723
        %v2109 = vunpack.c.l.b16 %v1762
        %v2110 = vunpack.c.l.b16 %v1859
        %v2111 = vunpack.c.l.b16 %v1898
        %v2112 = vunpack.c.l.b16 %v1995
        %v2113 = vunpack.c.l.b16 %v2034
        %v2114 = vunpack.c.h.b16 %v1723
        %v2115 = vunpack.c.h.b16 %v1762
        %v2116 = vunpack.c.h.b16 %v1859
        %v2117 = vunpack.c.h.b16 %v1898
        %v2118 = vunpack.c.h.b16 %v1995
        %v2119 = vunpack.c.h.b16 %v2034
        %v2120 = vunpack.c.l.b16 %v1731
        %v2121 = vunpack.c.l.b16 %v1763
        %v2122 = vunpack.c.l.b16 %v1867
        %v2123 = vunpack.c.l.b16 %v1899
        %v2124 = vunpack.c.l.b16 %v2003
        %v2125 = vunpack.c.l.b16 %v2035
        %v2126 = vunpack.c.h.b16 %v1731
        %v2127 = vunpack.c.h.b16 %v1763
        %v2128 = vunpack.c.h.b16 %v1867
        %v2129 = vunpack.c.h.b16 %v1899
        %v2130 = vunpack.c.h.b16 %v2003
        %v2131 = vunpack.c.h.b16 %v2035
        %v2132 = vpack.c.b16 %v2036, %v1644
        %v2133 = vpack.c.b16 %v1780, %v2037
        %v2134 = vpack.c.b16 %v2039, %v2038
        %v2135 = vpack.c.b16 %v2040, %v1916
        %v2136 = vpack.c.b16 %v2041, %v2041
        %v2137 = vpack.c.b16 %v2042, %v1645
        %v2138 = vpack.c.b16 %v1781, %v2043
        %v2139 = vpack.c.b16 %v2045, %v2044
        %v2140 = vpack.c.b16 %v2046, %v1917
        %v2141 = vpack.c.b16 %v2047, %v2047
        %v2142 = vpack.c.b16 %v2048, %v1646
        %v2143 = vpack.c.b16 %v1782, %v2049
        %v2144 = vpack.c.b16 %v2051, %v2050
        %v2145 = vpack.c.b16 %v2052, %v1918
        %v2146 = vpack.c.b16 %v2053, %v2053
        %v2147 = vpack.c.b16 %v2054, %v1647
        %v2148 = vpack.c.b16 %v1783, %v2055
        %v2149 = vpack.c.b16 %v2057, %v2056
        %v2150 = vpack.c.b16 %v2058, %v1919
        %v2151 = vpack.c.b16 %v2059, %v2059
        %v2152 = vpack.c.b16 %v2060, %v1648
        %v2153 = vpack.c.b16 %v1784, %v2061
        %v2154 = vpack.c.b16 %v2063, %v2062
        %v2155 = vpack.c.b16 %v2064, %v1920
        %v2156 = vpack.c.b16 %v2065, %v2065
        %v2157 = vpack.c.b16 %v2066, %v1649
        %v2158 = vpack.c.b16 %v1785, %v2067
        %v2159 = vpack.c.b16 %v2069, %v2068
        %v2160 = vpack.c.b16 %v2070, %v1921
        %v2161 = vpack.c.b16 %v2071, %v2071
        %v2162 = vpack.c.b16 %v2072, %v1650
        %v2163 = vpack.c.b16 %v1786, %v2073
        %v2164 = vpack.c.b16 %v2075, %v2074
        %v2165 = vpack.c.b16 %v2076, %v1922
        %v2166 = vpack.c.b16 %v2077, %v2077
        %v2167 = vpack.c.b16 %v2078, %v1651
        %v2168 = vpack.c.b16 %v1787, %v2079
        %v2169 = vpack.c.b16 %v2081, %v2080
        %v2170 = vpack.c.b16 %v2082, %v1923
        %v2171 = vpack.c.b16 %v2083, %v2083
        %v2172 = vpack.c.b16 %v2084, %v1652
        %v2173 = vpack.c.b16 %v1788, %v2085
        %v2174 = vpack.c.b16 %v2087, %v2086
        %v2175 = vpack.c.b16 %v2088, %v1924
        %v2176 = vpack.c.b16 %v2089, %v2089
        %v2177 = vpack.c.b16 %v2090, %v1653
        %v2178 = vpack.c.b16 %v1789, %v2091
        %v2179 = vpack.c.b16 %v2093, %v2092
        %v2180 = vpack.c.b16 %v2094, %v1925
        %v2181 = vpack.c.b16 %v2095, %v2095
        %v2182 = vpack.c.b16 %v2096, %v1654
        %v2183 = vpack.c.b16 %v1790, %v2097
        %v2184 = vpack.c.b16 %v2099, %v2098
        %v2185 = vpack.c.b16 %v2100, %v1926
        %v2186 = vpack.c.b16 %v2101, %v2101
        %v2187 = vpack.c.b16 %v2102, %v1655
        %v2188 = vpack.c.b16 %v1791, %v2103
        %v2189 = vpack.c.b16 %v2105, %v2104
        %v2190 = vpack.c.b16 %v2106, %v1927
        %v2191 = vpack.c.b16 %v2107, %v2107
        %v2192 = vpack.c.b16 %v2108, %v1656
        %v2193 = vpack.c.b16 %v1792, %v2109
        %v2194 = vpack.c.b16 %v2111, %v2110
        %v2195 = vpack.c.b16 %v2112, %v1928
        %v2196 = vpack.c.b16 %v2113, %v2113
        %v2197 = vpack.c.b16 %v2114, %v1657
        %v2198 = vpack.c.b16 %v1793, %v2115
        %v2199 = vpack.c.b16 %v2117, %v2116
        %v2200 = vpack.c.b16 %v2118, %v1929
        %v2201 = vpack.c.b16 %v2119, %v2119
        %v2202 = vpack.c.b16 %v2120, %v1658
        %v2203 = vpack.c.b16 %v1794, %v2121
        %v2204 = vpack.c.b16 %v2123, %v2122
        %v2205 = vpack.c.b16 %v2124, %v1930
        %v2206 = vpack.c.b16 %v2125, %v2125
        %v2207 = vpack.c.b16 %v2126, %v1659
        %v2208 = vpack.c.b16 %v1795, %v2127
        %v2209 = vpack.c.b16 %v2129, %v2128
        %v2210 = vpack.c.b16 %v2130, %v1931
        %v2211 = vpack.c.b16 %v2131, %v2131
        %vm2212 = vsmask.f32 256
        %vm2213 = vsmask.f32 4368
        %vm2214 = vmor %vm2212, %vm2213
        %v2216 = vshrl.u32 %v2132, 16
        %v2218 = vrot.slane %v2216, 7
        %v2219 = vrot.slane %v2218, 4
        %v2221 = vshrl.u32 %v2137, 16
        %v2223 = vrot.slane %v2221, 7
        %v2224 = vshll.u32 %v2137, 16
        %v2226 = vor.u32 %v2223, %v2224
        %v2227 = vsel %vm2214, %v2219, %v2226
        %v2229 = vshrl.u32 %v2133, 16
        %v2231 = vrot.slane %v2229, 7
        %v2232 = vrot.slane %v2231, 4
        %v2234 = vshrl.u32 %v2138, 16
        %v2236 = vrot.slane %v2234, 7
        %v2237 = vshll.u32 %v2138, 16
        %v2239 = vor.u32 %v2236, %v2237
        %v2240 = vsel %vm2214, %v2232, %v2239
        %v2242 = vshrl.u32 %v2134, 16
        %v2244 = vrot.slane %v2242, 7
        %v2245 = vrot.slane %v2244, 4
        %v2247 = vshrl.u32 %v2139, 16
        %v2249 = vrot.slane %v2247, 7
        %v2250 = vshll.u32 %v2139, 16
        %v2252 = vor.u32 %v2249, %v2250
        %v2253 = vsel %vm2214, %v2245, %v2252
        %v2255 = vshrl.u32 %v2135, 16
        %v2257 = vrot.slane %v2255, 7
        %v2258 = vrot.slane %v2257, 4
        %v2260 = vshrl.u32 %v2140, 16
        %v2262 = vrot.slane %v2260, 7
        %v2263 = vshll.u32 %v2140, 16
        %v2265 = vor.u32 %v2262, %v2263
        %v2266 = vsel %vm2214, %v2258, %v2265
        %v2268 = vshrl.u32 %v2136, 16
        %v2270 = vrot.slane %v2268, 7
        %v2271 = vrot.slane %v2270, 4
        %v2273 = vshrl.u32 %v2141, 16
        %v2275 = vrot.slane %v2273, 7
        %v2276 = vshll.u32 %v2141, 16
        %v2278 = vor.u32 %v2275, %v2276
        %v2279 = vsel %vm2214, %v2271, %v2278
        %v2281 = vshrl.u32 %v2142, 16
        %v2283 = vrot.slane %v2281, 7
        %v2284 = vrot.slane %v2283, 4
        %v2286 = vshrl.u32 %v2147, 16
        %v2288 = vrot.slane %v2286, 7
        %v2289 = vshll.u32 %v2147, 16
        %v2291 = vor.u32 %v2288, %v2289
        %v2292 = vsel %vm2214, %v2284, %v2291
        %v2294 = vshrl.u32 %v2143, 16
        %v2296 = vrot.slane %v2294, 7
        %v2297 = vrot.slane %v2296, 4
        %v2299 = vshrl.u32 %v2148, 16
        %v2301 = vrot.slane %v2299, 7
        %v2302 = vshll.u32 %v2148, 16
        %v2304 = vor.u32 %v2301, %v2302
        %v2305 = vsel %vm2214, %v2297, %v2304
        %v2307 = vshrl.u32 %v2144, 16
        %v2309 = vrot.slane %v2307, 7
        %v2310 = vrot.slane %v2309, 4
        %v2312 = vshrl.u32 %v2149, 16
        %v2314 = vrot.slane %v2312, 7
        %v2315 = vshll.u32 %v2149, 16
        %v2317 = vor.u32 %v2314, %v2315
        %v2318 = vsel %vm2214, %v2310, %v2317
        %v2320 = vshrl.u32 %v2145, 16
        %v2322 = vrot.slane %v2320, 7
        %v2323 = vrot.slane %v2322, 4
        %v2325 = vshrl.u32 %v2150, 16
        %v2327 = vrot.slane %v2325, 7
        %v2328 = vshll.u32 %v2150, 16
        %v2330 = vor.u32 %v2327, %v2328
        %v2331 = vsel %vm2214, %v2323, %v2330
        %v2333 = vshrl.u32 %v2146, 16
        %v2335 = vrot.slane %v2333, 7
        %v2336 = vrot.slane %v2335, 4
        %v2338 = vshrl.u32 %v2151, 16
        %v2340 = vrot.slane %v2338, 7
        %v2341 = vshll.u32 %v2151, 16
        %v2343 = vor.u32 %v2340, %v2341
        %v2344 = vsel %vm2214, %v2336, %v2343
        %v2346 = vshrl.u32 %v2152, 16
        %v2348 = vrot.slane %v2346, 7
        %v2349 = vrot.slane %v2348, 4
        %v2351 = vshrl.u32 %v2157, 16
        %v2353 = vrot.slane %v2351, 7
        %v2354 = vshll.u32 %v2157, 16
        %v2356 = vor.u32 %v2353, %v2354
        %v2357 = vsel %vm2214, %v2349, %v2356
        %v2359 = vshrl.u32 %v2153, 16
        %v2361 = vrot.slane %v2359, 7
        %v2362 = vrot.slane %v2361, 4
        %v2364 = vshrl.u32 %v2158, 16
        %v2366 = vrot.slane %v2364, 7
        %v2367 = vshll.u32 %v2158, 16
        %v2369 = vor.u32 %v2366, %v2367
        %v2370 = vsel %vm2214, %v2362, %v2369
        %v2372 = vshrl.u32 %v2154, 16
        %v2374 = vrot.slane %v2372, 7
        %v2375 = vrot.slane %v2374, 4
        %v2377 = vshrl.u32 %v2159, 16
        %v2379 = vrot.slane %v2377, 7
        %v2380 = vshll.u32 %v2159, 16
        %v2382 = vor.u32 %v2379, %v2380
        %v2383 = vsel %vm2214, %v2375, %v2382
        %v2385 = vshrl.u32 %v2155, 16
        %v2387 = vrot.slane %v2385, 7
        %v2388 = vrot.slane %v2387, 4
        %v2390 = vshrl.u32 %v2160, 16
        %v2392 = vrot.slane %v2390, 7
        %v2393 = vshll.u32 %v2160, 16
        %v2395 = vor.u32 %v2392, %v2393
        %v2396 = vsel %vm2214, %v2388, %v2395
        %v2398 = vshrl.u32 %v2156, 16
        %v2400 = vrot.slane %v2398, 7
        %v2401 = vrot.slane %v2400, 4
        %v2403 = vshrl.u32 %v2161, 16
        %v2405 = vrot.slane %v2403, 7
        %v2406 = vshll.u32 %v2161, 16
        %v2408 = vor.u32 %v2405, %v2406
        %v2409 = vsel %vm2214, %v2401, %v2408
        %v2411 = vshrl.u32 %v2162, 16
        %v2413 = vrot.slane %v2411, 7
        %v2414 = vrot.slane %v2413, 4
        %v2416 = vshrl.u32 %v2167, 16
        %v2418 = vrot.slane %v2416, 7
        %v2419 = vshll.u32 %v2167, 16
        %v2421 = vor.u32 %v2418, %v2419
        %v2422 = vsel %vm2214, %v2414, %v2421
        %v2424 = vshrl.u32 %v2163, 16
        %v2426 = vrot.slane %v2424, 7
        %v2427 = vrot.slane %v2426, 4
        %v2429 = vshrl.u32 %v2168, 16
        %v2431 = vrot.slane %v2429, 7
        %v2432 = vshll.u32 %v2168, 16
        %v2434 = vor.u32 %v2431, %v2432
        %v2435 = vsel %vm2214, %v2427, %v2434
        %v2437 = vshrl.u32 %v2164, 16
        %v2439 = vrot.slane %v2437, 7
        %v2440 = vrot.slane %v2439, 4
        %v2442 = vshrl.u32 %v2169, 16
        %v2444 = vrot.slane %v2442, 7
        %v2445 = vshll.u32 %v2169, 16
        %v2447 = vor.u32 %v2444, %v2445
        %v2448 = vsel %vm2214, %v2440, %v2447
        %v2450 = vshrl.u32 %v2165, 16
        %v2452 = vrot.slane %v2450, 7
        %v2453 = vrot.slane %v2452, 4
        %v2455 = vshrl.u32 %v2170, 16
        %v2457 = vrot.slane %v2455, 7
        %v2458 = vshll.u32 %v2170, 16
        %v2460 = vor.u32 %v2457, %v2458
        %v2461 = vsel %vm2214, %v2453, %v2460
        %v2463 = vshrl.u32 %v2166, 16
        %v2465 = vrot.slane %v2463, 7
        %v2466 = vrot.slane %v2465, 4
        %v2468 = vshrl.u32 %v2171, 16
        %v2470 = vrot.slane %v2468, 7
        %v2471 = vshll.u32 %v2171, 16
        %v2473 = vor.u32 %v2470, %v2471
        %v2474 = vsel %vm2214, %v2466, %v2473
        %v2476 = vshrl.u32 %v2172, 16
        %v2478 = vrot.slane %v2476, 7
        %v2479 = vrot.slane %v2478, 4
        %v2481 = vshrl.u32 %v2177, 16
        %v2483 = vrot.slane %v2481, 7
        %v2484 = vshll.u32 %v2177, 16
        %v2486 = vor.u32 %v2483, %v2484
        %v2487 = vsel %vm2214, %v2479, %v2486
        %v2489 = vshrl.u32 %v2173, 16
        %v2491 = vrot.slane %v2489, 7
        %v2492 = vrot.slane %v2491, 4
        %v2494 = vshrl.u32 %v2178, 16
        %v2496 = vrot.slane %v2494, 7
        %v2497 = vshll.u32 %v2178, 16
        %v2499 = vor.u32 %v2496, %v2497
        %v2500 = vsel %vm2214, %v2492, %v2499
        %v2502 = vshrl.u32 %v2174, 16
        %v2504 = vrot.slane %v2502, 7
        %v2505 = vrot.slane %v2504, 4
        %v2507 = vshrl.u32 %v2179, 16
        %v2509 = vrot.slane %v2507, 7
        %v2510 = vshll.u32 %v2179, 16
        %v2512 = vor.u32 %v2509, %v2510
        %v2513 = vsel %vm2214, %v2505, %v2512
        %v2515 = vshrl.u32 %v2175, 16
        %v2517 = vrot.slane %v2515, 7
        %v2518 = vrot.slane %v2517, 4
        %v2520 = vshrl.u32 %v2180, 16
        %v2522 = vrot.slane %v2520, 7
        %v2523 = vshll.u32 %v2180, 16
        %v2525 = vor.u32 %v2522, %v2523
        %v2526 = vsel %vm2214, %v2518, %v2525
        %v2528 = vshrl.u32 %v2176, 16
        %v2530 = vrot.slane %v2528, 7
        %v2531 = vrot.slane %v2530, 4
        %v2533 = vshrl.u32 %v2181, 16
        %v2535 = vrot.slane %v2533, 7
        %v2536 = vshll.u32 %v2181, 16
        %v2538 = vor.u32 %v2535, %v2536
        %v2539 = vsel %vm2214, %v2531, %v2538
        %v2541 = vshrl.u32 %v2182, 16
        %v2543 = vrot.slane %v2541, 7
        %v2544 = vrot.slane %v2543, 4
        %v2546 = vshrl.u32 %v2187, 16
        %v2548 = vrot.slane %v2546, 7
        %v2549 = vshll.u32 %v2187, 16
        %v2551 = vor.u32 %v2548, %v2549
        %v2552 = vsel %vm2214, %v2544, %v2551
        %v2554 = vshrl.u32 %v2183, 16
        %v2556 = vrot.slane %v2554, 7
        %v2557 = vrot.slane %v2556, 4
        %v2559 = vshrl.u32 %v2188, 16
        %v2561 = vrot.slane %v2559, 7
        %v2562 = vshll.u32 %v2188, 16
        %v2564 = vor.u32 %v2561, %v2562
        %v2565 = vsel %vm2214, %v2557, %v2564
        %v2567 = vshrl.u32 %v2184, 16
        %v2569 = vrot.slane %v2567, 7
        %v2570 = vrot.slane %v2569, 4
        %v2572 = vshrl.u32 %v2189, 16
        %v2574 = vrot.slane %v2572, 7
        %v2575 = vshll.u32 %v2189, 16
        %v2577 = vor.u32 %v2574, %v2575
        %v2578 = vsel %vm2214, %v2570, %v2577
        %v2580 = vshrl.u32 %v2185, 16
        %v2582 = vrot.slane %v2580, 7
        %v2583 = vrot.slane %v2582, 4
        %v2585 = vshrl.u32 %v2190, 16
        %v2587 = vrot.slane %v2585, 7
        %v2588 = vshll.u32 %v2190, 16
        %v2590 = vor.u32 %v2587, %v2588
        %v2591 = vsel %vm2214, %v2583, %v2590
        %v2593 = vshrl.u32 %v2186, 16
        %v2595 = vrot.slane %v2593, 7
        %v2596 = vrot.slane %v2595, 4
        %v2598 = vshrl.u32 %v2191, 16
        %v2600 = vrot.slane %v2598, 7
        %v2601 = vshll.u32 %v2191, 16
        %v2603 = vor.u32 %v2600, %v2601
        %v2604 = vsel %vm2214, %v2596, %v2603
        %v2606 = vshrl.u32 %v2192, 16
        %v2608 = vrot.slane %v2606, 7
        %v2609 = vrot.slane %v2608, 4
        %v2611 = vshrl.u32 %v2197, 16
        %v2613 = vrot.slane %v2611, 7
        %v2614 = vshll.u32 %v2197, 16
        %v2616 = vor.u32 %v2613, %v2614
        %v2617 = vsel %vm2214, %v2609, %v2616
        %v2619 = vshrl.u32 %v2193, 16
        %v2621 = vrot.slane %v2619, 7
        %v2622 = vrot.slane %v2621, 4
        %v2624 = vshrl.u32 %v2198, 16
        %v2626 = vrot.slane %v2624, 7
        %v2627 = vshll.u32 %v2198, 16
        %v2629 = vor.u32 %v2626, %v2627
        %v2630 = vsel %vm2214, %v2622, %v2629
        %v2632 = vshrl.u32 %v2194, 16
        %v2634 = vrot.slane %v2632, 7
        %v2635 = vrot.slane %v2634, 4
        %v2637 = vshrl.u32 %v2199, 16
        %v2639 = vrot.slane %v2637, 7
        %v2640 = vshll.u32 %v2199, 16
        %v2642 = vor.u32 %v2639, %v2640
        %v2643 = vsel %vm2214, %v2635, %v2642
        %v2645 = vshrl.u32 %v2195, 16
        %v2647 = vrot.slane %v2645, 7
        %v2648 = vrot.slane %v2647, 4
        %v2650 = vshrl.u32 %v2200, 16
        %v2652 = vrot.slane %v2650, 7
        %v2653 = vshll.u32 %v2200, 16
        %v2655 = vor.u32 %v2652, %v2653
        %v2656 = vsel %vm2214, %v2648, %v2655
        %v2658 = vshrl.u32 %v2196, 16
        %v2660 = vrot.slane %v2658, 7
        %v2661 = vrot.slane %v2660, 4
        %v2663 = vshrl.u32 %v2201, 16
        %v2665 = vrot.slane %v2663, 7
        %v2666 = vshll.u32 %v2201, 16
        %v2668 = vor.u32 %v2665, %v2666
        %v2669 = vsel %vm2214, %v2661, %v2668
        %v2671 = vshrl.u32 %v2202, 16
        %v2673 = vrot.slane %v2671, 7
        %v2674 = vrot.slane %v2673, 4
        %v2676 = vshrl.u32 %v2207, 16
        %v2678 = vrot.slane %v2676, 7
        %v2679 = vshll.u32 %v2207, 16
        %v2681 = vor.u32 %v2678, %v2679
        %v2682 = vsel %vm2214, %v2674, %v2681
        %v2684 = vshrl.u32 %v2203, 16
        %v2686 = vrot.slane %v2684, 7
        %v2687 = vrot.slane %v2686, 4
        %v2689 = vshrl.u32 %v2208, 16
        %v2691 = vrot.slane %v2689, 7
        %v2692 = vshll.u32 %v2208, 16
        %v2694 = vor.u32 %v2691, %v2692
        %v2695 = vsel %vm2214, %v2687, %v2694
        %v2697 = vshrl.u32 %v2204, 16
        %v2699 = vrot.slane %v2697, 7
        %v2700 = vrot.slane %v2699, 4
        %v2702 = vshrl.u32 %v2209, 16
        %v2704 = vrot.slane %v2702, 7
        %v2705 = vshll.u32 %v2209, 16
        %v2707 = vor.u32 %v2704, %v2705
        %v2708 = vsel %vm2214, %v2700, %v2707
        %v2710 = vshrl.u32 %v2205, 16
        %v2712 = vrot.slane %v2710, 7
        %v2713 = vrot.slane %v2712, 4
        %v2715 = vshrl.u32 %v2210, 16
        %v2717 = vrot.slane %v2715, 7
        %v2718 = vshll.u32 %v2210, 16
        %v2720 = vor.u32 %v2717, %v2718
        %v2721 = vsel %vm2214, %v2713, %v2720
        %v2723 = vshrl.u32 %v2206, 16
        %v2725 = vrot.slane %v2723, 7
        %v2726 = vrot.slane %v2725, 4
        %v2728 = vshrl.u32 %v2211, 16
        %v2730 = vrot.slane %v2728, 7
        %v2731 = vshll.u32 %v2211, 16
        %v2733 = vor.u32 %v2730, %v2731
        %v2734 = vsel %vm2214, %v2726, %v2733
        %v2735 = vld [vmem:[#allocation9] sm:$0xf]
        %v2736 = vld [vmem:[#allocation9 + $0x4] sm:$0xf]
        %v2737 = vld [vmem:[#allocation9 + $0x8] sm:$0xf]
        %v2738 = vld [vmem:[#allocation9 + $0xc] sm:$0xf]
        %v2739 = vld [vmem:[#allocation9 + $0x10] sm:$0xf]
        %v2740 = vld [vmem:[#allocation9 + $0x14] sm:$0xf]
        %v2741 = vld [vmem:[#allocation9 + $0x18] sm:$0xf]
        %v2742 = vld [vmem:[#allocation9 + $0x1c] sm:$0xf]
        %v2743 = vld [vmem:[#allocation9 + $0x20] sm:$0xf]
        %v2744 = vld [vmem:[#allocation9 + $0x24] sm:$0xf]
        %v2745 = vld [vmem:[#allocation9 + $0x28] sm:$0xf]
        %v2746 = vld [vmem:[#allocation9 + $0x2c] sm:$0xf]
        %v2747 = vld [vmem:[#allocation9 + $0x30] sm:$0xf]
        %v2748 = vld [vmem:[#allocation9 + $0x34] sm:$0xf]
        %v2749 = vld [vmem:[#allocation9 + $0x38] sm:$0xf]
        %v2750 = vld [vmem:[#allocation9 + $0x3c] sm:$0xf]
        %v2751 = vld [vmem:[#allocation9 + $0x40] sm:$0xf]
        %v2752 = vld [vmem:[#allocation9 + $0x44] sm:$0xf]
        %v2753 = vld [vmem:[#allocation9 + $0x48] sm:$0xf]
        %v2754 = vld [vmem:[#allocation9 + $0x4c] sm:$0xf]
        %v2755 = vld [vmem:[#allocation9 + $0x50] sm:$0xf]
        %v2756 = vld [vmem:[#allocation9 + $0x54] sm:$0xf]
        %v2757 = vld [vmem:[#allocation9 + $0x58] sm:$0xf]
        %v2758 = vld [vmem:[#allocation9 + $0x5c] sm:$0xf]
        %v2759 = vld [vmem:[#allocation9 + $0x60] sm:$0xf]
        %v2760 = vld [vmem:[#allocation9 + $0x64] sm:$0xf]
        %v2761 = vld [vmem:[#allocation9 + $0x68] sm:$0xf]
        %v2762 = vld [vmem:[#allocation9 + $0x6c] sm:$0xf]
        %v2763 = vld [vmem:[#allocation9 + $0x70] sm:$0xf]
        %v2764 = vld [vmem:[#allocation9 + $0x74] sm:$0xf]
        %v2765 = vld [vmem:[#allocation9 + $0x78] sm:$0xf]
        %v2766 = vld [vmem:[#allocation9 + $0x7c] sm:$0xf]
        %v2767 = vld [vmem:[#allocation9 + $0x80] sm:$0xf]
        %v2768 = vld [vmem:[#allocation9 + $0x84] sm:$0xf]
        %v2769 = vld [vmem:[#allocation9 + $0x88] sm:$0xf]
        %v2770 = vld [vmem:[#allocation9 + $0x8c] sm:$0xf]
        %v2771 = vld [vmem:[#allocation9 + $0x90] sm:$0xf]
        %v2772 = vld [vmem:[#allocation9 + $0x94] sm:$0xf]
        %v2773 = vld [vmem:[#allocation9 + $0x98] sm:$0xf]
        %v2774 = vld [vmem:[#allocation9 + $0x9c] sm:$0xf]
        %v2775 = vld [vmem:[#allocation9 + $0xa0] sm:$0xf]
        %v2776 = vld [vmem:[#allocation9 + $0xa4] sm:$0xf]
        %v2777 = vld [vmem:[#allocation9 + $0xa8] sm:$0xf]
        %v2778 = vld [vmem:[#allocation9 + $0xac] sm:$0xf]
        %v2779 = vld [vmem:[#allocation9 + $0xb0] sm:$0xf]
        %v2780 = vld [vmem:[#allocation9 + $0xb4] sm:$0xf]
        %v2781 = vld [vmem:[#allocation9 + $0xb8] sm:$0xf]
        %v2782 = vld [vmem:[#allocation9 + $0xbc] sm:$0xf]
        %v2783 = vld [vmem:[#allocation9 + $0xc0] sm:$0xf]
        %v2784 = vld [vmem:[#allocation9 + $0xc4] sm:$0xf]
        %v2785 = vld [vmem:[#allocation9 + $0xc8] sm:$0xf]
        %v2786 = vld [vmem:[#allocation9 + $0xcc] sm:$0xf]
        %v2787 = vld [vmem:[#allocation9 + $0xd0] sm:$0xf]
        %v2788 = vld [vmem:[#allocation9 + $0xd4] sm:$0xf]
        %v2789 = vld [vmem:[#allocation9 + $0xd8] sm:$0xf]
        %v2790 = vld [vmem:[#allocation9 + $0xdc] sm:$0xf]
        %v2791 = vld [vmem:[#allocation9 + $0xe0] sm:$0xf]
        %v2792 = vld [vmem:[#allocation9 + $0xe4] sm:$0xf]
        %v2793 = vld [vmem:[#allocation9 + $0xe8] sm:$0xf]
        %v2794 = vld [vmem:[#allocation9 + $0xec] sm:$0xf]
        %v2795 = vld [vmem:[#allocation9 + $0xf0] sm:$0xf]
        %v2796 = vld [vmem:[#allocation9 + $0xf4] sm:$0xf]
        %v2797 = vld [vmem:[#allocation9 + $0xf8] sm:$0xf]
        %v2798 = vld [vmem:[#allocation9 + $0xfc] sm:$0xf]
        %v2799 = vld [vmem:[#allocation9 + $0x100] sm:$0xf]
        %v2800 = vld [vmem:[#allocation9 + $0x104] sm:$0xf]
        %v2801 = vld [vmem:[#allocation9 + $0x108] sm:$0xf]
        %v2802 = vld [vmem:[#allocation9 + $0x10c] sm:$0xf]
        %v2803 = vld [vmem:[#allocation9 + $0x110] sm:$0xf]
        %v2804 = vld [vmem:[#allocation9 + $0x114] sm:$0xf]
        %v2805 = vld [vmem:[#allocation9 + $0x118] sm:$0xf]
        %v2806 = vld [vmem:[#allocation9 + $0x11c] sm:$0xf]
        %v2807 = vld [vmem:[#allocation9 + $0x120] sm:$0xf]
        %v2808 = vld [vmem:[#allocation9 + $0x124] sm:$0xf]
        %v2809 = vld [vmem:[#allocation9 + $0x128] sm:$0xf]
        %v2810 = vld [vmem:[#allocation9 + $0x12c] sm:$0xf]
        %v2811 = vld [vmem:[#allocation9 + $0x130] sm:$0xf]
        %v2812 = vld [vmem:[#allocation9 + $0x134] sm:$0xf]
        %v2813 = vld [vmem:[#allocation9 + $0x138] sm:$0xf]
        %v2814 = vld [vmem:[#allocation9 + $0x13c] sm:$0xf]
        %v2815 = vld [vmem:[#allocation9 + $0x140] sm:$0xf]
        %v2816 = vld [vmem:[#allocation9 + $0x144] sm:$0xf]
        %v2817 = vld [vmem:[#allocation9 + $0x148] sm:$0xf]
        %v2818 = vld [vmem:[#allocation9 + $0x14c] sm:$0xf]
        %v2819 = vld [vmem:[#allocation9 + $0x150] sm:$0xf]
        %v2820 = vld [vmem:[#allocation9 + $0x154] sm:$0xf]
        %v2821 = vld [vmem:[#allocation9 + $0x158] sm:$0xf]
        %v2822 = vld [vmem:[#allocation9 + $0x15c] sm:$0xf]
        %v2823 = vld [vmem:[#allocation9 + $0x160] sm:$0xf]
        %v2824 = vld [vmem:[#allocation9 + $0x164] sm:$0xf]
        %v2825 = vld [vmem:[#allocation9 + $0x168] sm:$0xf]
        %v2826 = vld [vmem:[#allocation9 + $0x16c] sm:$0xf]
        %v2827 = vld [vmem:[#allocation9 + $0x170] sm:$0xf]
        %v2828 = vld [vmem:[#allocation9 + $0x174] sm:$0xf]
        %v2829 = vld [vmem:[#allocation9 + $0x178] sm:$0xf]
        %v2830 = vld [vmem:[#allocation9 + $0x17c] sm:$0xf]
        %v2831 = vld [vmem:[#allocation9 + $0x180] sm:$0xf]
        %v2832 = vld [vmem:[#allocation9 + $0x184] sm:$0xf]
        %v2833 = vld [vmem:[#allocation9 + $0x188] sm:$0xf]
        %v2834 = vld [vmem:[#allocation9 + $0x18c] sm:$0xf]
        %v2835 = vld [vmem:[#allocation9 + $0x190] sm:$0xf]
        %v2836 = vld [vmem:[#allocation9 + $0x194] sm:$0xf]
        %v2837 = vld [vmem:[#allocation9 + $0x198] sm:$0xf]
        %v2838 = vld [vmem:[#allocation9 + $0x19c] sm:$0xf]
        %v2839 = vld [vmem:[#allocation9 + $0x1a0] sm:$0xf]
        %v2840 = vld [vmem:[#allocation9 + $0x1a4] sm:$0xf]
        %v2841 = vld [vmem:[#allocation9 + $0x1a8] sm:$0xf]
        %v2842 = vld [vmem:[#allocation9 + $0x1ac] sm:$0xf]
        %v2843 = vld [vmem:[#allocation9 + $0x1b0] sm:$0xf]
        %v2844 = vld [vmem:[#allocation9 + $0x1b4] sm:$0xf]
        %v2845 = vld [vmem:[#allocation9 + $0x1b8] sm:$0xf]
        %v2846 = vld [vmem:[#allocation9 + $0x1bc] sm:$0xf]
        %v2847 = vld [vmem:[#allocation9 + $0x1c0] sm:$0xf]
        %v2848 = vld [vmem:[#allocation9 + $0x1c4] sm:$0xf]
        %v2849 = vld [vmem:[#allocation9 + $0x1c8] sm:$0xf]
        %v2850 = vld [vmem:[#allocation9 + $0x1cc] sm:$0xf]
        %v2851 = vld [vmem:[#allocation9 + $0x1d0] sm:$0xf]
        %v2852 = vld [vmem:[#allocation9 + $0x1d4] sm:$0xf]
        %v2853 = vld [vmem:[#allocation9 + $0x1d8] sm:$0xf]
        %v2854 = vld [vmem:[#allocation9 + $0x1dc] sm:$0xf]
        %v2855 = vld [vmem:[#allocation9 + $0x1e0] sm:$0xf]
        %v2856 = vld [vmem:[#allocation9 + $0x1e4] sm:$0xf]
        %v2857 = vld [vmem:[#allocation9 + $0x1e8] sm:$0xf]
        %v2858 = vld [vmem:[#allocation9 + $0x1ec] sm:$0xf]
        %v2859 = vld [vmem:[#allocation9 + $0x1f0] sm:$0xf]
        %v2860 = vld [vmem:[#allocation9 + $0x1f4] sm:$0xf]
        %v2861 = vld [vmem:[#allocation9 + $0x1f8] sm:$0xf]
        %v2862 = vld [vmem:[#allocation9 + $0x1fc] sm:$0xf]
        %v2863 = vld [vmem:[#allocation9 + $0x200] sm:$0xf]
        %v2864 = vld [vmem:[#allocation9 + $0x204] sm:$0xf]
        %v2865 = vld [vmem:[#allocation9 + $0x208] sm:$0xf]
        %v2866 = vld [vmem:[#allocation9 + $0x20c] sm:$0xf]
        %v2867 = vld [vmem:[#allocation9 + $0x210] sm:$0xf]
        %v2868 = vld [vmem:[#allocation9 + $0x214] sm:$0xf]
        %v2869 = vld [vmem:[#allocation9 + $0x218] sm:$0xf]
        %v2870 = vld [vmem:[#allocation9 + $0x21c] sm:$0xf]
        %v2871 = vld [vmem:[#allocation9 + $0x220] sm:$0xf]
        %v2872 = vld [vmem:[#allocation9 + $0x224] sm:$0xf]
        %v2873 = vld [vmem:[#allocation9 + $0x228] sm:$0xf]
        %v2874 = vld [vmem:[#allocation9 + $0x22c] sm:$0xf]
        %v2875 = vld [vmem:[#allocation9 + $0x230] sm:$0xf]
        %v2876 = vld [vmem:[#allocation9 + $0x234] sm:$0xf]
        %v2877 = vld [vmem:[#allocation9 + $0x238] sm:$0xf]
        %v2878 = vld [vmem:[#allocation9 + $0x23c] sm:$0xf]
        %v2879 = vunpack.c.l.b16 %v2227
        %v2880 = vunpack.c.h.b16 %v2227
        %v2881 = vunpack.c.l.b16 %v2240
        %v2882 = vunpack.c.h.b16 %v2240
        %v2883 = vunpack.c.l.b16 %v2253
        %v2884 = vunpack.c.h.b16 %v2253
        %v2885 = vunpack.c.l.b16 %v2266
        %v2886 = vunpack.c.h.b16 %v2266
        %v2887 = vunpack.c.l.b16 %v2279
        %v2888 = vunpack.c.l.b16 %v2292
        %v2889 = vunpack.c.h.b16 %v2292
        %v2890 = vunpack.c.l.b16 %v2305
        %v2891 = vunpack.c.h.b16 %v2305
        %v2892 = vunpack.c.l.b16 %v2318
        %v2893 = vunpack.c.h.b16 %v2318
        %v2894 = vunpack.c.l.b16 %v2331
        %v2895 = vunpack.c.h.b16 %v2331
        %v2896 = vunpack.c.l.b16 %v2344
        %v2897 = vunpack.c.l.b16 %v2357
        %v2898 = vunpack.c.h.b16 %v2357
        %v2899 = vunpack.c.l.b16 %v2370
        %v2900 = vunpack.c.h.b16 %v2370
        %v2901 = vunpack.c.l.b16 %v2383
        %v2902 = vunpack.c.h.b16 %v2383
        %v2903 = vunpack.c.l.b16 %v2396
        %v2904 = vunpack.c.h.b16 %v2396
        %v2905 = vunpack.c.l.b16 %v2409
        %v2906 = vunpack.c.l.b16 %v2422
        %v2907 = vunpack.c.h.b16 %v2422
        %v2908 = vunpack.c.l.b16 %v2435
        %v2909 = vunpack.c.h.b16 %v2435
        %v2910 = vunpack.c.l.b16 %v2448
        %v2911 = vunpack.c.h.b16 %v2448
        %v2912 = vunpack.c.l.b16 %v2461
        %v2913 = vunpack.c.h.b16 %v2461
        %v2914 = vunpack.c.l.b16 %v2474
        %v2915 = vunpack.c.l.b16 %v2487
        %v2916 = vunpack.c.h.b16 %v2487
        %v2917 = vunpack.c.l.b16 %v2500
        %v2918 = vunpack.c.h.b16 %v2500
        %v2919 = vunpack.c.l.b16 %v2513
        %v2920 = vunpack.c.h.b16 %v2513
        %v2921 = vunpack.c.l.b16 %v2526
        %v2922 = vunpack.c.h.b16 %v2526
        %v2923 = vunpack.c.l.b16 %v2539
        %v2924 = vunpack.c.l.b16 %v2552
        %v2925 = vunpack.c.h.b16 %v2552
        %v2926 = vunpack.c.l.b16 %v2565
        %v2927 = vunpack.c.h.b16 %v2565
        %v2928 = vunpack.c.l.b16 %v2578
        %v2929 = vunpack.c.h.b16 %v2578
        %v2930 = vunpack.c.l.b16 %v2591
        %v2931 = vunpack.c.h.b16 %v2591
        %v2932 = vunpack.c.l.b16 %v2604
        %v2933 = vunpack.c.l.b16 %v2617
        %v2934 = vunpack.c.h.b16 %v2617
        %v2935 = vunpack.c.l.b16 %v2630
        %v2936 = vunpack.c.h.b16 %v2630
        %v2937 = vunpack.c.l.b16 %v2643
        %v2938 = vunpack.c.h.b16 %v2643
        %v2939 = vunpack.c.l.b16 %v2656
        %v2940 = vunpack.c.h.b16 %v2656
        %v2941 = vunpack.c.l.b16 %v2669
        %v2942 = vunpack.c.l.b16 %v2682
        %v2943 = vunpack.c.h.b16 %v2682
        %v2944 = vunpack.c.l.b16 %v2695
        %v2945 = vunpack.c.h.b16 %v2695
        %v2946 = vunpack.c.l.b16 %v2708
        %v2947 = vunpack.c.h.b16 %v2708
        %v2948 = vunpack.c.l.b16 %v2721
        %v2949 = vunpack.c.h.b16 %v2721
        %v2950 = vunpack.c.l.b16 %v2734
        %v2951 = vpack.c.b16 %v2888, %v2879
        %v2952 = vpack.c.b16 %v2889, %v2880
        %v2953 = vpack.c.b16 %v2890, %v2881
        %v2954 = vpack.c.b16 %v2891, %v2882
        %v2955 = vpack.c.b16 %v2892, %v2883
        %v2956 = vpack.c.b16 %v2893, %v2884
        %v2957 = vpack.c.b16 %v2894, %v2885
        %v2958 = vpack.c.b16 %v2895, %v2886
        %v2959 = vpack.c.b16 %v2896, %v2887
        %v2960 = vpack.c.b16 %v2906, %v2897
        %v2961 = vpack.c.b16 %v2907, %v2898
        %v2962 = vpack.c.b16 %v2908, %v2899
        %v2963 = vpack.c.b16 %v2909, %v2900
        %v2964 = vpack.c.b16 %v2910, %v2901
        %v2965 = vpack.c.b16 %v2911, %v2902
        %v2966 = vpack.c.b16 %v2912, %v2903
        %v2967 = vpack.c.b16 %v2913, %v2904
        %v2968 = vpack.c.b16 %v2914, %v2905
        %v2969 = vpack.c.b16 %v2924, %v2915
        %v2970 = vpack.c.b16 %v2925, %v2916
        %v2971 = vpack.c.b16 %v2926, %v2917
        %v2972 = vpack.c.b16 %v2927, %v2918
        %v2973 = vpack.c.b16 %v2928, %v2919
        %v2974 = vpack.c.b16 %v2929, %v2920
        %v2975 = vpack.c.b16 %v2930, %v2921
        %v2976 = vpack.c.b16 %v2931, %v2922
        %v2977 = vpack.c.b16 %v2932, %v2923
        %v2978 = vpack.c.b16 %v2942, %v2933
        %v2979 = vpack.c.b16 %v2943, %v2934
        %v2980 = vpack.c.b16 %v2944, %v2935
        %v2981 = vpack.c.b16 %v2945, %v2936
        %v2982 = vpack.c.b16 %v2946, %v2937
        %v2983 = vpack.c.b16 %v2947, %v2938
        %v2984 = vpack.c.b16 %v2948, %v2939
        %v2985 = vpack.c.b16 %v2949, %v2940
        %v2986 = vpack.c.b16 %v2950, %v2941
        %v3167 = vunpack.c.l.b16 %v2735
        %v3168 = vunpack.c.l.b16 %v2736
        %v3169 = vunpack.c.l.b16 %v2737
        %v3170 = vunpack.c.l.b16 %v2738
        %v3171 = vunpack.c.l.b16 %v2739
        %v3172 = vunpack.c.l.b16 %v2740
        %v3173 = vunpack.c.l.b16 %v2741
        %v3174 = vunpack.c.l.b16 %v2742
        %v3175 = vunpack.c.l.b16 %v2743
        %v3176 = vunpack.c.l.b16 %v2744
        %v3177 = vunpack.c.l.b16 %v2745
        %v3178 = vunpack.c.l.b16 %v2746
        %v3179 = vunpack.c.l.b16 %v2747
        %v3180 = vunpack.c.l.b16 %v2748
        %v3181 = vunpack.c.l.b16 %v2749
        %v3182 = vunpack.c.l.b16 %v2750
        %v3183 = vunpack.c.l.b16 %v2751
        %v3184 = vunpack.c.l.b16 %v2752
        %v3185 = vunpack.c.l.b16 %v2753
        %v3186 = vunpack.c.l.b16 %v2754
        %v3187 = vunpack.c.l.b16 %v2755
        %v3188 = vunpack.c.l.b16 %v2756
        %v3189 = vunpack.c.l.b16 %v2757
        %v3190 = vunpack.c.l.b16 %v2758
        %v3191 = vunpack.c.l.b16 %v2759
        %v3192 = vunpack.c.l.b16 %v2760
        %v3193 = vunpack.c.l.b16 %v2761
        %v3194 = vunpack.c.l.b16 %v2762
        %v3195 = vunpack.c.l.b16 %v2763
        %v3196 = vunpack.c.l.b16 %v2764
        %v3197 = vunpack.c.l.b16 %v2765
        %v3198 = vunpack.c.l.b16 %v2766
        %v3199 = vunpack.c.l.b16 %v2767
        %v3200 = vunpack.c.l.b16 %v2768
        %v3201 = vunpack.c.l.b16 %v2769
        %v3202 = vunpack.c.l.b16 %v2770
        %v3203 = vunpack.c.l.b16 %v2771
        %v3204 = vunpack.c.l.b16 %v2772
        %v3205 = vunpack.c.l.b16 %v2773
        %v3206 = vunpack.c.l.b16 %v2774
        %v3207 = vunpack.c.l.b16 %v2775
        %v3208 = vunpack.c.l.b16 %v2776
        %v3209 = vunpack.c.l.b16 %v2777
        %v3210 = vunpack.c.l.b16 %v2778
        %v3211 = vunpack.c.l.b16 %v2779
        %v3212 = vunpack.c.l.b16 %v2780
        %v3213 = vunpack.c.l.b16 %v2781
        %v3214 = vunpack.c.l.b16 %v2782
        %v3215 = vunpack.c.l.b16 %v2783
        %v3216 = vunpack.c.l.b16 %v2784
        %v3217 = vunpack.c.l.b16 %v2785
        %v3218 = vunpack.c.l.b16 %v2786
        %v3219 = vunpack.c.l.b16 %v2787
        %v3220 = vunpack.c.l.b16 %v2788
        %v3221 = vunpack.c.l.b16 %v2789
        %v3222 = vunpack.c.l.b16 %v2790
        %v3223 = vunpack.c.l.b16 %v2791
        %v3224 = vunpack.c.l.b16 %v2792
        %v3225 = vunpack.c.l.b16 %v2793
        %v3226 = vunpack.c.l.b16 %v2794
        %v3227 = vunpack.c.l.b16 %v2795
        %v3228 = vunpack.c.l.b16 %v2796
        %v3229 = vunpack.c.l.b16 %v2797
        %v3230 = vunpack.c.l.b16 %v2798
        %v3231 = vunpack.c.l.b16 %v2799
        %v3232 = vunpack.c.l.b16 %v2800
        %v3233 = vunpack.c.l.b16 %v2801
        %v3234 = vunpack.c.l.b16 %v2802
        %v3235 = vunpack.c.l.b16 %v2803
        %v3236 = vunpack.c.l.b16 %v2804
        %v3237 = vunpack.c.l.b16 %v2805
        %v3238 = vunpack.c.l.b16 %v2806
        %v3239 = vunpack.c.l.b16 %v2807
        %v3240 = vunpack.c.l.b16 %v2808
        %v3241 = vunpack.c.l.b16 %v2809
        %v3242 = vunpack.c.l.b16 %v2810
        %v3243 = vunpack.c.l.b16 %v2811
        %v3244 = vunpack.c.l.b16 %v2812
        %v3245 = vunpack.c.l.b16 %v2813
        %v3246 = vunpack.c.l.b16 %v2814
        %v3247 = vunpack.c.l.b16 %v2815
        %v3248 = vunpack.c.l.b16 %v2816
        %v3249 = vunpack.c.l.b16 %v2817
        %v3250 = vunpack.c.l.b16 %v2818
        %v3251 = vunpack.c.l.b16 %v2819
        %v3252 = vunpack.c.l.b16 %v2820
        %v3253 = vunpack.c.l.b16 %v2821
        %v3254 = vunpack.c.l.b16 %v2822
        %v3255 = vunpack.c.l.b16 %v2823
        %v3256 = vunpack.c.l.b16 %v2824
        %v3257 = vunpack.c.l.b16 %v2825
        %v3258 = vunpack.c.l.b16 %v2826
        %v3259 = vunpack.c.l.b16 %v2827
        %v3260 = vunpack.c.l.b16 %v2828
        %v3261 = vunpack.c.l.b16 %v2829
        %v3262 = vunpack.c.l.b16 %v2830
        %v3263 = vunpack.c.l.b16 %v2831
        %v3264 = vunpack.c.l.b16 %v2832
        %v3265 = vunpack.c.l.b16 %v2833
        %v3266 = vunpack.c.l.b16 %v2834
        %v3267 = vunpack.c.l.b16 %v2835
        %v3268 = vunpack.c.l.b16 %v2836
        %v3269 = vunpack.c.l.b16 %v2837
        %v3270 = vunpack.c.l.b16 %v2838
        %v3271 = vunpack.c.l.b16 %v2839
        %v3272 = vunpack.c.l.b16 %v2840
        %v3273 = vunpack.c.l.b16 %v2841
        %v3274 = vunpack.c.l.b16 %v2842
        %v3275 = vunpack.c.l.b16 %v2843
        %v3276 = vunpack.c.l.b16 %v2844
        %v3277 = vunpack.c.l.b16 %v2845
        %v3278 = vunpack.c.l.b16 %v2846
        %v3279 = vunpack.c.l.b16 %v2847
        %v3280 = vunpack.c.l.b16 %v2848
        %v3281 = vunpack.c.l.b16 %v2849
        %v3282 = vunpack.c.l.b16 %v2850
        %v3283 = vunpack.c.l.b16 %v2851
        %v3284 = vunpack.c.l.b16 %v2852
        %v3285 = vunpack.c.l.b16 %v2853
        %v3286 = vunpack.c.l.b16 %v2854
        %v3287 = vunpack.c.l.b16 %v2855
        %v3288 = vunpack.c.l.b16 %v2856
        %v3289 = vunpack.c.l.b16 %v2857
        %v3290 = vunpack.c.l.b16 %v2858
        %v3291 = vunpack.c.l.b16 %v2859
        %v3292 = vunpack.c.l.b16 %v2860
        %v3293 = vunpack.c.l.b16 %v2861
        %v3294 = vunpack.c.l.b16 %v2862
        %v3295 = vunpack.c.l.b16 %v2863
        %v3296 = vunpack.c.l.b16 %v2864
        %v3297 = vunpack.c.l.b16 %v2865
        %v3298 = vunpack.c.l.b16 %v2866
        %v3299 = vunpack.c.l.b16 %v2867
        %v3300 = vunpack.c.l.b16 %v2868
        %v3301 = vunpack.c.l.b16 %v2869
        %v3302 = vunpack.c.l.b16 %v2870
        %v3303 = vunpack.c.l.b16 %v2871
        %v3304 = vunpack.c.l.b16 %v2872
        %v3305 = vunpack.c.l.b16 %v2873
        %v3306 = vunpack.c.l.b16 %v2874
        %v3307 = vunpack.c.l.b16 %v2875
        %v3308 = vunpack.c.l.b16 %v2876
        %v3309 = vunpack.c.l.b16 %v2877
        %v3310 = vunpack.c.l.b16 %v2878
        %v3311 = vpack.c.b16 %v3168, %v3167
        %v3312 = vpack.c.b16 %v3170, %v3169
        %v3313 = vpack.c.b16 %v3172, %v3171
        %v3314 = vpack.c.b16 %v3174, %v3173
        %v3315 = vpack.c.b16 %v3176, %v3175
        %v3316 = vpack.c.b16 %v3178, %v3177
        %v3317 = vpack.c.b16 %v3180, %v3179
        %v3318 = vpack.c.b16 %v3182, %v3181
        %v3319 = vpack.c.b16 %v3184, %v3183
        %v3320 = vpack.c.b16 %v3186, %v3185
        %v3321 = vpack.c.b16 %v3188, %v3187
        %v3322 = vpack.c.b16 %v3190, %v3189
        %v3323 = vpack.c.b16 %v3192, %v3191
        %v3324 = vpack.c.b16 %v3194, %v3193
        %v3325 = vpack.c.b16 %v3196, %v3195
        %v3326 = vpack.c.b16 %v3198, %v3197
        %v3327 = vpack.c.b16 %v3200, %v3199
        %v3328 = vpack.c.b16 %v3202, %v3201
        %v3329 = vpack.c.b16 %v3204, %v3203
        %v3330 = vpack.c.b16 %v3206, %v3205
        %v3331 = vpack.c.b16 %v3208, %v3207
        %v3332 = vpack.c.b16 %v3210, %v3209
        %v3333 = vpack.c.b16 %v3212, %v3211
        %v3334 = vpack.c.b16 %v3214, %v3213
        %v3335 = vpack.c.b16 %v3216, %v3215
        %v3336 = vpack.c.b16 %v3218, %v3217
        %v3337 = vpack.c.b16 %v3220, %v3219
        %v3338 = vpack.c.b16 %v3222, %v3221
        %v3339 = vpack.c.b16 %v3224, %v3223
        %v3340 = vpack.c.b16 %v3226, %v3225
        %v3341 = vpack.c.b16 %v3228, %v3227
        %v3342 = vpack.c.b16 %v3230, %v3229
        %v3343 = vpack.c.b16 %v3232, %v3231
        %v3344 = vpack.c.b16 %v3234, %v3233
        %v3345 = vpack.c.b16 %v3236, %v3235
        %v3346 = vpack.c.b16 %v3238, %v3237
        %v3347 = vpack.c.b16 %v3240, %v3239
        %v3348 = vpack.c.b16 %v3242, %v3241
        %v3349 = vpack.c.b16 %v3244, %v3243
        %v3350 = vpack.c.b16 %v3246, %v3245
        %v3351 = vpack.c.b16 %v3248, %v3247
        %v3352 = vpack.c.b16 %v3250, %v3249
        %v3353 = vpack.c.b16 %v3252, %v3251
        %v3354 = vpack.c.b16 %v3254, %v3253
        %v3355 = vpack.c.b16 %v3256, %v3255
        %v3356 = vpack.c.b16 %v3258, %v3257
        %v3357 = vpack.c.b16 %v3260, %v3259
        %v3358 = vpack.c.b16 %v3262, %v3261
        %v3359 = vpack.c.b16 %v3264, %v3263
        %v3360 = vpack.c.b16 %v3266, %v3265
        %v3361 = vpack.c.b16 %v3268, %v3267
        %v3362 = vpack.c.b16 %v3270, %v3269
        %v3363 = vpack.c.b16 %v3272, %v3271
        %v3364 = vpack.c.b16 %v3274, %v3273
        %v3365 = vpack.c.b16 %v3276, %v3275
        %v3366 = vpack.c.b16 %v3278, %v3277
        %v3367 = vpack.c.b16 %v3280, %v3279
        %v3368 = vpack.c.b16 %v3282, %v3281
        %v3369 = vpack.c.b16 %v3284, %v3283
        %v3370 = vpack.c.b16 %v3286, %v3285
        %v3371 = vpack.c.b16 %v3288, %v3287
        %v3372 = vpack.c.b16 %v3290, %v3289
        %v3373 = vpack.c.b16 %v3292, %v3291
        %v3374 = vpack.c.b16 %v3294, %v3293
        %v3375 = vpack.c.b16 %v3296, %v3295
        %v3376 = vpack.c.b16 %v3298, %v3297
        %v3377 = vpack.c.b16 %v3300, %v3299
        %v3378 = vpack.c.b16 %v3302, %v3301
        %v3379 = vpack.c.b16 %v3304, %v3303
        %v3380 = vpack.c.b16 %v3306, %v3305
        %v3381 = vpack.c.b16 %v3308, %v3307
        %v3382 = vpack.c.b16 %v3310, %v3309
        %3455 = vmatprep.subr.bf16.mxu0 0
        %3456 = vmatpush1.bf16.msra.mxu0 %v3311
        %3457 = vmatprep.subr.bf16.mxu0 0
        %3458 = vmatpush1.bf16.msra.mxu0 %v3312
        %3459 = vmatprep.subr.bf16.mxu0 0
        %3460 = vmatpush1.bf16.msra.mxu0 %v3313
        %3461 = vmatprep.subr.bf16.mxu0 0
        %3462 = vmatpush1.bf16.msra.mxu0 %v3314
        %3463 = vmatprep.subr.bf16.mxu0 0
        %3464 = vmatpush1.bf16.msra.mxu0 %v3315
        %3465 = vmatprep.subr.bf16.mxu0 0
        %3466 = vmatpush1.bf16.msra.mxu0 %v3316
        %3467 = vmatprep.subr.bf16.mxu0 0
        %3468 = vmatpush1.bf16.msra.mxu0 %v3317
        %3469 = vmatprep.subr.bf16.mxu0 0
        %3470 = vmatpush1.bf16.msra.mxu0 %v3318
        %3471 = vmatprep.subr.bf16.mxu0 0
        %3472 = vmatpush1.bf16.msra.mxu0 %v3319
        %3473 = vmatprep.subr.bf16.mxu0 0
        %3474 = vmatpush1.bf16.msra.mxu0 %v3320
        %3475 = vmatprep.subr.bf16.mxu0 0
        %3476 = vmatpush1.bf16.msra.mxu0 %v3321
        %3477 = vmatprep.subr.bf16.mxu0 0
        %3478 = vmatpush1.bf16.msra.mxu0 %v3322
        %3479 = vmatprep.subr.bf16.mxu0 0
        %3480 = vmatpush1.bf16.msra.mxu0 %v3323
        %3481 = vmatprep.subr.bf16.mxu0 0
        %3482 = vmatpush1.bf16.msra.mxu0 %v3324
        %3483 = vmatprep.subr.bf16.mxu0 0
        %3484 = vmatpush1.bf16.msra.mxu0 %v3325
        %3485 = vmatprep.subr.bf16.mxu0 0
        %3486 = vmatpush1.bf16.msra.mxu0 %v3326
        %3487 = vmatprep.mubr.bf16.mxu0 %v2952
        %3488 = vmatmul.mubr.bf16.gmra.mrb[0].mxu0 %v2951
        %v3489 = vpop.f32.mrb[0].mxu0
        %v3490 = vadd.f32 0.0, %v3489
        %v3491 = vpop.f32.mrb[0].mxu0
        %v3492 = vpop.f32.mrb[0].mxu0
        %v3493 = vadd.f32 0.0, %v3492
        %v3494 = vpop.f32.mrb[0].mxu0
        %3495 = vmatprep.mubr.bf16.mxu0 %v2961
        %3496 = vmatmul.mubr.bf16.gmra.mrb[0].mxu0 %v2960
        %v3497 = vpop.f32.mrb[0].mxu0
        %v3498 = vadd.f32 0.0, %v3497
        %v3499 = vpop.f32.mrb[0].mxu0
        %v3500 = vpop.f32.mrb[0].mxu0
        %v3501 = vadd.f32 0.0, %v3500
        %v3502 = vpop.f32.mrb[0].mxu0
        %3503 = vmatprep.mubr.bf16.mxu0 %v2970
        %3504 = vmatmul.mubr.bf16.gmra.mrb[0].mxu0 %v2969
        %v3505 = vpop.f32.mrb[0].mxu0
        %v3506 = vadd.f32 0.0, %v3505
        %v3507 = vpop.f32.mrb[0].mxu0
        %v3508 = vpop.f32.mrb[0].mxu0
        %v3509 = vadd.f32 0.0, %v3508
        %v3510 = vpop.f32.mrb[0].mxu0
        %3511 = vmatprep.mubr.bf16.mxu0 %v2979
        %3512 = vmatmul.mubr.bf16.gmra.mrb[0].mxu0 %v2978
        %v3513 = vpop.f32.mrb[0].mxu0
        %v3514 = vadd.f32 0.0, %v3513
        %v3515 = vpop.f32.mrb[0].mxu0
        %v3516 = vpop.f32.mrb[0].mxu0
        %v3517 = vadd.f32 0.0, %v3516
        %v3518 = vpop.f32.mrb[0].mxu0
        %3519 = vdwg.mxu0
        %3520 = vmatprep.subr.bf16.mxu0 0
        %3521 = vmatpush1.bf16.msra.mxu0 %v3327
        %3522 = vmatprep.subr.bf16.mxu0 0
        %3523 = vmatpush1.bf16.msra.mxu0 %v3328
        %3524 = vmatprep.subr.bf16.mxu0 0
        %3525 = vmatpush1.bf16.msra.mxu0 %v3329
        %3526 = vmatprep.subr.bf16.mxu0 0
        %3527 = vmatpush1.bf16.msra.mxu0 %v3330
        %3528 = vmatprep.subr.bf16.mxu0 0
        %3529 = vmatpush1.bf16.msra.mxu0 %v3331
        %3530 = vmatprep.subr.bf16.mxu0 0
        %3531 = vmatpush1.bf16.msra.mxu0 %v3332
        %3532 = vmatprep.subr.bf16.mxu0 0
        %3533 = vmatpush1.bf16.msra.mxu0 %v3333
        %3534 = vmatprep.subr.bf16.mxu0 0
        %3535 = vmatpush1.bf16.msra.mxu0 %v3334
        %3536 = vmatprep.subr.bf16.mxu0 0
        %3537 = vmatpush1.bf16.msra.mxu0 %v3335
        %3538 = vmatprep.subr.bf16.mxu0 0
        %3539 = vmatpush1.bf16.msra.mxu0 %v3336
        %3540 = vmatprep.subr.bf16.mxu0 0
        %3541 = vmatpush1.bf16.msra.mxu0 %v3337
        %3542 = vmatprep.subr.bf16.mxu0 0
        %3543 = vmatpush1.bf16.msra.mxu0 %v3338
        %3544 = vmatprep.subr.bf16.mxu0 0
        %3545 = vmatpush1.bf16.msra.mxu0 %v3339
        %3546 = vmatprep.subr.bf16.mxu0 0
        %3547 = vmatpush1.bf16.msra.mxu0 %v3340
        %3548 = vmatprep.subr.bf16.mxu0 0
        %3549 = vmatpush1.bf16.msra.mxu0 %v3341
        %3550 = vmatprep.subr.bf16.mxu0 0
        %3551 = vmatpush1.bf16.msra.mxu0 %v3342
        %3552 = vmatprep.mubr.bf16.mxu0 %v2954
        %3553 = vmatmul.mubr.bf16.gmra.mrb[0].mxu0 %v2953
        %v3554 = vpop.f32.mrb[0].mxu0
        %v3555 = vadd.f32 %v3490, %v3554
        %v3556 = vpop.f32.mrb[0].mxu0
        %v3557 = vpop.f32.mrb[0].mxu0
        %v3558 = vadd.f32 %v3493, %v3557
        %v3559 = vpop.f32.mrb[0].mxu0
        %3560 = vmatprep.mubr.bf16.mxu0 %v2963
        %3561 = vmatmul.mubr.bf16.gmra.mrb[0].mxu0 %v2962
        %v3562 = vpop.f32.mrb[0].mxu0
        %v3563 = vadd.f32 %v3498, %v3562
        %v3564 = vpop.f32.mrb[0].mxu0
        %v3565 = vpop.f32.mrb[0].mxu0
        %v3566 = vadd.f32 %v3501, %v3565
        %v3567 = vpop.f32.mrb[0].mxu0
        %3568 = vmatprep.mubr.bf16.mxu0 %v2972
        %3569 = vmatmul.mubr.bf16.gmra.mrb[0].mxu0 %v2971
        %v3570 = vpop.f32.mrb[0].mxu0
        %v3571 = vadd.f32 %v3506, %v3570
        %v3572 = vpop.f32.mrb[0].mxu0
        %v3573 = vpop.f32.mrb[0].mxu0
        %v3574 = vadd.f32 %v3509, %v3573
        %v3575 = vpop.f32.mrb[0].mxu0
        %3576 = vmatprep.mubr.bf16.mxu0 %v2981
        %3577 = vmatmul.mubr.bf16.gmra.mrb[0].mxu0 %v2980
        %v3578 = vpop.f32.mrb[0].mxu0
        %v3579 = vadd.f32 %v3514, %v3578
        %v3580 = vpop.f32.mrb[0].mxu0
        %v3581 = vpop.f32.mrb[0].mxu0
        %v3582 = vadd.f32 %v3517, %v3581
        %v3583 = vpop.f32.mrb[0].mxu0
        %3584 = vdwg.mxu0
        %3585 = vmatprep.subr.bf16.mxu0 0
        %3586 = vmatpush1.bf16.msra.mxu0 %v3343
        %3587 = vmatprep.subr.bf16.mxu0 0
        %3588 = vmatpush1.bf16.msra.mxu0 %v3344
        %3589 = vmatprep.subr.bf16.mxu0 0
        %3590 = vmatpush1.bf16.msra.mxu0 %v3345
        %3591 = vmatprep.subr.bf16.mxu0 0
        %3592 = vmatpush1.bf16.msra.mxu0 %v3346
        %3593 = vmatprep.subr.bf16.mxu0 0
        %3594 = vmatpush1.bf16.msra.mxu0 %v3347
        %3595 = vmatprep.subr.bf16.mxu0 0
        %3596 = vmatpush1.bf16.msra.mxu0 %v3348
        %3597 = vmatprep.subr.bf16.mxu0 0
        %3598 = vmatpush1.bf16.msra.mxu0 %v3349
        %3599 = vmatprep.subr.bf16.mxu0 0
        %3600 = vmatpush1.bf16.msra.mxu0 %v3350
        %3601 = vmatprep.subr.bf16.mxu0 0
        %3602 = vmatpush1.bf16.msra.mxu0 %v3351
        %3603 = vmatprep.subr.bf16.mxu0 0
        %3604 = vmatpush1.bf16.msra.mxu0 %v3352
        %3605 = vmatprep.subr.bf16.mxu0 0
        %3606 = vmatpush1.bf16.msra.mxu0 %v3353
        %3607 = vmatprep.subr.bf16.mxu0 0
        %3608 = vmatpush1.bf16.msra.mxu0 %v3354
        %3609 = vmatprep.subr.bf16.mxu0 0
        %3610 = vmatpush1.bf16.msra.mxu0 %v3355
        %3611 = vmatprep.subr.bf16.mxu0 0
        %3612 = vmatpush1.bf16.msra.mxu0 %v3356
        %3613 = vmatprep.subr.bf16.mxu0 0
        %3614 = vmatpush1.bf16.msra.mxu0 %v3357
        %3615 = vmatprep.subr.bf16.mxu0 0
        %3616 = vmatpush1.bf16.msra.mxu0 %v3358
        %3617 = vmatprep.mubr.bf16.mxu0 %v2956
        %3618 = vmatmul.mubr.bf16.gmra.mrb[0].mxu0 %v2955
        %v3619 = vpop.f32.mrb[0].mxu0
        %v3620 = vadd.f32 %v3555, %v3619
        %v3621 = vpop.f32.mrb[0].mxu0
        %v3622 = vpop.f32.mrb[0].mxu0
        %v3623 = vadd.f32 %v3558, %v3622
        %v3624 = vpop.f32.mrb[0].mxu0
        %3625 = vmatprep.mubr.bf16.mxu0 %v2965
        %3626 = vmatmul.mubr.bf16.gmra.mrb[0].mxu0 %v2964
        %v3627 = vpop.f32.mrb[0].mxu0
        %v3628 = vadd.f32 %v3563, %v3627
        %v3629 = vpop.f32.mrb[0].mxu0
        %v3630 = vpop.f32.mrb[0].mxu0
        %v3631 = vadd.f32 %v3566, %v3630
        %v3632 = vpop.f32.mrb[0].mxu0
        %3633 = vmatprep.mubr.bf16.mxu0 %v2974
        %3634 = vmatmul.mubr.bf16.gmra.mrb[0].mxu0 %v2973
        %v3635 = vpop.f32.mrb[0].mxu0
        %v3636 = vadd.f32 %v3571, %v3635
        %v3637 = vpop.f32.mrb[0].mxu0
        %v3638 = vpop.f32.mrb[0].mxu0
        %v3639 = vadd.f32 %v3574, %v3638
        %v3640 = vpop.f32.mrb[0].mxu0
        %3641 = vmatprep.mubr.bf16.mxu0 %v2983
        %3642 = vmatmul.mubr.bf16.gmra.mrb[0].mxu0 %v2982
        %v3643 = vpop.f32.mrb[0].mxu0
        %v3644 = vadd.f32 %v3579, %v3643
        %v3645 = vpop.f32.mrb[0].mxu0
        %v3646 = vpop.f32.mrb[0].mxu0
        %v3647 = vadd.f32 %v3582, %v3646
        %v3648 = vpop.f32.mrb[0].mxu0
        %3649 = vdwg.mxu0
        %3650 = vmatprep.subr.bf16.mxu0 0
        %3651 = vmatpush1.bf16.msra.mxu0 %v3359
        %3652 = vmatprep.subr.bf16.mxu0 0
        %3653 = vmatpush1.bf16.msra.mxu0 %v3360
        %3654 = vmatprep.subr.bf16.mxu0 0
        %3655 = vmatpush1.bf16.msra.mxu0 %v3361
        %3656 = vmatprep.subr.bf16.mxu0 0
        %3657 = vmatpush1.bf16.msra.mxu0 %v3362
        %3658 = vmatprep.subr.bf16.mxu0 0
        %3659 = vmatpush1.bf16.msra.mxu0 %v3363
        %3660 = vmatprep.subr.bf16.mxu0 0
        %3661 = vmatpush1.bf16.msra.mxu0 %v3364
        %3662 = vmatprep.subr.bf16.mxu0 0
        %3663 = vmatpush1.bf16.msra.mxu0 %v3365
        %3664 = vmatprep.subr.bf16.mxu0 0
        %3665 = vmatpush1.bf16.msra.mxu0 %v3366
        %3666 = vmatprep.subr.bf16.mxu0 0
        %3667 = vmatpush1.bf16.msra.mxu0 %v3367
        %3668 = vmatprep.subr.bf16.mxu0 0
        %3669 = vmatpush1.bf16.msra.mxu0 %v3368
        %3670 = vmatprep.subr.bf16.mxu0 0
        %3671 = vmatpush1.bf16.msra.mxu0 %v3369
        %3672 = vmatprep.subr.bf16.mxu0 0
        %3673 = vmatpush1.bf16.msra.mxu0 %v3370
        %3674 = vmatprep.subr.bf16.mxu0 0
        %3675 = vmatpush1.bf16.msra.mxu0 %v3371
        %3676 = vmatprep.subr.bf16.mxu0 0
        %3677 = vmatpush1.bf16.msra.mxu0 %v3372
        %3678 = vmatprep.subr.bf16.mxu0 0
        %3679 = vmatpush1.bf16.msra.mxu0 %v3373
        %3680 = vmatprep.subr.bf16.mxu0 0
        %3681 = vmatpush1.bf16.msra.mxu0 %v3374
        %3682 = vmatprep.mubr.bf16.mxu0 %v2958
        %3683 = vmatmul.mubr.bf16.gmra.mrb[0].mxu0 %v2957
        %v3684 = vpop.f32.mrb[0].mxu0
        %v3685 = vadd.f32 %v3620, %v3684
        %v3686 = vpop.f32.mrb[0].mxu0
        %v3687 = vpop.f32.mrb[0].mxu0
        %v3688 = vadd.f32 %v3623, %v3687
        %v3689 = vpop.f32.mrb[0].mxu0
        %3690 = vmatprep.mubr.bf16.mxu0 %v2967
        %3691 = vmatmul.mubr.bf16.gmra.mrb[0].mxu0 %v2966
        %v3692 = vpop.f32.mrb[0].mxu0
        %v3693 = vadd.f32 %v3628, %v3692
        %v3694 = vpop.f32.mrb[0].mxu0
        %v3695 = vpop.f32.mrb[0].mxu0
        %v3696 = vadd.f32 %v3631, %v3695
        %v3697 = vpop.f32.mrb[0].mxu0
        %3698 = vmatprep.mubr.bf16.mxu0 %v2976
        %3699 = vmatmul.mubr.bf16.gmra.mrb[0].mxu0 %v2975
        %v3700 = vpop.f32.mrb[0].mxu0
        %v3701 = vadd.f32 %v3636, %v3700
        %v3702 = vpop.f32.mrb[0].mxu0
        %v3703 = vpop.f32.mrb[0].mxu0
        %v3704 = vadd.f32 %v3639, %v3703
        %v3705 = vpop.f32.mrb[0].mxu0
        %3706 = vmatprep.mubr.bf16.mxu0 %v2985
        %3707 = vmatmul.mubr.bf16.gmra.mrb[0].mxu0 %v2984
        %v3708 = vpop.f32.mrb[0].mxu0
        %v3709 = vadd.f32 %v3644, %v3708
        %v3710 = vpop.f32.mrb[0].mxu0
        %v3711 = vpop.f32.mrb[0].mxu0
        %v3712 = vadd.f32 %v3647, %v3711
        %v3713 = vpop.f32.mrb[0].mxu0
        %3714 = vdwg.mxu0
        %3715 = vmatprep.subr.bf16.mxu0 0
        %3716 = vmatpush1.bf16.msra.mxu0 %v3375
        %3717 = vmatprep.subr.bf16.mxu0 0
        %3718 = vmatpush1.bf16.msra.mxu0 %v3376
        %3719 = vmatprep.subr.bf16.mxu0 0
        %3720 = vmatpush1.bf16.msra.mxu0 %v3377
        %3721 = vmatprep.subr.bf16.mxu0 0
        %3722 = vmatpush1.bf16.msra.mxu0 %v3378
        %3723 = vmatprep.subr.bf16.mxu0 0
        %3724 = vmatpush1.bf16.msra.mxu0 %v3379
        %3725 = vmatprep.subr.bf16.mxu0 0
        %3726 = vmatpush1.bf16.msra.mxu0 %v3380
        %3727 = vmatprep.subr.bf16.mxu0 0
        %3728 = vmatpush1.bf16.msra.mxu0 %v3381
        %3729 = vmatprep.subr.bf16.mxu0 0
        %3730 = vmatpush1.bf16.msra.mxu0 %v3382
        %3731 = vmatprep.subr.bf16.mxu0 0
        %3732 = vmatpush1.bf16.msra.mxu0 0
        %3733 = vmatprep.subr.bf16.mxu0 0
        %3734 = vmatpush1.bf16.msra.mxu0 0
        %3735 = vmatprep.subr.bf16.mxu0 0
        %3736 = vmatpush1.bf16.msra.mxu0 0
        %3737 = vmatprep.subr.bf16.mxu0 0
        %3738 = vmatpush1.bf16.msra.mxu0 0
        %3739 = vmatprep.subr.bf16.mxu0 0
        %3740 = vmatpush1.bf16.msra.mxu0 0
        %3741 = vmatprep.subr.bf16.mxu0 0
        %3742 = vmatpush1.bf16.msra.mxu0 0
        %3743 = vmatprep.subr.bf16.mxu0 0
        %3744 = vmatpush1.bf16.msra.mxu0 0
        %3745 = vmatprep.subr.bf16.mxu0 0
        %3746 = vmatpush1.bf16.msra.mxu0 0
        %3747 = vmatprep.mubr.bf16.mxu0 0
        %3748 = vmatmul.mubr.bf16.gmra.mrb[0].mxu0 %v2959
        %v3749 = vpop.f32.mrb[0].mxu0
        %v3750 = vadd.f32 %v3685, %v3749
        %v3751 = vpop.f32.mrb[0].mxu0
        %v3752 = vpop.f32.mrb[0].mxu0
        %v3753 = vadd.f32 %v3688, %v3752
        %v3754 = vpop.f32.mrb[0].mxu0
        %3755 = vmatprep.mubr.bf16.mxu0 0
        %3756 = vmatmul.mubr.bf16.gmra.mrb[0].mxu0 %v2968
        %v3757 = vpop.f32.mrb[0].mxu0
        %v3758 = vadd.f32 %v3693, %v3757
        %v3759 = vpop.f32.mrb[0].mxu0
        %v3760 = vpop.f32.mrb[0].mxu0
        %v3761 = vadd.f32 %v3696, %v3760
        %v3762 = vpop.f32.mrb[0].mxu0
        %3763 = vmatprep.mubr.bf16.mxu0 0
        %3764 = vmatmul.mubr.bf16.gmra.mrb[0].mxu0 %v2977
        %v3765 = vpop.f32.mrb[0].mxu0
        %v3766 = vadd.f32 %v3701, %v3765
        %v3767 = vpop.f32.mrb[0].mxu0
        %v3768 = vpop.f32.mrb[0].mxu0
        %v3769 = vadd.f32 %v3704, %v3768
        %v3770 = vpop.f32.mrb[0].mxu0
        %3771 = vmatprep.mubr.bf16.mxu0 0
        %3772 = vmatmul.mubr.bf16.gmra.mrb[0].mxu0 %v2986
        %v3773 = vpop.f32.mrb[0].mxu0
        %v3774 = vadd.f32 %v3709, %v3773
        %v3775 = vpop.f32.mrb[0].mxu0
        %v3776 = vpop.f32.mrb[0].mxu0
        %v3777 = vadd.f32 %v3712, %v3776
        %v3778 = vpop.f32.mrb[0].mxu0
        %3779 = vdwg.mxu0
        %v3780 = vlaneseq
        %v3781 = vshrl.u32 %v3780, 7
        %v3782 = vsub.s32 0, %v3781
        %v3783 = vrot.slane %v356, %v3782
        %v3784 = vmul.f32 %v3750, %v3783
        %v3785 = vmul.f32 %v3753, %v3783
        %v3786 = vmul.f32 %v3758, %v3783
        %v3787 = vmul.f32 %v3761, %v3783
        %v3788 = vmul.f32 %v3766, %v3783
        %v3789 = vmul.f32 %v3769, %v3783
        %v3790 = vmul.f32 %v3774, %v3783
        %v3791 = vmul.f32 %v3777, %v3783
        %v3792 = vlaneseq
        %v3793 = vshrl.u32 %v3792, 7
        %v3794 = vsub.s32 0, %v3793
        %v3795 = vrot.slane %v357, %v3794
        %v3796 = vadd.f32 %v3784, %v3795
        %v3797 = vadd.f32 %v3785, %v3795
        %v3798 = vadd.f32 %v3786, %v3795
        %v3799 = vadd.f32 %v3787, %v3795
        %v3800 = vadd.f32 %v3788, %v3795
        %v3801 = vadd.f32 %v3789, %v3795
        %v3802 = vadd.f32 %v3790, %v3795
        %v3803 = vadd.f32 %v3791, %v3795
        %v3804 = vadd.f32 %v3796, %v3797
        %v3805 = vadd.f32 %v3804, %v3798
        %v3806 = vadd.f32 %v3805, %v3799
        %v3807 = vadd.f32 %v3806, %v3800
        %v3808 = vadd.f32 %v3807, %v3801
        %v3809 = vadd.f32 %v3808, %v3802
        %v3810 = vadd.f32 %v3809, %v3803
        %v3811 = vrot.slane %v3810, 4
        %v3812 = vadd.f32 %v3810, %v3811
        %v3813 = vrot.slane %v3812, 2
        %v3814 = vadd.f32 %v3812, %v3813
        %v3815 = vrot.slane %v3814, 1
        %v3816 = vadd.f32 %v3814, %v3815
        %v3817 = vrcp.pop 64.0
        %v3818 = vmul.f32 %v3816, %v3817
        %v3819 = vsub.f32 %v3796, %v3818
        %v3820 = vsub.f32 %v3797, %v3818
        %v3821 = vsub.f32 %v3798, %v3818
        %v3822 = vsub.f32 %v3799, %v3818
        %v3823 = vsub.f32 %v3800, %v3818
        %v3824 = vsub.f32 %v3801, %v3818
        %v3825 = vsub.f32 %v3802, %v3818
        %v3826 = vsub.f32 %v3803, %v3818
        %v3827 = vmul.f32 %v3819, %v3819
        %v3828 = vmul.f32 %v3820, %v3820
        %v3829 = vmul.f32 %v3821, %v3821
        %v3830 = vmul.f32 %v3822, %v3822
        %v3831 = vmul.f32 %v3823, %v3823
        %v3832 = vmul.f32 %v3824, %v3824
        %v3833 = vmul.f32 %v3825, %v3825
        %v3834 = vmul.f32 %v3826, %v3826
        %v3835 = vadd.f32 %v3827, %v3828
        %v3836 = vadd.f32 %v3835, %v3829
        %v3837 = vadd.f32 %v3836, %v3830
        %v3838 = vadd.f32 %v3837, %v3831
        %v3839 = vadd.f32 %v3838, %v3832
        %v3840 = vadd.f32 %v3839, %v3833
        %v3841 = vadd.f32 %v3840, %v3834
        %v3842 = vrot.slane %v3841, 4
        %v3843 = vadd.f32 %v3841, %v3842
        %v3844 = vrot.slane %v3843, 2
        %v3845 = vadd.f32 %v3843, %v3844
        %v3846 = vrot.slane %v3845, 1
        %v3847 = vadd.f32 %v3845, %v3846
        %v3848 = vmul.f32 %v3847, 0.015873017
        %v3849 = vadd.f32 %v3848, 0.0001
        %v3850 = vmul.f32 %v3849, 4.0
        %v3851 = vrcp.pop %v3850
        %v3852 = vmul.f32 %v3827, %v3851
        %v3853 = vmul.f32 %v3828, %v3851
        %v3854 = vmul.f32 %v3829, %v3851
        %v3855 = vmul.f32 %v3830, %v3851
        %v3856 = vmul.f32 %v3831, %v3851
        %v3857 = vmul.f32 %v3832, %v3851
        %v3858 = vmul.f32 %v3833, %v3851
        %v3859 = vmul.f32 %v3834, %v3851
        %v3860 = vadd.f32 %v3852, 0.5
        %v3861 = vadd.f32 %v3853, 0.5
        %v3862 = vadd.f32 %v3854, 0.5
        %v3863 = vadd.f32 %v3855, 0.5
        %v3864 = vadd.f32 %v3856, 0.5
        %v3865 = vadd.f32 %v3857, 0.5
        %v3866 = vadd.f32 %v3858, 0.5
        %v3867 = vadd.f32 %v3859, 0.5
        %v3868 = vsub.f32 0.0, %v3860
        %v3869 = vsub.f32 0.0, %v3861
        %v3870 = vsub.f32 0.0, %v3862
        %v3871 = vsub.f32 0.0, %v3863
        %v3872 = vsub.f32 0.0, %v3864
        %v3873 = vsub.f32 0.0, %v3865
        %v3874 = vsub.f32 0.0, %v3866
        %v3875 = vsub.f32 0.0, %v3867
        %v3876 = vmul.f32 %v3868, 1.442695
        %v3877 = vpow.pop %v3876
        %v3878 = vmul.f32 %v3869, 1.442695
        %v3879 = vpow.pop %v3878
        %v3880 = vmul.f32 %v3870, 1.442695
        %v3881 = vpow.pop %v3880
        %v3882 = vmul.f32 %v3871, 1.442695
        %v3883 = vpow.pop %v3882
        %v3884 = vmul.f32 %v3872, 1.442695
        %v3885 = vpow.pop %v3884
        %v3886 = vmul.f32 %v3873, 1.442695
        %v3887 = vpow.pop %v3886
        %v3888 = vmul.f32 %v3874, 1.442695
        %v3889 = vpow.pop %v3888
        %v3890 = vmul.f32 %v3875, 1.442695
        %v3891 = vpow.pop %v3890
        %v3892 = vadd.f32 %v3877, 1.0
        %v3893 = vadd.f32 %v3879, 1.0
        %v3894 = vadd.f32 %v3881, 1.0
        %v3895 = vadd.f32 %v3883, 1.0
        %v3896 = vadd.f32 %v3885, 1.0
        %v3897 = vadd.f32 %v3887, 1.0
        %v3898 = vadd.f32 %v3889, 1.0
        %v3899 = vadd.f32 %v3891, 1.0
        %v3900 = vrcp.pop %v3892
        %v3901 = vmul.f32 1.0, %v3900
        %v3902 = vrcp.pop %v3893
        %v3903 = vmul.f32 1.0, %v3902
        %v3904 = vrcp.pop %v3894
        %v3905 = vmul.f32 1.0, %v3904
        %v3906 = vrcp.pop %v3895
        %v3907 = vmul.f32 1.0, %v3906
        %v3908 = vrcp.pop %v3896
        %v3909 = vmul.f32 1.0, %v3908
        %v3910 = vrcp.pop %v3897
        %v3911 = vmul.f32 1.0, %v3910
        %v3912 = vrcp.pop %v3898
        %v3913 = vmul.f32 1.0, %v3912
        %v3914 = vrcp.pop %v3899
        %v3915 = vmul.f32 1.0, %v3914
        %v3916 = vmul.f32 %v3796, %v3901
        %v3917 = vmul.f32 %v3797, %v3903
        %v3918 = vmul.f32 %v3798, %v3905
        %v3919 = vmul.f32 %v3799, %v3907
        %v3920 = vmul.f32 %v3800, %v3909
        %v3921 = vmul.f32 %v3801, %v3911
        %v3922 = vmul.f32 %v3802, %v3913
        %v3923 = vmul.f32 %v3803, %v3915
        %v3924 = vld [vmem:[%s307] sm:$0xff]
        %v3925 = vld [vmem:[%s307 + $0x8] sm:$0xff]
        %v3926 = vld [vmem:[%s307 + $0x10] sm:$0xff]
        %v3927 = vld [vmem:[%s307 + $0x18] sm:$0xff]
        %v3928 = vld [vmem:[%s307 + $0x20] sm:$0xff]
        %v3929 = vld [vmem:[%s307 + $0x28] sm:$0xff]
        %v3930 = vld [vmem:[%s307 + $0x30] sm:$0xff]
        %v3931 = vld [vmem:[%s307 + $0x38] sm:$0xff]
        %v3932 = vld [vmem:[%s5 + $0x4] sm:$0x1]
        %v3933 = vld [vmem:[%s5 + $0x5] sm:$0x1]
        %v3934 = vpack.c.bf16 %v3925, %v3924
        %v3935 = vpack.c.bf16 %v3927, %v3926
        %v3936 = vpack.c.bf16 %v3929, %v3928
        %v3937 = vpack.c.bf16 %v3931, %v3930
        %v3938 = vld [vmem:[#allocation11] sm:$0xf]
        %v3939 = vld [vmem:[#allocation11 + $0x4] sm:$0xf]
        %v3940 = vld [vmem:[#allocation11 + $0x8] sm:$0xf]
        %v3941 = vld [vmem:[#allocation11 + $0xc] sm:$0xf]
        %v3942 = vld [vmem:[#allocation11 + $0x10] sm:$0xf]
        %v3943 = vld [vmem:[#allocation11 + $0x14] sm:$0xf]
        %v3944 = vld [vmem:[#allocation11 + $0x18] sm:$0xf]
        %v3945 = vld [vmem:[#allocation11 + $0x1c] sm:$0xf]
        %v3946 = vld [vmem:[#allocation11 + $0x20] sm:$0xf]
        %v3947 = vld [vmem:[#allocation11 + $0x24] sm:$0xf]
        %v3948 = vld [vmem:[#allocation11 + $0x28] sm:$0xf]
        %v3949 = vld [vmem:[#allocation11 + $0x2c] sm:$0xf]
        %v3950 = vld [vmem:[#allocation11 + $0x30] sm:$0xf]
        %v3951 = vld [vmem:[#allocation11 + $0x34] sm:$0xf]
        %v3952 = vld [vmem:[#allocation11 + $0x38] sm:$0xf]
        %v3953 = vld [vmem:[#allocation11 + $0x3c] sm:$0xf]
        %v3970 = vunpack.c.l.b16 %v3938
        %v3971 = vunpack.c.l.b16 %v3939
        %v3972 = vunpack.c.l.b16 %v3940
        %v3973 = vunpack.c.l.b16 %v3941
        %v3974 = vunpack.c.l.b16 %v3942
        %v3975 = vunpack.c.l.b16 %v3943
        %v3976 = vunpack.c.l.b16 %v3944
        %v3977 = vunpack.c.l.b16 %v3945
        %v3978 = vunpack.c.l.b16 %v3946
        %v3979 = vunpack.c.l.b16 %v3947
        %v3980 = vunpack.c.l.b16 %v3948
        %v3981 = vunpack.c.l.b16 %v3949
        %v3982 = vunpack.c.l.b16 %v3950
        %v3983 = vunpack.c.l.b16 %v3951
        %v3984 = vunpack.c.l.b16 %v3952
        %v3985 = vunpack.c.l.b16 %v3953
        %v3986 = vpack.c.b16 %v3971, %v3970
        %v3987 = vpack.c.b16 %v3973, %v3972
        %v3988 = vpack.c.b16 %v3975, %v3974
        %v3989 = vpack.c.b16 %v3977, %v3976
        %v3990 = vpack.c.b16 %v3979, %v3978
        %v3991 = vpack.c.b16 %v3981, %v3980
        %v3992 = vpack.c.b16 %v3983, %v3982
        %v3993 = vpack.c.b16 %v3985, %v3984
        %4002 = vmatprep.subr.bf16.mxu0 0
        %4003 = vmatpush1.bf16.msra.mxu0 %v3986
        %4004 = vmatprep.subr.bf16.mxu0 0
        %4005 = vmatpush1.bf16.msra.mxu0 %v3987
        %4006 = vmatprep.subr.bf16.mxu0 0
        %4007 = vmatpush1.bf16.msra.mxu0 %v3988
        %4008 = vmatprep.subr.bf16.mxu0 0
        %4009 = vmatpush1.bf16.msra.mxu0 %v3989
        %4010 = vmatprep.subr.bf16.mxu0 0
        %4011 = vmatpush1.bf16.msra.mxu0 %v3990
        %4012 = vmatprep.subr.bf16.mxu0 0
        %4013 = vmatpush1.bf16.msra.mxu0 %v3991
        %4014 = vmatprep.subr.bf16.mxu0 0
        %4015 = vmatpush1.bf16.msra.mxu0 %v3992
        %4016 = vmatprep.subr.bf16.mxu0 0
        %4017 = vmatpush1.bf16.msra.mxu0 %v3993
        %4018 = vmatprep.subr.bf16.mxu0 0
        %4019 = vmatpush1.bf16.msra.mxu0 0
        %4020 = vmatprep.subr.bf16.mxu0 0
        %4021 = vmatpush1.bf16.msra.mxu0 0
        %4022 = vmatprep.subr.bf16.mxu0 0
        %4023 = vmatpush1.bf16.msra.mxu0 0
        %4024 = vmatprep.subr.bf16.mxu0 0
        %4025 = vmatpush1.bf16.msra.mxu0 0
        %4026 = vmatprep.subr.bf16.mxu0 0
        %4027 = vmatpush1.bf16.msra.mxu0 0
        %4028 = vmatprep.subr.bf16.mxu0 0
        %4029 = vmatpush1.bf16.msra.mxu0 0
        %4030 = vmatprep.subr.bf16.mxu0 0
        %4031 = vmatpush1.bf16.msra.mxu0 0
        %4032 = vmatprep.subr.bf16.mxu0 0
        %4033 = vmatpush1.bf16.msra.mxu0 0
        %4034 = vmatprep.mubr.bf16.mxu0 0
        %4035 = vmatmul.mubr.bf16.gmra.mrb[0].mxu0 %v3934
        %v4036 = vpop.f32.mrb[0].mxu0
        %v4037 = vadd.f32 0.0, %v4036
        %v4038 = vpop.f32.mrb[0].mxu0
        %v4039 = vpop.f32.mrb[0].mxu0
        %v4040 = vadd.f32 0.0, %v4039
        %v4041 = vpop.f32.mrb[0].mxu0
        %4042 = vmatprep.mubr.bf16.mxu0 0
        %4043 = vmatmul.mubr.bf16.gmra.mrb[0].mxu0 %v3935
        %v4044 = vpop.f32.mrb[0].mxu0
        %v4045 = vadd.f32 0.0, %v4044
        %v4046 = vpop.f32.mrb[0].mxu0
        %v4047 = vpop.f32.mrb[0].mxu0
        %v4048 = vadd.f32 0.0, %v4047
        %v4049 = vpop.f32.mrb[0].mxu0
        %4050 = vmatprep.mubr.bf16.mxu0 0
        %4051 = vmatmul.mubr.bf16.gmra.mrb[0].mxu0 %v3936
        %v4052 = vpop.f32.mrb[0].mxu0
        %v4053 = vadd.f32 0.0, %v4052
        %v4054 = vpop.f32.mrb[0].mxu0
        %v4055 = vpop.f32.mrb[0].mxu0
        %v4056 = vadd.f32 0.0, %v4055
        %v4057 = vpop.f32.mrb[0].mxu0
        %4058 = vmatprep.mubr.bf16.mxu0 0
        %4059 = vmatmul.mubr.bf16.gmra.mrb[0].mxu0 %v3937
        %v4060 = vpop.f32.mrb[0].mxu0
        %v4061 = vadd.f32 0.0, %v4060
        %v4062 = vpop.f32.mrb[0].mxu0
        %v4063 = vpop.f32.mrb[0].mxu0
        %v4064 = vadd.f32 0.0, %v4063
        %v4065 = vpop.f32.mrb[0].mxu0
        %4066 = vdwg.mxu0
        %v4067 = vlaneseq
        %v4068 = vshrl.u32 %v4067, 7
        %v4069 = vsub.s32 0, %v4068
        %v4070 = vrot.slane %v3932, %v4069
        %v4071 = vmul.f32 %v4037, %v4070
        %v4072 = vmul.f32 %v4040, %v4070
        %v4073 = vmul.f32 %v4045, %v4070
        %v4074 = vmul.f32 %v4048, %v4070
        %v4075 = vmul.f32 %v4053, %v4070
        %v4076 = vmul.f32 %v4056, %v4070
        %v4077 = vmul.f32 %v4061, %v4070
        %v4078 = vmul.f32 %v4064, %v4070
        %v4079 = vlaneseq
        %v4080 = vshrl.u32 %v4079, 7
        %v4081 = vsub.s32 0, %v4080
        %v4082 = vrot.slane %v3933, %v4081
        %v4083 = vadd.f32 %v4071, %v4082
        %v4084 = vadd.f32 %v4072, %v4082
        %v4085 = vadd.f32 %v4073, %v4082
        %v4086 = vadd.f32 %v4074, %v4082
        %v4087 = vadd.f32 %v4075, %v4082
        %v4088 = vadd.f32 %v4076, %v4082
        %v4089 = vadd.f32 %v4077, %v4082
        %v4090 = vadd.f32 %v4078, %v4082
        %v4091 = vadd.f32 %v3916, %v4083
        %v4092 = vadd.f32 %v3917, %v4084
        %v4093 = vadd.f32 %v3918, %v4085
        %v4094 = vadd.f32 %v3919, %v4086
        %v4095 = vadd.f32 %v3920, %v4087
        %v4096 = vadd.f32 %v3921, %v4088
        %v4097 = vadd.f32 %v3922, %v4089
        %v4098 = vadd.f32 %v3923, %v4090
        %v4099 = vmax.f32 %v4091, 0.0
        %v4100 = vmax.f32 %v4092, 0.0
        %v4101 = vmax.f32 %v4093, 0.0
        %v4102 = vmax.f32 %v4094, 0.0
        %v4103 = vmax.f32 %v4095, 0.0
        %v4104 = vmax.f32 %v4096, 0.0
        %v4105 = vmax.f32 %v4097, 0.0
        %v4106 = vmax.f32 %v4098, 0.0
        %4107 = vst [vmem:[%s352] sm:$0xff] %v4099
        %4108 = vst [vmem:[%s352 + $0x8] sm:$0xff] %v4100
        %4109 = vst [vmem:[%s352 + $0x10] sm:$0xff] %v4101
        %4110 = vst [vmem:[%s352 + $0x18] sm:$0xff] %v4102
        %4111 = vst [vmem:[%s352 + $0x20] sm:$0xff] %v4103
        %4112 = vst [vmem:[%s352 + $0x28] sm:$0xff] %v4104
        %4113 = vst [vmem:[%s352 + $0x30] sm:$0xff] %v4105
        %4114 = vst [vmem:[%s352 + $0x38] sm:$0xff] %v4106
        %s4115 = sand.u32 %s171, 1
        %s4116 = scalar_lea.sflag [#allocation5], %s4115
        %s4117 = sand.u32 %s171, 1
        %s4118 = smul.addr %s4117, 64
        %s4119 = scalar_lea.vmem [#allocation12], %s4118
        // Predicated region
        $region65: #{tpu_custom_call.1} parent=43 // pred_check
          %p4120 = pneg %p181
        $region66: #{tpu_custom_call.1} parent=43 // pred_check_branch
          %4122 = sbr.rel (%p4120) target = $region68
        $region67: #{tpu_custom_call.1} parent=43 // pred_region
          %s4124 = ssub.s32 1024, 1024
          %4125 = vsyncadd %s4116, %s4124
          %s4126 = smul.addr %s27, 8
          %s4127 = smul.addr %s4126, 128
          %s4128 = scalar_lea.hbm %s6, %s4127
          %s4129 = sshll.u32 %s4119, 4
          %s4130 = int_to_ptr.vmem [resolvable:$true] %s4129
          %4135 = dma.vmem_to_hbm [thread:$0]  %s4130, 1024, %s4128, %s4116, 128, 128, 8
        $region68: #{tpu_custom_call.1} parent=43 // pred_fallthru
          _
      $region44: #{tpu_custom_call.1} parent=5 // pred_fallthru
        _
      %p4136 = scmp.le.s32.totalorder 2, %s22
      // Predicated region
      $region69: #{tpu_custom_call.1} parent=5 // pred_check
        %p4137 = pneg %p4136
      $region70: #{tpu_custom_call.1} parent=5 // pred_check_branch
        %4139 = sbr.rel (%p4137) target = $region72
      $region71: #{tpu_custom_call.1} parent=5 // pred_region
        %s4140 = ssub.s32 %s22, 2
        // Predicated region
        $region73: #{tpu_custom_call.1} parent=71 // pred_check
          %p4141 = pneg %p187
        $region74: #{tpu_custom_call.1} parent=71 // pred_check_branch
          %4143 = sbr.rel (%p4141) target = $region76
        $region75: #{tpu_custom_call.1} parent=71 // pred_region
          %s4144 = sand.u32 %s172, 1
          %s4145 = scalar_lea.sflag [#allocation5], %s4144
          %s4146 = sand.u32 %s172, 1
          %s4147 = smul.addr %s4146, 64
          %s4148 = scalar_lea.vmem [#allocation12], %s4147
          %4149 = dma.done %s4145, 1024
        $region76: #{tpu_custom_call.1} parent=71 // pred_fallthru
          _
      $region72: #{tpu_custom_call.1} parent=5 // pred_fallthru
        _
    $region6: #{tpu_custom_call.1} parent=1 // loop_footer
      %s26 = sadd.s32 1, %s22
    $region7: #{tpu_custom_call.1} parent=1 // loop_footer_branch
      %21 = sbr.rel target = $region3
    $region8: #{tpu_custom_call.1} parent=1 // loop_exit
      _
    %4150 = vsyncpa [#allocation4], 1
    %s4151 = scalar_lea.sflag [#allocation4], 1
    %4152 = vsyncpa %s4151, 1
    %4153 = vsyncpa [#allocation7], 1
    %s4154 = scalar_lea.sflag [#allocation7], 1
    %4155 = vsyncpa %s4154, 1
    %4156 = vsyncpa [#allocation10], 1
    %4157 = vsyncpa [#allocation5], 1
    %s4158 = scalar_lea.sflag [#allocation5], 1
    %4159 = vsyncpa %s4158, 1

</llo_original>
